<compile_context>
chip_gen: v7x
topology: tpu7x:2x2x1
jax: 0.10.0
libtpu: 0.0.40
codegen_flags: <defaults>
</compile_context>

<pallas_src>
import functools

import jax
import jax.numpy as jnp
from jax.experimental import pallas as pl
from jax.experimental.pallas import tpu as pltpu


# ----------------------------------------------------------------------------
# helpers
# ----------------------------------------------------------------------------
def _detect_vmem_limit():
    """Generation-aware scoped-VMEM limit (v5e/v6e: 128 MiB parts, v7x: 64 MiB)."""
    default = 32 * 1024 * 1024
    try:
        info = pltpu.get_tpu_info()
        cap = getattr(info, "vmem_capacity_bytes", None)
        if not cap:
            return default
        return int(min(cap * 3 // 4, 100 * 1024 * 1024))
    except Exception:
        return default


_VMEM_LIMIT = _detect_vmem_limit()


def _tile_rows(M, cap=2048):
    """Row tile for token-major kernels.

    Rows are independent, so for large M we use a fixed tile + cdiv and rely on
    Pallas partial-block masking instead of a whole-M fallback (VMEM hazard)."""
    return M if M <= cap else cap


def _attn_tile(T, cap):
    """Tile that exactly divides T (kv tiles feed a reduction -> no padding)."""
    if T <= cap:
        return T
    for t in range(cap, 7, -1):
        if T % t == 0 and t % 8 == 0:
            return t
    return T  # no aligned divisor: fall back to a single full-T block


def _gelu_f32(y):
    # tanh-approx GELU, computed in f32 (v5e EUP/VPU have no bf16)
    return 0.5 * y * (1.0 + jnp.tanh(0.7978845608028654 * (y + 0.044715 * y * y * y)))


def _cparams(semantics):
    return pltpu.CompilerParams(dimension_semantics=semantics,
                                vmem_limit_bytes=_VMEM_LIMIT)


# ----------------------------------------------------------------------------
# Pallas kernels
# ----------------------------------------------------------------------------
def _linear_kernel(x_ref, w_ref, b_ref, o_ref, *, act):
    """o = act(x @ w + b).  x:(tm,K) bf16, w:(K,N) bf16, b:(1,N) f32."""
    y = jnp.dot(x_ref[...], w_ref[...], preferred_element_type=jnp.float32)
    y = y + b_ref[...]
    if act == "gelu":
        y = _gelu_f32(y)
    o_ref[...] = y.astype(o_ref.dtype)


def _linear_residual_kernel(x_ref, w_ref, b_ref, r_ref, o_ref):
    """o = r + (x @ w + b)."""
    y = jnp.dot(x_ref[...], w_ref[...], preferred_element_type=jnp.float32)
    y = y + b_ref[...] + r_ref[...].astype(jnp.float32)
    o_ref[...] = y.astype(o_ref.dtype)


def _ln_qkv_kernel(x_ref, g_ref, bln_ref, wq_ref, bq_ref, wk_ref, bk_ref,
                   wv_ref, bv_ref, q_ref, k_ref, v_ref, *, eps):
    """(q, k, v) = LayerNorm(x) @ (Wq, Wk, Wv) + b  (Wq pre-scaled by 1/sqrt(Dh))."""
    x = x_ref[...].astype(jnp.float32)
    mu = jnp.mean(x, axis=-1, keepdims=True)
    var = jnp.mean((x - mu) * (x - mu), axis=-1, keepdims=True)
    xn = (x - mu) * jax.lax.rsqrt(var + eps)
    xn = (xn * g_ref[...] + bln_ref[...]).astype(wq_ref.dtype)
    q = jnp.dot(xn, wq_ref[...], preferred_element_type=jnp.float32) + bq_ref[...]
    k = jnp.dot(xn, wk_ref[...], preferred_element_type=jnp.float32) + bk_ref[...]
    v = jnp.dot(xn, wv_ref[...], preferred_element_type=jnp.float32) + bv_ref[...]
    q_ref[...] = q.astype(q_ref.dtype)
    k_ref[...] = k.astype(k_ref.dtype)
    v_ref[...] = v.astype(v_ref.dtype)


def _ln_mlp_residual_kernel(x_ref, g_ref, bln_ref, w1_ref, b1_ref, w2_ref, b2_ref,
                            o_ref, *, eps):
    """o = x + fc2(gelu(fc1(LayerNorm(x)))).  Whole MLP branch fused."""
    x = x_ref[...].astype(jnp.float32)
    mu = jnp.mean(x, axis=-1, keepdims=True)
    var = jnp.mean((x - mu) * (x - mu), axis=-1, keepdims=True)
    xn = (x - mu) * jax.lax.rsqrt(var + eps)
    xn = xn * g_ref[...] + bln_ref[...]
    h = jnp.dot(xn.astype(w1_ref.dtype), w1_ref[...], preferred_element_type=jnp.float32)
    h = _gelu_f32(h + b1_ref[...])
    y = jnp.dot(h.astype(w2_ref.dtype), w2_ref[...], preferred_element_type=jnp.float32)
    y = y + b2_ref[...]
    o_ref[...] = (x + y).astype(o_ref.dtype)


def _flash_attn_kernel(q_ref, k_ref, v_ref, o_ref, m_sc, l_sc, acc_sc, *, heads, dim):
    """Flash-style multi-head attention.

    Grid = (B, q_tiles, kv_tiles); kv axis is "arbitrary" (online softmax).
    q_ref : (1, tq, dim) bf16  (already scaled by 1/sqrt(Dh) via W_q folding)
    k_ref : (1, tk, dim) bf16
    v_ref : (1, tk, dim) bf16
    o_ref : (1, tq, dim)
    m_sc, l_sc : (tq, heads) f32 ;  acc_sc : (tq, dim) f32
    """
    Dh = dim // heads
    ki = pl.program_id(2)

    @pl.when(ki == 0)
    def _():
        m_sc[...] = jnp.full(m_sc.shape, -jnp.inf, jnp.float32)
        l_sc[...] = jnp.zeros(l_sc.shape, jnp.float32)
        acc_sc[...] = jnp.zeros(acc_sc.shape, jnp.float32)

    q_all = q_ref[0]   # (tq, dim) bf16
    k_all = k_ref[0]   # (tk, dim) bf16
    v_all = v_ref[0]   # (tk, dim) bf16

    for h in range(heads):
        lo, hi = h * Dh, (h + 1) * Dh
        s = jax.lax.dot_general(q_all[:, lo:hi], k_all[:, lo:hi],
                                (((1,), (1,)), ((), ())),
                                preferred_element_type=jnp.float32)     # (tq, tk)
        m_prev = m_sc[:, h:h + 1]                                       # (tq, 1)
        m_new = jnp.maximum(m_prev, jnp.max(s, axis=-1, keepdims=True))
        alpha = jnp.exp(m_prev - m_new)
        p = jnp.exp(s - m_new)                                          # f32
        l_sc[:, h:h + 1] = alpha * l_sc[:, h:h + 1] + jnp.sum(p, axis=-1, keepdims=True)
        pv = jnp.dot(p.astype(v_all.dtype), v_all[:, lo:hi],
                     preferred_element_type=jnp.float32)                # (tq, Dh)
        acc_sc[:, lo:hi] = alpha * acc_sc[:, lo:hi] + pv
        m_sc[:, h:h + 1] = m_new

    @pl.when(ki == pl.num_programs(2) - 1)
    def _():
        # deferred normalization: O(tq*dim) work, reciprocal on the EUP slot
        inv_l = pl.reciprocal(l_sc[...], approx=True)                   # (tq, heads)
        for h in range(heads):
            lo, hi = h * Dh, (h + 1) * Dh
            acc_sc[:, lo:hi] = acc_sc[:, lo:hi] * inv_l[:, h:h + 1]
        o_ref[0] = acc_sc[...].astype(o_ref.dtype)


# ----------------------------------------------------------------------------
# wrappers (grid + BlockSpecs)
# ----------------------------------------------------------------------------
def pallas_linear(x, w, b, *, act="none", out_dtype=jnp.bfloat16):
    M, K = x.shape
    N = w.shape[1]
    tm = _tile_rows(M)
    cost = pl.CostEstimate(flops=2 * M * K * N,
                           transcendentals=(M * N if act == "gelu" else 0),
                           bytes_accessed=2 * (M * K + K * N + M * N))
    return pl.pallas_call(
        functools.partial(_linear_kernel, act=act),
        out_shape=jax.ShapeDtypeStruct((M, N), out_dtype),
        grid=(pl.cdiv(M, tm),),
        in_specs=[pl.BlockSpec((tm, K), lambda i: (i, 0)),
                  pl.BlockSpec((K, N), lambda i: (0, 0)),
                  pl.BlockSpec((1, N), lambda i: (0, 0))],
        out_specs=pl.BlockSpec((tm, N), lambda i: (i, 0)),
        compiler_params=_cparams(("parallel",)),
        cost_estimate=cost,
    )(x.astype(jnp.bfloat16), w.astype(jnp.bfloat16),
      b.reshape(1, N).astype(jnp.float32))


def pallas_linear_residual(x, w, b, res, *, out_dtype=jnp.bfloat16):
    M, K = x.shape
    N = w.shape[1]
    tm = _tile_rows(M)
    cost = pl.CostEstimate(flops=2 * M * K * N, transcendentals=0,
                           bytes_accessed=2 * (M * K + K * N + 2 * M * N))
    return pl.pallas_call(
        _linear_residual_kernel,
        out_shape=jax.ShapeDtypeStruct((M, N), out_dtype),
        grid=(pl.cdiv(M, tm),),
        in_specs=[pl.BlockSpec((tm, K), lambda i: (i, 0)),
                  pl.BlockSpec((K, N), lambda i: (0, 0)),
                  pl.BlockSpec((1, N), lambda i: (0, 0)),
                  pl.BlockSpec((tm, N), lambda i: (i, 0))],
        out_specs=pl.BlockSpec((tm, N), lambda i: (i, 0)),
        compiler_params=_cparams(("parallel",)),
        cost_estimate=cost,
    )(x.astype(jnp.bfloat16), w.astype(jnp.bfloat16),
      b.reshape(1, N).astype(jnp.float32), res.astype(jnp.bfloat16))


def pallas_ln_qkv(x, gamma, beta, qkv_w, qkv_b, *, dim, scale, eps=1e-5,
                  out_dtype=jnp.bfloat16):
    """LayerNorm + QKV projection, emitting q/k/v as separate (M, dim) arrays.

    qkv_w channel layout is [q | k | v]; the attention scale 1/sqrt(Dh) is
    folded into W_q / b_q (exact, free)."""
    M, K = x.shape
    tm = _tile_rows(M)
    wq = (qkv_w[:, :dim] * scale).astype(jnp.bfloat16)
    bq = (qkv_b[:dim] * scale).reshape(1, dim).astype(jnp.float32)
    wk = qkv_w[:, dim:2 * dim].astype(jnp.bfloat16)
    bk = qkv_b[dim:2 * dim].reshape(1, dim).astype(jnp.float32)
    wv = qkv_w[:, 2 * dim:].astype(jnp.bfloat16)
    bv = qkv_b[2 * dim:].reshape(1, dim).astype(jnp.float32)
    out_sds = jax.ShapeDtypeStruct((M, dim), out_dtype)
    cost = pl.CostEstimate(flops=6 * M * K * dim, transcendentals=0,
                           bytes_accessed=2 * (M * K + 3 * K * dim + 3 * M * dim))
    row = lambda i: (i, 0)
    rep = lambda i: (0, 0)
    return pl.pallas_call(
        functools.partial(_ln_qkv_kernel, eps=eps),
        out_shape=(out_sds, out_sds, out_sds),
        grid=(pl.cdiv(M, tm),),
        in_specs=[pl.BlockSpec((tm, K), row),
                  pl.BlockSpec((1, K), rep), pl.BlockSpec((1, K), rep),
                  pl.BlockSpec((K, dim), rep), pl.BlockSpec((1, dim), rep),
                  pl.BlockSpec((K, dim), rep), pl.BlockSpec((1, dim), rep),
                  pl.BlockSpec((K, dim), rep), pl.BlockSpec((1, dim), rep)],
        out_specs=[pl.BlockSpec((tm, dim), row),
                   pl.BlockSpec((tm, dim), row),
                   pl.BlockSpec((tm, dim), row)],
        compiler_params=_cparams(("parallel",)),
        cost_estimate=cost,
    )(x.astype(jnp.bfloat16),
      gamma.reshape(1, K).astype(jnp.float32), beta.reshape(1, K).astype(jnp.float32),
      wq, bq, wk, bk, wv, bv)


def pallas_ln_mlp_residual(x, gamma, beta, w1, b1, w2, b2, *, eps=1e-5,
                           out_dtype=jnp.bfloat16):
    M, D = x.shape
    Hd = w1.shape[1]
    tm = _tile_rows(M)
    cost = pl.CostEstimate(flops=4 * M * D * Hd, transcendentals=M * Hd,
                           bytes_accessed=2 * (2 * M * D + 2 * D * Hd))
    return pl.pallas_call(
        functools.partial(_ln_mlp_residual_kernel, eps=eps),
        out_shape=jax.ShapeDtypeStruct((M, D), out_dtype),
        grid=(pl.cdiv(M, tm),),
        in_specs=[pl.BlockSpec((tm, D), lambda i: (i, 0)),
                  pl.BlockSpec((1, D), lambda i: (0, 0)),
                  pl.BlockSpec((1, D), lambda i: (0, 0)),
                  pl.BlockSpec((D, Hd), lambda i: (0, 0)),
                  pl.BlockSpec((1, Hd), lambda i: (0, 0)),
                  pl.BlockSpec((Hd, D), lambda i: (0, 0)),
                  pl.BlockSpec((1, D), lambda i: (0, 0))],
        out_specs=pl.BlockSpec((tm, D), lambda i: (i, 0)),
        compiler_params=_cparams(("parallel",)),
        cost_estimate=cost,
    )(x.astype(jnp.bfloat16),
      gamma.reshape(1, D).astype(jnp.float32), beta.reshape(1, D).astype(jnp.float32),
      w1.astype(jnp.bfloat16), b1.reshape(1, Hd).astype(jnp.float32),
      w2.astype(jnp.bfloat16), b2.reshape(1, D).astype(jnp.float32))


def pallas_flash_attention(q, k, v, *, heads, out_dtype=jnp.bfloat16):
    """q/k/v: (B, T, dim) bf16 -> (B, T, dim).  KV-tiled online softmax."""
    B, T, dim = q.shape
    tq = _attn_tile(T, 256)
    tk = _attn_tile(T, 512)
    grid = (B, T // tq, T // tk)
    cost = pl.CostEstimate(flops=4 * B * T * T * dim,
                           transcendentals=B * heads * T * T,
                           bytes_accessed=2 * 4 * B * T * dim)
    return pl.pallas_call(
        functools.partial(_flash_attn_kernel, heads=heads, dim=dim),
        out_shape=jax.ShapeDtypeStruct((B, T, dim), out_dtype),
        grid=grid,
        in_specs=[pl.BlockSpec((1, tq, dim), lambda b, qi, ki: (b, qi, 0)),
                  pl.BlockSpec((1, tk, dim), lambda b, qi, ki: (b, ki, 0)),
                  pl.BlockSpec((1, tk, dim), lambda b, qi, ki: (b, ki, 0))],
        out_specs=pl.BlockSpec((1, tq, dim), lambda b, qi, ki: (b, qi, 0)),
        scratch_shapes=[pltpu.VMEM((tq, heads), jnp.float32),   # m
                        pltpu.VMEM((tq, heads), jnp.float32),   # l
                        pltpu.VMEM((tq, dim), jnp.float32)],    # acc
        compiler_params=_cparams(("parallel", "parallel", "arbitrary")),
        cost_estimate=cost,
    )(q.astype(jnp.bfloat16), k.astype(jnp.bfloat16), v.astype(jnp.bfloat16))


# ----------------------------------------------------------------------------
# Model (parameters + forward glue)
# ----------------------------------------------------------------------------
IN_CHANS = 3
PATCH = 4
DIMS = (32, 64)          # encoder stage dims
HEADS = (2, 4)           # heads per stage (head_dim = 16)
MLP_RATIO = 2
NUM_CLASSES = 2
HEAD_PAD = 128           # lane-dense segmentation-head output width


def _init_linear(key, fan_in, fan_out):
    kw, _ = jax.random.split(key)
    w = 0.02 * jax.random.normal(kw, (fan_in, fan_out), jnp.float32)
    b = jnp.zeros((fan_out,), jnp.float32)
    return w, b


def _init_block(key, dim, hidden):
    ks = jax.random.split(key, 4)
    p = {}
    p["ln1_g"] = jnp.ones((dim,), jnp.float32)
    p["ln1_b"] = jnp.zeros((dim,), jnp.float32)
    # qkv output channel layout: [q(dim) | k(dim) | v(dim)], heads contiguous.
    p["qkv_w"], p["qkv_b"] = _init_linear(ks[0], dim, 3 * dim)
    p["proj_w"], p["proj_b"] = _init_linear(ks[1], dim, dim)
    p["ln2_g"] = jnp.ones((dim,), jnp.float32)
    p["ln2_b"] = jnp.zeros((dim,), jnp.float32)
    p["fc1_w"], p["fc1_b"] = _init_linear(ks[2], dim, hidden)
    p["fc2_w"], p["fc2_b"] = _init_linear(ks[3], hidden, dim)
    return p


def init_params(seed=0):
    root = jax.random.PRNGKey(seed)
    ks = jax.random.split(root, 8)
    params = {}
    # patch embed: 4x4 stride-4 conv  ==  linear on 4*4*IN_CHANS patches
    params["pe_w"], params["pe_b"] = _init_linear(ks[0], PATCH * PATCH * IN_CHANS, DIMS[0])
    params["enc1"] = _init_block(ks[1], DIMS[0], DIMS[0] * MLP_RATIO)
    # downsample: 2x2 stride-2 conv  ==  linear on 2*2*DIMS[0] patches
    params["ds_w"], params["ds_b"] = _init_linear(ks[2], 4 * DIMS[0], DIMS[1])
    params["enc2"] = _init_block(ks[3], DIMS[1], DIMS[1] * MLP_RATIO)
    # decoder: channel reduce 64->32, then block at dim 32
    params["up_w"], params["up_b"] = _init_linear(ks[4], DIMS[1], DIMS[0])
    params["dec1"] = _init_block(ks[5], DIMS[0], DIMS[0] * MLP_RATIO)
    # segmentation head: 1x1 conv 32 -> num_classes
    params["head_w"], params["head_b"] = _init_linear(ks[6], DIMS[0], NUM_CLASSES)
    return params


def _block(tokens, p, B, T, dim, heads):
    """Pre-LN transformer block: LN+QKV, flash attention, proj+res, LN+MLP+res."""
    Dh = dim // heads
    scale = 1.0 / (Dh ** 0.5)
    q, k, v = pallas_ln_qkv(tokens, p["ln1_g"], p["ln1_b"],
                            p["qkv_w"], p["qkv_b"], dim=dim, scale=scale)
    attn = pallas_flash_attention(q.reshape(B, T, dim), k.reshape(B, T, dim),
                                  v.reshape(B, T, dim), heads=heads)
    tokens = pallas_linear_residual(attn.reshape(B * T, dim),
                                    p["proj_w"], p["proj_b"], tokens)
    tokens = pallas_ln_mlp_residual(tokens, p["ln2_g"], p["ln2_b"],
                                    p["fc1_w"], p["fc1_b"], p["fc2_w"], p["fc2_b"])
    return tokens


def _space_to_patches(x_nhwc, p):
    """(B, H, W, C) -> (B*(H/p)*(W/p), p*p*C)   (im2col for stride-p pxp conv).

    TODO(synk): fold this regroup into the patch-embed / downsample kernels'
    BlockSpecs instead of an XLA transpose (saves one HBM round trip)."""
    B, H, W, C = x_nhwc.shape
    x = x_nhwc.reshape(B, H // p, p, W // p, p, C)
    x = jnp.transpose(x, (0, 1, 3, 2, 4, 5))
    return x.reshape(B * (H // p) * (W // p), p * p * C)


def bi_unet_forward(params, x_nchw):
    """x_nchw: (B, IN_CHANS, H, W) float32 -> logits (B, NUM_CLASSES, H, W)."""
    B, C, H, W = x_nchw.shape
    x = jnp.transpose(x_nchw, (0, 2, 3, 1)).astype(jnp.bfloat16)     # NHWC, bf16

    # ---- encoder stage 1: patch embed (4x4 s4 conv) + BiFormer block --------
    h1, w1 = H // PATCH, W // PATCH
    t1 = pallas_linear(_space_to_patches(x, PATCH), params["pe_w"], params["pe_b"])
    t1 = _block(t1, params["enc1"], B, h1 * w1, DIMS[0], HEADS[0])   # (B*h1*w1, 32)

    # ---- encoder stage 2: downsample (2x2 s2 conv) + BiFormer block ---------
    h2, w2 = h1 // 2, w1 // 2
    t1_sp = t1.reshape(B, h1, w1, DIMS[0])
    t2 = pallas_linear(_space_to_patches(t1_sp, 2), params["ds_w"], params["ds_b"])
    t2 = _block(t2, params["enc2"], B, h2 * w2, DIMS[1], HEADS[1])   # (B*h2*w2, 64)

    # ---- decoder: reduce channels, 2x nearest upsample, UNet skip-add -------
    d = pallas_linear(t2, params["up_w"], params["up_b"])            # (B*h2*w2, 32)
    d = d.reshape(B, h2, w2, DIMS[0])
    # TODO(synk): fuse this nearest upsample + skip-add into the `up` kernel's
    # output index_map (write each row block to its 2x2 duplicates) instead of
    # doing it as XLA data movement.
    d = jnp.repeat(jnp.repeat(d, 2, axis=1), 2, axis=2)              # (B, h1, w1, 32)
    d = d.reshape(B * h1 * w1, DIMS[0]) + t1                         # skip connection
    d = _block(d, params["dec1"], B, h1 * w1, DIMS[0], HEADS[0])

    # ---- segmentation head (1x1 conv) BEFORE the 4x nearest upsample --------
    # (pointwise conv commutes with nearest-neighbor repeat -> 16x fewer rows;
    #  padded to 128 lanes for dense stores, emitted in bf16 to halve traffic)
    head_w = jnp.pad(params["head_w"], ((0, 0), (0, HEAD_PAD - NUM_CLASSES)))
    head_b = jnp.pad(params["head_b"], (0, HEAD_PAD - NUM_CLASSES))
    logits = pallas_linear(d, head_w, head_b)                        # (M, 128) bf16
    logits = logits[:, :NUM_CLASSES].astype(jnp.float32)
    logits = logits.reshape(B, h1, w1, NUM_CLASSES)
    logits = jnp.repeat(jnp.repeat(logits, PATCH, axis=1), PATCH, axis=2)  # (B,H,W,2)
    return jnp.transpose(logits, (0, 3, 1, 2))                        # NCHW


# ----------------------------------------------------------------------------
if __name__ == "__main__":
    params = init_params(seed=0)

    key = jax.random.PRNGKey(0)
    x = jax.random.normal(key, (2, IN_CHANS, 16, 16), jnp.float32)    # NCHW like torch

    fwd = jax.jit(bi_unet_forward)
    logits = fwd(params, x)
    jax.block_until_ready(logits)

    assert logits.shape == (2, NUM_CLASSES, 16, 16), logits.shape
    assert jnp.all(jnp.isfinite(logits)), "non-finite logits"
    print("KERNEL_OK")
</pallas_src>

<mosaic_0001>
module attributes {stable_mosaic.version = 11 : i64} {
  func.func @_linear_kernel(%arg0: i32, %arg1: memref<32x48xbf16, #tpu.memory_space<vmem>>, %arg2: memref<48x32xbf16, #tpu.memory_space<vmem>>, %arg3: memref<1x32xf32, #tpu.memory_space<vmem>>, %arg4: memref<32x32xbf16, #tpu.memory_space<vmem>>) attributes {dimension_semantics = [#tpu.dimension_semantics<parallel>], iteration_bounds = array<i64: 1>, scalar_prefetch = 0 : i64, scratch_operands = 0 : i64, tpu.core_type = #tpu.core_type<tc>, window_params = [{transform_indices = @transform_0, window_bounds = array<i64: 32, 48>}, {pipeline_mode = #tpu.pipeline_mode<synchronous>, transform_indices = @transform_1, window_bounds = array<i64: 48, 32>}, {pipeline_mode = #tpu.pipeline_mode<synchronous>, transform_indices = @transform_2, window_bounds = array<i64: 1, 32>}, {transform_indices = @transform_3, window_bounds = array<i64: 32, 32>}]} {
    %c0 = arith.constant 0 : index
    %c0_0 = arith.constant 0 : index
    %0 = vector.load %arg1[%c0, %c0_0] : memref<32x48xbf16, #tpu.memory_space<vmem>>, vector<32x48xbf16>
    %c0_1 = arith.constant 0 : index
    %c0_2 = arith.constant 0 : index
    %1 = vector.load %arg2[%c0_1, %c0_2] : memref<48x32xbf16, #tpu.memory_space<vmem>>, vector<48x32xbf16>
    %cst = arith.constant dense<0.000000e+00> : vector<32x32xf32>
    %2 = tpu.matmul %0, %1, %cst {dimension_numbers = #tpu.dot_dimension_numbers<[1], [0], [0], [1], [0, 0, 1, 1], [], []>} : vector<32x48xbf16>, vector<48x32xbf16>, vector<32x32xf32> -> vector<32x32xf32>
    %c0_3 = arith.constant 0 : index
    %c0_4 = arith.constant 0 : index
    %3 = vector.load %arg3[%c0_3, %c0_4] : memref<1x32xf32, #tpu.memory_space<vmem>>, vector<1x32xf32>
    %4 = vector.broadcast %3 : vector<1x32xf32> to vector<32x32xf32>
    %5 = arith.addf %2, %4 : vector<32x32xf32>
    %6 = arith.truncf %5 : vector<32x32xf32> to vector<32x32xbf16>
    %c0_5 = arith.constant 0 : index
    %c0_6 = arith.constant 0 : index
    %7 = vector.load %arg4[%c0_5, %c0_6] : memref<32x32xbf16, #tpu.memory_space<vmem>>, vector<32x32xbf16>
    tpu.vector_store %arg4[%c0_5, %c0_6], %6 {strides = array<i32>} : memref<32x32xbf16, #tpu.memory_space<vmem>>, vector<32x32xbf16>,
    return
  }
  func.func @transform_0(%arg0: i32) -> (i32, i32) {
    %c0_i32 = arith.constant 0 : i32
    %c0_i32_0 = arith.constant 0 : i32
    return %arg0, %c0_i32 : i32, i32
  }
  func.func @transform_1(%arg0: i32) -> (i32, i32) {
    %c0_i32 = arith.constant 0 : i32
    %c0_i32_0 = arith.constant 0 : i32
    %c0_i32_1 = arith.constant 0 : i32
    return %c0_i32, %c0_i32_0 : i32, i32
  }
  func.func @transform_2(%arg0: i32) -> (i32, i32) {
    %c0_i32 = arith.constant 0 : i32
    %c0_i32_0 = arith.constant 0 : i32
    %c0_i32_1 = arith.constant 0 : i32
    return %c0_i32, %c0_i32_0 : i32, i32
  }
  func.func @transform_3(%arg0: i32) -> (i32, i32) {
    %c0_i32 = arith.constant 0 : i32
    %c0_i32_0 = arith.constant 0 : i32
    return %arg0, %c0_i32 : i32, i32
  }
}

module attributes {stable_mosaic.version = 11 : i64} {
  func.func @_flash_attn_kernel(%arg0: i32, %arg1: i32, %arg2: i32, %arg3: memref<1x16x32xbf16, #tpu.memory_space<vmem>>, %arg4: memref<1x16x32xbf16, #tpu.memory_space<vmem>>, %arg5: memref<1x16x32xbf16, #tpu.memory_space<vmem>>, %arg6: memref<1x16x32xbf16, #tpu.memory_space<vmem>>, %arg7: memref<16x2xf32, #tpu.memory_space<vmem>>, %arg8: memref<16x2xf32, #tpu.memory_space<vmem>>, %arg9: memref<16x32xf32, #tpu.memory_space<vmem>>) attributes {dimension_semantics = [#tpu.dimension_semantics<parallel>, #tpu.dimension_semantics<parallel>, #tpu.dimension_semantics<arbitrary>], iteration_bounds = array<i64: 2, 1, 1>, scalar_prefetch = 0 : i64, scratch_operands = 3 : i64, tpu.core_type = #tpu.core_type<tc>, window_params = [{transform_indices = @transform_0, window_bounds = array<i64: 1, 16, 32>}, {transform_indices = @transform_1, window_bounds = array<i64: 1, 16, 32>}, {transform_indices = @transform_2, window_bounds = array<i64: 1, 16, 32>}, {transform_indices = @transform_3, window_bounds = array<i64: 1, 16, 32>}]} {
    %c0_i32 = arith.constant 0 : i32
    %0 = arith.cmpi eq, %arg2, %c0_i32 : i32
    %1 = arith.extui %0 : i1 to i32
    %c0_i32_0 = arith.constant 0 : i32
    %2 = arith.cmpi ne, %1, %c0_i32_0 : i32
    scf.if %2 {
      %cst_40 = arith.constant 0xFF800000 : f32
      %66 = vector.broadcast %cst_40 : f32 to vector<16x2xf32>
      %c0_41 = arith.constant 0 : index
      %c0_42 = arith.constant 0 : index
      %67 = vector.load %arg7[%c0_41, %c0_42] : memref<16x2xf32, #tpu.memory_space<vmem>>, vector<16x2xf32>
      tpu.vector_store %arg7[%c0_41, %c0_42], %66 {strides = array<i32>} : memref<16x2xf32, #tpu.memory_space<vmem>>, vector<16x2xf32>,
      %cst_43 = arith.constant 0.000000e+00 : f32
      %68 = vector.broadcast %cst_43 : f32 to vector<16x2xf32>
      %c0_44 = arith.constant 0 : index
      %c0_45 = arith.constant 0 : index
      %69 = vector.load %arg8[%c0_44, %c0_45] : memref<16x2xf32, #tpu.memory_space<vmem>>, vector<16x2xf32>
      tpu.vector_store %arg8[%c0_44, %c0_45], %68 {strides = array<i32>} : memref<16x2xf32, #tpu.memory_space<vmem>>, vector<16x2xf32>,
      %cst_46 = arith.constant 0.000000e+00 : f32
      %70 = vector.broadcast %cst_46 : f32 to vector<16x32xf32>
      %c0_47 = arith.constant 0 : index
      %c0_48 = arith.constant 0 : index
      %71 = vector.load %arg9[%c0_47, %c0_48] : memref<16x32xf32, #tpu.memory_space<vmem>>, vector<16x32xf32>
      tpu.vector_store %arg9[%c0_47, %c0_48], %70 {strides = array<i32>} : memref<16x32xf32, #tpu.memory_space<vmem>>, vector<16x32xf32>,
    } else {
    }
    %c0 = arith.constant 0 : index
    %c0_1 = arith.constant 0 : index
    %c0_2 = arith.constant 0 : index
    %3 = vector.load %arg3[%c0, %c0_1, %c0_2] : memref<1x16x32xbf16, #tpu.memory_space<vmem>>, vector<1x16x32xbf16>
    %4 = vector.shape_cast %3 : vector<1x16x32xbf16> to vector<16x32xbf16>
    %c0_3 = arith.constant 0 : index
    %c0_4 = arith.constant 0 : index
    %c0_5 = arith.constant 0 : index
    %5 = vector.load %arg4[%c0_3, %c0_4, %c0_5] : memref<1x16x32xbf16, #tpu.memory_space<vmem>>, vector<1x16x32xbf16>
    %6 = vector.shape_cast %5 : vector<1x16x32xbf16> to vector<16x32xbf16>
    %c0_6 = arith.constant 0 : index
    %c0_7 = arith.constant 0 : index
    %c0_8 = arith.constant 0 : index
    %7 = vector.load %arg5[%c0_6, %c0_7, %c0_8] : memref<1x16x32xbf16, #tpu.memory_space<vmem>>, vector<1x16x32xbf16>
    %8 = vector.shape_cast %7 : vector<1x16x32xbf16> to vector<16x32xbf16>
    %9 = vector.extract_strided_slice %4 {offsets = [0, 0], sizes = [16, 16], strides = [1, 1]} : vector<16x32xbf16> to vector<16x16xbf16>
    %10 = vector.extract_strided_slice %6 {offsets = [0, 0], sizes = [16, 16], strides = [1, 1]} : vector<16x32xbf16> to vector<16x16xbf16>
    %cst = arith.constant dense<0.000000e+00> : vector<16x16xf32>
    %11 = tpu.matmul %9, %10, %cst {dimension_numbers = #tpu.dot_dimension_numbers<[1], [1], [0], [0], [0, 0, 1, 0], [], []>} : vector<16x16xbf16>, vector<16x16xbf16>, vector<16x16xf32> -> vector<16x16xf32>
    %c0_9 = arith.constant 0 : index
    %c0_10 = arith.constant 0 : index
    %12 = vector.load %arg7[%c0_9, %c0_10] : memref<16x2xf32, #tpu.memory_space<vmem>>, vector<16x1xf32>
    %cst_11 = arith.constant dense<0xFF800000> : vector<16xf32>
    %13 = vector.multi_reduction <maximumf>, %11, %cst_11 [1] : vector<16x16xf32> to vector<16xf32>
    %14 = vector.shape_cast %13 : vector<16xf32> to vector<16x1xf32>
    %15 = arith.maximumf %12, %14 : vector<16x1xf32>
    %16 = arith.subf %12, %15 : vector<16x1xf32>
    %17 = math.exp %16 : vector<16x1xf32>
    %18 = vector.broadcast %15 : vector<16x1xf32> to vector<16x16xf32>
    %19 = arith.subf %11, %18 : vector<16x16xf32>
    %20 = math.exp %19 : vector<16x16xf32>
    %c0_12 = arith.constant 0 : index
    %c0_13 = arith.constant 0 : index
    %21 = vector.load %arg8[%c0_12, %c0_13] : memref<16x2xf32, #tpu.memory_space<vmem>>, vector<16x1xf32>
    %22 = arith.mulf %17, %21 : vector<16x1xf32>
    %cst_14 = arith.constant dense<0.000000e+00> : vector<16xf32>
    %23 = vector.multi_reduction <add>, %20, %cst_14 [1] : vector<16x16xf32> to vector<16xf32>
    %24 = vector.shape_cast %23 : vector<16xf32> to vector<16x1xf32>
    %25 = arith.addf %22, %24 : vector<16x1xf32>
    %c0_15 = arith.constant 0 : index
    %c0_16 = arith.constant 0 : index
    %26 = vector.load %arg8[%c0_15, %c0_16] : memref<16x2xf32, #tpu.memory_space<vmem>>, vector<16x1xf32>
    tpu.vector_store %arg8[%c0_15, %c0_16], %25 {strides = array<i32>} : memref<16x2xf32, #tpu.memory_space<vmem>>, vector<16x1xf32>,
    %27 = arith.truncf %20 : vector<16x16xf32> to vector<16x16xbf16>
    %28 = vector.extract_strided_slice %8 {offsets = [0, 0], sizes = [16, 16], strides = [1, 1]} : vector<16x32xbf16> to vector<16x16xbf16>
    %cst_17 = arith.constant dense<0.000000e+00> : vector<16x16xf32>
    %29 = tpu.matmul %27, %28, %cst_17 {dimension_numbers = #tpu.dot_dimension_numbers<[1], [0], [0], [1], [0, 0, 1, 1], [], []>} : vector<16x16xbf16>, vector<16x16xbf16>, vector<16x16xf32> -> vector<16x16xf32>
    %c0_18 = arith.constant 0 : index
    %c0_19 = arith.constant 0 : index
    %30 = vector.load %arg9[%c0_18, %c0_19] : memref<16x32xf32, #tpu.memory_space<vmem>>, vector<16x16xf32>
    %31 = vector.broadcast %17 : vector<16x1xf32> to vector<16x16xf32>
    %32 = arith.mulf %31, %30 : vector<16x16xf32>
    %33 = arith.addf %32, %29 : vector<16x16xf32>
    %c0_20 = arith.constant 0 : index
    %c0_21 = arith.constant 0 : index
    %34 = vector.load %arg9[%c0_20, %c0_21] : memref<16x32xf32, #tpu.memory_space<vmem>>, vector<16x16xf32>
    tpu.vector_store %arg9[%c0_20, %c0_21], %33 {strides = array<i32>} : memref<16x32xf32, #tpu.memory_space<vmem>>, vector<16x16xf32>,
    %c0_22 = arith.constant 0 : index
    %c0_23 = arith.constant 0 : index
    %35 = vector.load %arg7[%c0_22, %c0_23] : memref<16x2xf32, #tpu.memory_space<vmem>>, vector<16x1xf32>
    tpu.vector_store %arg7[%c0_22, %c0_23], %15 {strides = array<i32>} : memref<16x2xf32, #tpu.memory_space<vmem>>, vector<16x1xf32>,
    %36 = vector.extract_strided_slice %4 {offsets = [0, 16], sizes = [16, 16], strides = [1, 1]} : vector<16x32xbf16> to vector<16x16xbf16>
    %37 = vector.extract_strided_slice %6 {offsets = [0, 16], sizes = [16, 16], strides = [1, 1]} : vector<16x32xbf16> to vector<16x16xbf16>
    %cst_24 = arith.constant dense<0.000000e+00> : vector<16x16xf32>
    %38 = tpu.matmul %36, %37, %cst_24 {dimension_numbers = #tpu.dot_dimension_numbers<[1], [1], [0], [0], [0, 0, 1, 0], [], []>} : vector<16x16xbf16>, vector<16x16xbf16>, vector<16x16xf32> -> vector<16x16xf32>
    %c0_25 = arith.constant 0 : index
    %c1 = arith.constant 1 : index
    %39 = vector.load %arg7[%c0_25, %c1] : memref<16x2xf32, #tpu.memory_space<vmem>>, vector<16x1xf32>
    %cst_26 = arith.constant dense<0xFF800000> : vector<16xf32>
    %40 = vector.multi_reduction <maximumf>, %38, %cst_26 [1] : vector<16x16xf32> to vector<16xf32>
    %41 = vector.shape_cast %40 : vector<16xf32> to vector<16x1xf32>
    %42 = arith.maximumf %39, %41 : vector<16x1xf32>
    %43 = arith.subf %39, %42 : vector<16x1xf32>
    %44 = math.exp %43 : vector<16x1xf32>
    %45 = vector.broadcast %42 : vector<16x1xf32> to vector<16x16xf32>
    %46 = arith.subf %38, %45 : vector<16x16xf32>
    %47 = math.exp %46 : vector<16x16xf32>
    %c0_27 = arith.constant 0 : index
    %c1_28 = arith.constant 1 : index
    %48 = vector.load %arg8[%c0_27, %c1_28] : memref<16x2xf32, #tpu.memory_space<vmem>>, vector<16x1xf32>
    %49 = arith.mulf %44, %48 : vector<16x1xf32>
    %cst_29 = arith.constant dense<0.000000e+00> : vector<16xf32>
    %50 = vector.multi_reduction <add>, %47, %cst_29 [1] : vector<16x16xf32> to vector<16xf32>
    %51 = vector.shape_cast %50 : vector<16xf32> to vector<16x1xf32>
    %52 = arith.addf %49, %51 : vector<16x1xf32>
    %c0_30 = arith.constant 0 : index
    %c1_31 = arith.constant 1 : index
    %53 = vector.load %arg8[%c0_30, %c1_31] : memref<16x2xf32, #tpu.memory_space<vmem>>, vector<16x1xf32>
    tpu.vector_store %arg8[%c0_30, %c1_31], %52 {strides = array<i32>} : memref<16x2xf32, #tpu.memory_space<vmem>>, vector<16x1xf32>,
    %54 = arith.truncf %47 : vector<16x16xf32> to vector<16x16xbf16>
    %55 = vector.extract_strided_slice %8 {offsets = [0, 16], sizes = [16, 16], strides = [1, 1]} : vector<16x32xbf16> to vector<16x16xbf16>
    %cst_32 = arith.constant dense<0.000000e+00> : vector<16x16xf32>
    %56 = tpu.matmul %54, %55, %cst_32 {dimension_numbers = #tpu.dot_dimension_numbers<[1], [0], [0], [1], [0, 0, 1, 1], [], []>} : vector<16x16xbf16>, vector<16x16xbf16>, vector<16x16xf32> -> vector<16x16xf32>
    %c0_33 = arith.constant 0 : index
    %c16 = arith.constant 16 : index
    %57 = vector.load %arg9[%c0_33, %c16] : memref<16x32xf32, #tpu.memory_space<vmem>>, vector<16x16xf32>
    %58 = vector.broadcast %44 : vector<16x1xf32> to vector<16x16xf32>
    %59 = arith.mulf %58, %57 : vector<16x16xf32>
    %60 = arith.addf %59, %56 : vector<16x16xf32>
    %c0_34 = arith.constant 0 : index
    %c16_35 = arith.constant 16 : index
    %61 = vector.load %arg9[%c0_34, %c16_35] : memref<16x32xf32, #tpu.memory_space<vmem>>, vector<16x16xf32>
    tpu.vector_store %arg9[%c0_34, %c16_35], %60 {strides = array<i32>} : memref<16x32xf32, #tpu.memory_space<vmem>>, vector<16x16xf32>,
    %c0_36 = arith.constant 0 : index
    %c1_37 = arith.constant 1 : index
    %62 = vector.load %arg7[%c0_36, %c1_37] : memref<16x2xf32, #tpu.memory_space<vmem>>, vector<16x1xf32>
    tpu.vector_store %arg7[%c0_36, %c1_37], %42 {strides = array<i32>} : memref<16x2xf32, #tpu.memory_space<vmem>>, vector<16x1xf32>,
    %c0_i32_38 = arith.constant 0 : i32
    %63 = arith.cmpi eq, %arg2, %c0_i32_38 : i32
    %64 = arith.extui %63 : i1 to i32
    %c0_i32_39 = arith.constant 0 : i32
    %65 = arith.cmpi ne, %64, %c0_i32_39 : i32
    scf.if %65 {
      %c0_40 = arith.constant 0 : index
      %c0_41 = arith.constant 0 : index
      %66 = vector.load %arg8[%c0_40, %c0_41] : memref<16x2xf32, #tpu.memory_space<vmem>>, vector<16x2xf32>
      %67 = tpu.reciprocal %66 {approx = true} : vector<16x2xf32> -> vector<16x2xf32>
      %c0_42 = arith.constant 0 : index
      %c0_43 = arith.constant 0 : index
      %68 = vector.load %arg9[%c0_42, %c0_43] : memref<16x32xf32, #tpu.memory_space<vmem>>, vector<16x16xf32>
      %69 = vector.extract_strided_slice %67 {offsets = [0, 0], sizes = [16, 1], strides = [1, 1]} : vector<16x2xf32> to vector<16x1xf32>
      %70 = vector.broadcast %69 : vector<16x1xf32> to vector<16x16xf32>
      %71 = arith.mulf %68, %70 : vector<16x16xf32>
      %c0_44 = arith.constant 0 : index
      %c0_45 = arith.constant 0 : index
      %72 = vector.load %arg9[%c0_44, %c0_45] : memref<16x32xf32, #tpu.memory_space<vmem>>, vector<16x16xf32>
      tpu.vector_store %arg9[%c0_44, %c0_45], %71 {strides = array<i32>} : memref<16x32xf32, #tpu.memory_space<vmem>>, vector<16x16xf32>,
      %c0_46 = arith.constant 0 : index
      %c16_47 = arith.constant 16 : index
      %73 = vector.load %arg9[%c0_46, %c16_47] : memref<16x32xf32, #tpu.memory_space<vmem>>, vector<16x16xf32>
      %74 = vector.extract_strided_slice %67 {offsets = [0, 1], sizes = [16, 1], strides = [1, 1]} : vector<16x2xf32> to vector<16x1xf32>
      %75 = vector.broadcast %74 : vector<16x1xf32> to vector<16x16xf32>
      %76 = arith.mulf %73, %75 : vector<16x16xf32>
      %c0_48 = arith.constant 0 : index
      %c16_49 = arith.constant 16 : index
      %77 = vector.load %arg9[%c0_48, %c16_49] : memref<16x32xf32, #tpu.memory_space<vmem>>, vector<16x16xf32>
      tpu.vector_store %arg9[%c0_48, %c16_49], %76 {strides = array<i32>} : memref<16x32xf32, #tpu.memory_space<vmem>>, vector<16x16xf32>,
      %c0_50 = arith.constant 0 : index
      %c0_51 = arith.constant 0 : index
      %78 = vector.load %arg9[%c0_50, %c0_51] : memref<16x32xf32, #tpu.memory_space<vmem>>, vector<16x32xf32>
      %79 = arith.truncf %78 : vector<16x32xf32> to vector<16x32xbf16>
      %c0_52 = arith.constant 0 : index
      %c0_53 = arith.constant 0 : index
      %c0_54 = arith.constant 0 : index
      %80 = vector.load %arg6[%c0_52, %c0_53, %c0_54] : memref<1x16x32xbf16, #tpu.memory_space<vmem>>, vector<1x16x32xbf16>
      %81 = vector.shape_cast %80 : vector<1x16x32xbf16> to vector<16x32xbf16>
      %82 = vector.shape_cast %79 : vector<16x32xbf16> to vector<1x16x32xbf16>
      tpu.vector_store %arg6[%c0_52, %c0_53, %c0_54], %82 {strides = array<i32>} : memref<1x16x32xbf16, #tpu.memory_space<vmem>>, vector<1x16x32xbf16>,
    } else {
    }
    return
  }
  func.func @transform_0(%arg0: i32, %arg1: i32, %arg2: i32) -> (i32, i32, i32) {
    %c0_i32 = arith.constant 0 : i32
    %c0_i32_0 = arith.constant 0 : i32
    return %arg0, %arg1, %c0_i32 : i32, i32, i32
  }
  func.func @transform_1(%arg0: i32, %arg1: i32, %arg2: i32) -> (i32, i32, i32) {
    %c0_i32 = arith.constant 0 : i32
    %c0_i32_0 = arith.constant 0 : i32
    return %arg0, %arg2, %c0_i32 : i32, i32, i32
  }
  func.func @transform_2(%arg0: i32, %arg1: i32, %arg2: i32) -> (i32, i32, i32) {
    %c0_i32 = arith.constant 0 : i32
    %c0_i32_0 = arith.constant 0 : i32
    return %arg0, %arg2, %c0_i32 : i32, i32, i32
  }
  func.func @transform_3(%arg0: i32, %arg1: i32, %arg2: i32) -> (i32, i32, i32) {
    %c0_i32 = arith.constant 0 : i32
    %c0_i32_0 = arith.constant 0 : i32
    return %arg0, %arg1, %c0_i32 : i32, i32, i32
  }
}

module attributes {stable_mosaic.version = 11 : i64} {
  func.func @_ln_qkv_kernel(%arg0: i32, %arg1: memref<32x32xbf16, #tpu.memory_space<vmem>>, %arg2: memref<1x32xf32, #tpu.memory_space<vmem>>, %arg3: memref<1x32xf32, #tpu.memory_space<vmem>>, %arg4: memref<32x32xbf16, #tpu.memory_space<vmem>>, %arg5: memref<1x32xf32, #tpu.memory_space<vmem>>, %arg6: memref<32x32xbf16, #tpu.memory_space<vmem>>, %arg7: memref<1x32xf32, #tpu.memory_space<vmem>>, %arg8: memref<32x32xbf16, #tpu.memory_space<vmem>>, %arg9: memref<1x32xf32, #tpu.memory_space<vmem>>, %arg10: memref<32x32xbf16, #tpu.memory_space<vmem>>, %arg11: memref<32x32xbf16, #tpu.memory_space<vmem>>, %arg12: memref<32x32xbf16, #tpu.memory_space<vmem>>) attributes {dimension_semantics = [#tpu.dimension_semantics<parallel>], iteration_bounds = array<i64: 1>, scalar_prefetch = 0 : i64, scratch_operands = 0 : i64, tpu.core_type = #tpu.core_type<tc>, window_params = [{transform_indices = @transform_0, window_bounds = array<i64: 32, 32>}, {pipeline_mode = #tpu.pipeline_mode<synchronous>, transform_indices = @transform_1, window_bounds = array<i64: 1, 32>}, {pipeline_mode = #tpu.pipeline_mode<synchronous>, transform_indices = @transform_2, window_bounds = array<i64: 1, 32>}, {pipeline_mode = #tpu.pipeline_mode<synchronous>, transform_indices = @transform_3, window_bounds = array<i64: 32, 32>}, {pipeline_mode = #tpu.pipeline_mode<synchronous>, transform_indices = @transform_4, window_bounds = array<i64: 1, 32>}, {pipeline_mode = #tpu.pipeline_mode<synchronous>, transform_indices = @transform_5, window_bounds = array<i64: 32, 32>}, {pipeline_mode = #tpu.pipeline_mode<synchronous>, transform_indices = @transform_6, window_bounds = array<i64: 1, 32>}, {pipeline_mode = #tpu.pipeline_mode<synchronous>, transform_indices = @transform_7, window_bounds = array<i64: 32, 32>}, {pipeline_mode = #tpu.pipeline_mode<synchronous>, transform_indices = @transform_8, window_bounds = array<i64: 1, 32>}, {transform_indices = @transform_9, window_bounds = array<i64: 32, 32>}, {transform_indices = @transform_10, window_bounds = array<i64: 32, 32>}, {transform_indices = @transform_11, window_bounds = array<i64: 32, 32>}]} {
    %c0 = arith.constant 0 : index
    %c0_0 = arith.constant 0 : index
    %0 = vector.load %arg1[%c0, %c0_0] : memref<32x32xbf16, #tpu.memory_space<vmem>>, vector<32x32xbf16>
    %1 = arith.extf %0 : vector<32x32xbf16> to vector<32x32xf32>
    %cst = arith.constant dense<0.000000e+00> : vector<32xf32>
    %2 = vector.multi_reduction <add>, %1, %cst [1] : vector<32x32xf32> to vector<32xf32>
    %3 = vector.shape_cast %2 : vector<32xf32> to vector<32x1xf32>
    %cst_1 = arith.constant 3.200000e+01 : f32
    %4 = vector.broadcast %cst_1 : f32 to vector<32x1xf32>
    %5 = arith.divf %3, %4 : vector<32x1xf32>
    %6 = vector.broadcast %5 : vector<32x1xf32> to vector<32x32xf32>
    %7 = arith.subf %1, %6 : vector<32x32xf32>
    %8 = vector.broadcast %5 : vector<32x1xf32> to vector<32x32xf32>
    %9 = arith.subf %1, %8 : vector<32x32xf32>
    %10 = arith.mulf %7, %9 : vector<32x32xf32>
    %cst_2 = arith.constant dense<0.000000e+00> : vector<32xf32>
    %11 = vector.multi_reduction <add>, %10, %cst_2 [1] : vector<32x32xf32> to vector<32xf32>
    %12 = vector.shape_cast %11 : vector<32xf32> to vector<32x1xf32>
    %cst_3 = arith.constant 3.200000e+01 : f32
    %13 = vector.broadcast %cst_3 : f32 to vector<32x1xf32>
    %14 = arith.divf %12, %13 : vector<32x1xf32>
    %15 = vector.broadcast %5 : vector<32x1xf32> to vector<32x32xf32>
    %16 = arith.subf %1, %15 : vector<32x32xf32>
    %cst_4 = arith.constant 9.99999974E-6 : f32
    %17 = vector.broadcast %cst_4 : f32 to vector<32x1xf32>
    %18 = arith.addf %14, %17 : vector<32x1xf32>
    %19 = math.rsqrt %18 : vector<32x1xf32>
    %20 = vector.broadcast %19 : vector<32x1xf32> to vector<32x32xf32>
    %21 = arith.mulf %16, %20 : vector<32x32xf32>
    %c0_5 = arith.constant 0 : index
    %c0_6 = arith.constant 0 : index
    %22 = vector.load %arg2[%c0_5, %c0_6] : memref<1x32xf32, #tpu.memory_space<vmem>>, vector<1x32xf32>
    %23 = vector.broadcast %22 : vector<1x32xf32> to vector<32x32xf32>
    %24 = arith.mulf %21, %23 : vector<32x32xf32>
    %c0_7 = arith.constant 0 : index
    %c0_8 = arith.constant 0 : index
    %25 = vector.load %arg3[%c0_7, %c0_8] : memref<1x32xf32, #tpu.memory_space<vmem>>, vector<1x32xf32>
    %26 = vector.broadcast %25 : vector<1x32xf32> to vector<32x32xf32>
    %27 = arith.addf %24, %26 : vector<32x32xf32>
    %28 = arith.truncf %27 : vector<32x32xf32> to vector<32x32xbf16>
    %c0_9 = arith.constant 0 : index
    %c0_10 = arith.constant 0 : index
    %29 = vector.load %arg4[%c0_9, %c0_10] : memref<32x32xbf16, #tpu.memory_space<vmem>>, vector<32x32xbf16>
    %cst_11 = arith.constant dense<0.000000e+00> : vector<32x32xf32>
    %30 = tpu.matmul %28, %29, %cst_11 {dimension_numbers = #tpu.dot_dimension_numbers<[1], [0], [0], [1], [0, 0, 1, 1], [], []>} : vector<32x32xbf16>, vector<32x32xbf16>, vector<32x32xf32> -> vector<32x32xf32>
    %c0_12 = arith.constant 0 : index
    %c0_13 = arith.constant 0 : index
    %31 = vector.load %arg5[%c0_12, %c0_13] : memref<1x32xf32, #tpu.memory_space<vmem>>, vector<1x32xf32>
    %32 = vector.broadcast %31 : vector<1x32xf32> to vector<32x32xf32>
    %33 = arith.addf %30, %32 : vector<32x32xf32>
    %c0_14 = arith.constant 0 : index
    %c0_15 = arith.constant 0 : index
    %34 = vector.load %arg6[%c0_14, %c0_15] : memref<32x32xbf16, #tpu.memory_space<vmem>>, vector<32x32xbf16>
    %cst_16 = arith.constant dense<0.000000e+00> : vector<32x32xf32>
    %35 = tpu.matmul %28, %34, %cst_16 {dimension_numbers = #tpu.dot_dimension_numbers<[1], [0], [0], [1], [0, 0, 1, 1], [], []>} : vector<32x32xbf16>, vector<32x32xbf16>, vector<32x32xf32> -> vector<32x32xf32>
    %c0_17 = arith.constant 0 : index
    %c0_18 = arith.constant 0 : index
    %36 = vector.load %arg7[%c0_17, %c0_18] : memref<1x32xf32, #tpu.memory_space<vmem>>, vector<1x32xf32>
    %37 = vector.broadcast %36 : vector<1x32xf32> to vector<32x32xf32>
    %38 = arith.addf %35, %37 : vector<32x32xf32>
    %c0_19 = arith.constant 0 : index
    %c0_20 = arith.constant 0 : index
    %39 = vector.load %arg8[%c0_19, %c0_20] : memref<32x32xbf16, #tpu.memory_space<vmem>>, vector<32x32xbf16>
    %cst_21 = arith.constant dense<0.000000e+00> : vector<32x32xf32>
    %40 = tpu.matmul %28, %39, %cst_21 {dimension_numbers = #tpu.dot_dimension_numbers<[1], [0], [0], [1], [0, 0, 1, 1], [], []>} : vector<32x32xbf16>, vector<32x32xbf16>, vector<32x32xf32> -> vector<32x32xf32>
    %c0_22 = arith.constant 0 : index
    %c0_23 = arith.constant 0 : index
    %41 = vector.load %arg9[%c0_22, %c0_23] : memref<1x32xf32, #tpu.memory_space<vmem>>, vector<1x32xf32>
    %42 = vector.broadcast %41 : vector<1x32xf32> to vector<32x32xf32>
    %43 = arith.addf %40, %42 : vector<32x32xf32>
    %44 = arith.truncf %33 : vector<32x32xf32> to vector<32x32xbf16>
    %c0_24 = arith.constant 0 : index
    %c0_25 = arith.constant 0 : index
    %45 = vector.load %arg10[%c0_24, %c0_25] : memref<32x32xbf16, #tpu.memory_space<vmem>>, vector<32x32xbf16>
    tpu.vector_store %arg10[%c0_24, %c0_25], %44 {strides = array<i32>} : memref<32x32xbf16, #tpu.memory_space<vmem>>, vector<32x32xbf16>,
    %46 = arith.truncf %38 : vector<32x32xf32> to vector<32x32xbf16>
    %c0_26 = arith.constant 0 : index
    %c0_27 = arith.constant 0 : index
    %47 = vector.load %arg11[%c0_26, %c0_27] : memref<32x32xbf16, #tpu.memory_space<vmem>>, vector<32x32xbf16>
    tpu.vector_store %arg11[%c0_26, %c0_27], %46 {strides = array<i32>} : memref<32x32xbf16, #tpu.memory_space<vmem>>, vector<32x32xbf16>,
    %48 = arith.truncf %43 : vector<32x32xf32> to vector<32x32xbf16>
    %c0_28 = arith.constant 0 : index
    %c0_29 = arith.constant 0 : index
    %49 = vector.load %arg12[%c0_28, %c0_29] : memref<32x32xbf16, #tpu.memory_space<vmem>>, vector<32x32xbf16>
    tpu.vector_store %arg12[%c0_28, %c0_29], %48 {strides = array<i32>} : memref<32x32xbf16, #tpu.memory_space<vmem>>, vector<32x32xbf16>,
    return
  }
  func.func @transform_0(%arg0: i32) -> (i32, i32) {
    %c0_i32 = arith.constant 0 : i32
    %c0_i32_0 = arith.constant 0 : i32
    return %arg0, %c0_i32 : i32, i32
  }
  func.func @transform_1(%arg0: i32) -> (i32, i32) {
    %c0_i32 = arith.constant 0 : i32
    %c0_i32_0 = arith.constant 0 : i32
    %c0_i32_1 = arith.constant 0 : i32
    return %c0_i32, %c0_i32_0 : i32, i32
  }
  func.func @transform_2(%arg0: i32) -> (i32, i32) {
    %c0_i32 = arith.constant 0 : i32
    %c0_i32_0 = arith.constant 0 : i32
    %c0_i32_1 = arith.constant 0 : i32
    return %c0_i32, %c0_i32_0 : i32, i32
  }
  func.func @transform_3(%arg0: i32) -> (i32, i32) {
    %c0_i32 = arith.constant 0 : i32
    %c0_i32_0 = arith.constant 0 : i32
    %c0_i32_1 = arith.constant 0 : i32
    return %c0_i32, %c0_i32_0 : i32, i32
  }
  func.func @transform_4(%arg0: i32) -> (i32, i32) {
    %c0_i32 = arith.constant 0 : i32
    %c0_i32_0 = arith.constant 0 : i32
    %c0_i32_1 = arith.constant 0 : i32
    return %c0_i32, %c0_i32_0 : i32, i32
  }
  func.func @transform_5(%arg0: i32) -> (i32, i32) {
    %c0_i32 = arith.constant 0 : i32
    %c0_i32_0 = arith.constant 0 : i32
    %c0_i32_1 = arith.constant 0 : i32
    return %c0_i32, %c0_i32_0 : i32, i32
  }
  func.func @transform_6(%arg0: i32) -> (i32, i32) {
    %c0_i32 = arith.constant 0 : i32
    %c0_i32_0 = arith.constant 0 : i32
    %c0_i32_1 = arith.constant 0 : i32
    return %c0_i32, %c0_i32_0 : i32, i32
  }
  func.func @transform_7(%arg0: i32) -> (i32, i32) {
    %c0_i32 = arith.constant 0 : i32
    %c0_i32_0 = arith.constant 0 : i32
    %c0_i32_1 = arith.constant 0 : i32
    return %c0_i32, %c0_i32_0 : i32, i32
  }
  func.func @transform_8(%arg0: i32) -> (i32, i32) {
    %c0_i32 = arith.constant 0 : i32
    %c0_i32_0 = arith.constant 0 : i32
    %c0_i32_1 = arith.constant 0 : i32
    return %c0_i32, %c0_i32_0 : i32, i32
  }
  func.func @transform_9(%arg0: i32) -> (i32, i32) {
    %c0_i32 = arith.constant 0 : i32
    %c0_i32_0 = arith.constant 0 : i32
    return %arg0, %c0_i32 : i32, i32
  }
  func.func @transform_10(%arg0: i32) -> (i32, i32) {
    %c0_i32 = arith.constant 0 : i32
    %c0_i32_0 = arith.constant 0 : i32
    return %arg0, %c0_i32 : i32, i32
  }
  func.func @transform_11(%arg0: i32) -> (i32, i32) {
    %c0_i32 = arith.constant 0 : i32
    %c0_i32_0 = arith.constant 0 : i32
    return %arg0, %c0_i32 : i32, i32
  }
}

module attributes {stable_mosaic.version = 11 : i64} {
  func.func @_linear_residual_kernel(%arg0: i32, %arg1: memref<32x32xbf16, #tpu.memory_space<vmem>>, %arg2: memref<32x32xbf16, #tpu.memory_space<vmem>>, %arg3: memref<1x32xf32, #tpu.memory_space<vmem>>, %arg4: memref<32x32xbf16, #tpu.memory_space<vmem>>, %arg5: memref<32x32xbf16, #tpu.memory_space<vmem>>) attributes {dimension_semantics = [#tpu.dimension_semantics<parallel>], iteration_bounds = array<i64: 1>, scalar_prefetch = 0 : i64, scratch_operands = 0 : i64, tpu.core_type = #tpu.core_type<tc>, window_params = [{transform_indices = @transform_0, window_bounds = array<i64: 32, 32>}, {pipeline_mode = #tpu.pipeline_mode<synchronous>, transform_indices = @transform_1, window_bounds = array<i64: 32, 32>}, {pipeline_mode = #tpu.pipeline_mode<synchronous>, transform_indices = @transform_2, window_bounds = array<i64: 1, 32>}, {transform_indices = @transform_3, window_bounds = array<i64: 32, 32>}, {transform_indices = @transform_4, window_bounds = array<i64: 32, 32>}]} {
    %c0 = arith.constant 0 : index
    %c0_0 = arith.constant 0 : index
    %0 = vector.load %arg1[%c0, %c0_0] : memref<32x32xbf16, #tpu.memory_space<vmem>>, vector<32x32xbf16>
    %c0_1 = arith.constant 0 : index
    %c0_2 = arith.constant 0 : index
    %1 = vector.load %arg2[%c0_1, %c0_2] : memref<32x32xbf16, #tpu.memory_space<vmem>>, vector<32x32xbf16>
    %cst = arith.constant dense<0.000000e+00> : vector<32x32xf32>
    %2 = tpu.matmul %0, %1, %cst {dimension_numbers = #tpu.dot_dimension_numbers<[1], [0], [0], [1], [0, 0, 1, 1], [], []>} : vector<32x32xbf16>, vector<32x32xbf16>, vector<32x32xf32> -> vector<32x32xf32>
    %c0_3 = arith.constant 0 : index
    %c0_4 = arith.constant 0 : index
    %3 = vector.load %arg3[%c0_3, %c0_4] : memref<1x32xf32, #tpu.memory_space<vmem>>, vector<1x32xf32>
    %4 = vector.broadcast %3 : vector<1x32xf32> to vector<32x32xf32>
    %5 = arith.addf %2, %4 : vector<32x32xf32>
    %c0_5 = arith.constant 0 : index
    %c0_6 = arith.constant 0 : index
    %6 = vector.load %arg4[%c0_5, %c0_6] : memref<32x32xbf16, #tpu.memory_space<vmem>>, vector<32x32xbf16>
    %7 = arith.extf %6 : vector<32x32xbf16> to vector<32x32xf32>
    %8 = arith.addf %5, %7 : vector<32x32xf32>
    %9 = arith.truncf %8 : vector<32x32xf32> to vector<32x32xbf16>
    %c0_7 = arith.constant 0 : index
    %c0_8 = arith.constant 0 : index
    %10 = vector.load %arg5[%c0_7, %c0_8] : memref<32x32xbf16, #tpu.memory_space<vmem>>, vector<32x32xbf16>
    tpu.vector_store %arg5[%c0_7, %c0_8], %9 {strides = array<i32>} : memref<32x32xbf16, #tpu.memory_space<vmem>>, vector<32x32xbf16>,
    return
  }
  func.func @transform_0(%arg0: i32) -> (i32, i32) {
    %c0_i32 = arith.constant 0 : i32
    %c0_i32_0 = arith.constant 0 : i32
    return %arg0, %c0_i32 : i32, i32
  }
  func.func @transform_1(%arg0: i32) -> (i32, i32) {
    %c0_i32 = arith.constant 0 : i32
    %c0_i32_0 = arith.constant 0 : i32
    %c0_i32_1 = arith.constant 0 : i32
    return %c0_i32, %c0_i32_0 : i32, i32
  }
  func.func @transform_2(%arg0: i32) -> (i32, i32) {
    %c0_i32 = arith.constant 0 : i32
    %c0_i32_0 = arith.constant 0 : i32
    %c0_i32_1 = arith.constant 0 : i32
    return %c0_i32, %c0_i32_0 : i32, i32
  }
  func.func @transform_3(%arg0: i32) -> (i32, i32) {
    %c0_i32 = arith.constant 0 : i32
    %c0_i32_0 = arith.constant 0 : i32
    return %arg0, %c0_i32 : i32, i32
  }
  func.func @transform_4(%arg0: i32) -> (i32, i32) {
    %c0_i32 = arith.constant 0 : i32
    %c0_i32_0 = arith.constant 0 : i32
    return %arg0, %c0_i32 : i32, i32
  }
}

module attributes {stable_mosaic.version = 11 : i64} {
  func.func @_ln_mlp_residual_kernel(%arg0: i32, %arg1: memref<32x32xbf16, #tpu.memory_space<vmem>>, %arg2: memref<1x32xf32, #tpu.memory_space<vmem>>, %arg3: memref<1x32xf32, #tpu.memory_space<vmem>>, %arg4: memref<32x64xbf16, #tpu.memory_space<vmem>>, %arg5: memref<1x64xf32, #tpu.memory_space<vmem>>, %arg6: memref<64x32xbf16, #tpu.memory_space<vmem>>, %arg7: memref<1x32xf32, #tpu.memory_space<vmem>>, %arg8: memref<32x32xbf16, #tpu.memory_space<vmem>>) attributes {dimension_semantics = [#tpu.dimension_semantics<parallel>], iteration_bounds = array<i64: 1>, scalar_prefetch = 0 : i64, scratch_operands = 0 : i64, tpu.core_type = #tpu.core_type<tc>, window_params = [{transform_indices = @transform_0, window_bounds = array<i64: 32, 32>}, {pipeline_mode = #tpu.pipeline_mode<synchronous>, transform_indices = @transform_1, window_bounds = array<i64: 1, 32>}, {pipeline_mode = #tpu.pipeline_mode<synchronous>, transform_indices = @transform_2, window_bounds = array<i64: 1, 32>}, {pipeline_mode = #tpu.pipeline_mode<synchronous>, transform_indices = @transform_3, window_bounds = array<i64: 32, 64>}, {pipeline_mode = #tpu.pipeline_mode<synchronous>, transform_indices = @transform_4, window_bounds = array<i64: 1, 64>}, {pipeline_mode = #tpu.pipeline_mode<synchronous>, transform_indices = @transform_5, window_bounds = array<i64: 64, 32>}, {pipeline_mode = #tpu.pipeline_mode<synchronous>, transform_indices = @transform_6, window_bounds = array<i64: 1, 32>}, {transform_indices = @transform_7, window_bounds = array<i64: 32, 32>}]} {
    %c0 = arith.constant 0 : index
    %c0_0 = arith.constant 0 : index
    %0 = vector.load %arg1[%c0, %c0_0] : memref<32x32xbf16, #tpu.memory_space<vmem>>, vector<32x32xbf16>
    %1 = arith.extf %0 : vector<32x32xbf16> to vector<32x32xf32>
    %cst = arith.constant dense<0.000000e+00> : vector<32xf32>
    %2 = vector.multi_reduction <add>, %1, %cst [1] : vector<32x32xf32> to vector<32xf32>
    %3 = vector.shape_cast %2 : vector<32xf32> to vector<32x1xf32>
    %cst_1 = arith.constant 3.200000e+01 : f32
    %4 = vector.broadcast %cst_1 : f32 to vector<32x1xf32>
    %5 = arith.divf %3, %4 : vector<32x1xf32>
    %6 = vector.broadcast %5 : vector<32x1xf32> to vector<32x32xf32>
    %7 = arith.subf %1, %6 : vector<32x32xf32>
    %8 = vector.broadcast %5 : vector<32x1xf32> to vector<32x32xf32>
    %9 = arith.subf %1, %8 : vector<32x32xf32>
    %10 = arith.mulf %7, %9 : vector<32x32xf32>
    %cst_2 = arith.constant dense<0.000000e+00> : vector<32xf32>
    %11 = vector.multi_reduction <add>, %10, %cst_2 [1] : vector<32x32xf32> to vector<32xf32>
    %12 = vector.shape_cast %11 : vector<32xf32> to vector<32x1xf32>
    %cst_3 = arith.constant 3.200000e+01 : f32
    %13 = vector.broadcast %cst_3 : f32 to vector<32x1xf32>
    %14 = arith.divf %12, %13 : vector<32x1xf32>
    %15 = vector.broadcast %5 : vector<32x1xf32> to vector<32x32xf32>
    %16 = arith.subf %1, %15 : vector<32x32xf32>
    %cst_4 = arith.constant 9.99999974E-6 : f32
    %17 = vector.broadcast %cst_4 : f32 to vector<32x1xf32>
    %18 = arith.addf %14, %17 : vector<32x1xf32>
    %19 = math.rsqrt %18 : vector<32x1xf32>
    %20 = vector.broadcast %19 : vector<32x1xf32> to vector<32x32xf32>
    %21 = arith.mulf %16, %20 : vector<32x32xf32>
    %c0_5 = arith.constant 0 : index
    %c0_6 = arith.constant 0 : index
    %22 = vector.load %arg2[%c0_5, %c0_6] : memref<1x32xf32, #tpu.memory_space<vmem>>, vector<1x32xf32>
    %23 = vector.broadcast %22 : vector<1x32xf32> to vector<32x32xf32>
    %24 = arith.mulf %21, %23 : vector<32x32xf32>
    %c0_7 = arith.constant 0 : index
    %c0_8 = arith.constant 0 : index
    %25 = vector.load %arg3[%c0_7, %c0_8] : memref<1x32xf32, #tpu.memory_space<vmem>>, vector<1x32xf32>
    %26 = vector.broadcast %25 : vector<1x32xf32> to vector<32x32xf32>
    %27 = arith.addf %24, %26 : vector<32x32xf32>
    %28 = arith.truncf %27 : vector<32x32xf32> to vector<32x32xbf16>
    %c0_9 = arith.constant 0 : index
    %c0_10 = arith.constant 0 : index
    %29 = vector.load %arg4[%c0_9, %c0_10] : memref<32x64xbf16, #tpu.memory_space<vmem>>, vector<32x64xbf16>
    %cst_11 = arith.constant dense<0.000000e+00> : vector<32x64xf32>
    %30 = tpu.matmul %28, %29, %cst_11 {dimension_numbers = #tpu.dot_dimension_numbers<[1], [0], [0], [1], [0, 0, 1, 1], [], []>} : vector<32x32xbf16>, vector<32x64xbf16>, vector<32x64xf32> -> vector<32x64xf32>
    %c0_12 = arith.constant 0 : index
    %c0_13 = arith.constant 0 : index
    %31 = vector.load %arg5[%c0_12, %c0_13] : memref<1x64xf32, #tpu.memory_space<vmem>>, vector<1x64xf32>
    %32 = vector.broadcast %31 : vector<1x64xf32> to vector<32x64xf32>
    %33 = arith.addf %30, %32 : vector<32x64xf32>
    %cst_14 = arith.constant 5.000000e-01 : f32
    %34 = vector.broadcast %cst_14 : f32 to vector<32x64xf32>
    %35 = arith.mulf %34, %33 : vector<32x64xf32>
    %cst_15 = arith.constant 4.471500e-02 : f32
    %36 = vector.broadcast %cst_15 : f32 to vector<32x64xf32>
    %37 = arith.mulf %36, %33 : vector<32x64xf32>
    %38 = arith.mulf %37, %33 : vector<32x64xf32>
    %39 = arith.mulf %38, %33 : vector<32x64xf32>
    %40 = arith.addf %33, %39 : vector<32x64xf32>
    %cst_16 = arith.constant 0.797884583 : f32
    %41 = vector.broadcast %cst_16 : f32 to vector<32x64xf32>
    %42 = arith.mulf %41, %40 : vector<32x64xf32>
    %43 = math.tanh %42 : vector<32x64xf32>
    %cst_17 = arith.constant 1.000000e+00 : f32
    %44 = vector.broadcast %cst_17 : f32 to vector<32x64xf32>
    %45 = arith.addf %44, %43 : vector<32x64xf32>
    %46 = arith.mulf %35, %45 : vector<32x64xf32>
    %47 = arith.truncf %46 : vector<32x64xf32> to vector<32x64xbf16>
    %c0_18 = arith.constant 0 : index
    %c0_19 = arith.constant 0 : index
    %48 = vector.load %arg6[%c0_18, %c0_19] : memref<64x32xbf16, #tpu.memory_space<vmem>>, vector<64x32xbf16>
    %cst_20 = arith.constant dense<0.000000e+00> : vector<32x32xf32>
    %49 = tpu.matmul %47, %48, %cst_20 {dimension_numbers = #tpu.dot_dimension_numbers<[1], [0], [0], [1], [0, 0, 1, 1], [], []>} : vector<32x64xbf16>, vector<64x32xbf16>, vector<32x32xf32> -> vector<32x32xf32>
    %c0_21 = arith.constant 0 : index
    %c0_22 = arith.constant 0 : index
    %50 = vector.load %arg7[%c0_21, %c0_22] : memref<1x32xf32, #tpu.memory_space<vmem>>, vector<1x32xf32>
    %51 = vector.broadcast %50 : vector<1x32xf32> to vector<32x32xf32>
    %52 = arith.addf %49, %51 : vector<32x32xf32>
    %53 = arith.addf %1, %52 : vector<32x32xf32>
    %54 = arith.truncf %53 : vector<32x32xf32> to vector<32x32xbf16>
    %c0_23 = arith.constant 0 : index
    %c0_24 = arith.constant 0 : index
    %55 = vector.load %arg8[%c0_23, %c0_24] : memref<32x32xbf16, #tpu.memory_space<vmem>>, vector<32x32xbf16>
    tpu.vector_store %arg8[%c0_23, %c0_24], %54 {strides = array<i32>} : memref<32x32xbf16, #tpu.memory_space<vmem>>, vector<32x32xbf16>,
    return
  }
  func.func @transform_0(%arg0: i32) -> (i32, i32) {
    %c0_i32 = arith.constant 0 : i32
    %c0_i32_0 = arith.constant 0 : i32
    return %arg0, %c0_i32 : i32, i32
  }
  func.func @transform_1(%arg0: i32) -> (i32, i32) {
    %c0_i32 = arith.constant 0 : i32
    %c0_i32_0 = arith.constant 0 : i32
    %c0_i32_1 = arith.constant 0 : i32
    return %c0_i32, %c0_i32_0 : i32, i32
  }
  func.func @transform_2(%arg0: i32) -> (i32, i32) {
    %c0_i32 = arith.constant 0 : i32
    %c0_i32_0 = arith.constant 0 : i32
    %c0_i32_1 = arith.constant 0 : i32
    return %c0_i32, %c0_i32_0 : i32, i32
  }
  func.func @transform_3(%arg0: i32) -> (i32, i32) {
    %c0_i32 = arith.constant 0 : i32
    %c0_i32_0 = arith.constant 0 : i32
    %c0_i32_1 = arith.constant 0 : i32
    return %c0_i32, %c0_i32_0 : i32, i32
  }
  func.func @transform_4(%arg0: i32) -> (i32, i32) {
    %c0_i32 = arith.constant 0 : i32
    %c0_i32_0 = arith.constant 0 : i32
    %c0_i32_1 = arith.constant 0 : i32
    return %c0_i32, %c0_i32_0 : i32, i32
  }
  func.func @transform_5(%arg0: i32) -> (i32, i32) {
    %c0_i32 = arith.constant 0 : i32
    %c0_i32_0 = arith.constant 0 : i32
    %c0_i32_1 = arith.constant 0 : i32
    return %c0_i32, %c0_i32_0 : i32, i32
  }
  func.func @transform_6(%arg0: i32) -> (i32, i32) {
    %c0_i32 = arith.constant 0 : i32
    %c0_i32_0 = arith.constant 0 : i32
    %c0_i32_1 = arith.constant 0 : i32
    return %c0_i32, %c0_i32_0 : i32, i32
  }
  func.func @transform_7(%arg0: i32) -> (i32, i32) {
    %c0_i32 = arith.constant 0 : i32
    %c0_i32_0 = arith.constant 0 : i32
    return %arg0, %c0_i32 : i32, i32
  }
}

module attributes {stable_mosaic.version = 11 : i64} {
  func.func @_linear_kernel(%arg0: i32, %arg1: memref<8x128xbf16, #tpu.memory_space<vmem>>, %arg2: memref<128x64xbf16, #tpu.memory_space<vmem>>, %arg3: memref<1x64xf32, #tpu.memory_space<vmem>>, %arg4: memref<8x64xbf16, #tpu.memory_space<vmem>>) attributes {dimension_semantics = [#tpu.dimension_semantics<parallel>], iteration_bounds = array<i64: 1>, scalar_prefetch = 0 : i64, scratch_operands = 0 : i64, tpu.core_type = #tpu.core_type<tc>, window_params = [{transform_indices = @transform_0, window_bounds = array<i64: 8, 128>}, {pipeline_mode = #tpu.pipeline_mode<synchronous>, transform_indices = @transform_1, window_bounds = array<i64: 128, 64>}, {pipeline_mode = #tpu.pipeline_mode<synchronous>, transform_indices = @transform_2, window_bounds = array<i64: 1, 64>}, {transform_indices = @transform_3, window_bounds = array<i64: 8, 64>}]} {
    %c0 = arith.constant 0 : index
    %c0_0 = arith.constant 0 : index
    %0 = vector.load %arg1[%c0, %c0_0] : memref<8x128xbf16, #tpu.memory_space<vmem>>, vector<8x128xbf16>
    %c0_1 = arith.constant 0 : index
    %c0_2 = arith.constant 0 : index
    %1 = vector.load %arg2[%c0_1, %c0_2] : memref<128x64xbf16, #tpu.memory_space<vmem>>, vector<128x64xbf16>
    %cst = arith.constant dense<0.000000e+00> : vector<8x64xf32>
    %2 = tpu.matmul %0, %1, %cst {dimension_numbers = #tpu.dot_dimension_numbers<[1], [0], [0], [1], [0, 0, 1, 1], [], []>} : vector<8x128xbf16>, vector<128x64xbf16>, vector<8x64xf32> -> vector<8x64xf32>
    %c0_3 = arith.constant 0 : index
    %c0_4 = arith.constant 0 : index
    %3 = vector.load %arg3[%c0_3, %c0_4] : memref<1x64xf32, #tpu.memory_space<vmem>>, vector<1x64xf32>
    %4 = vector.broadcast %3 : vector<1x64xf32> to vector<8x64xf32>
    %5 = arith.addf %2, %4 : vector<8x64xf32>
    %6 = arith.truncf %5 : vector<8x64xf32> to vector<8x64xbf16>
    %c0_5 = arith.constant 0 : index
    %c0_6 = arith.constant 0 : index
    %7 = vector.load %arg4[%c0_5, %c0_6] : memref<8x64xbf16, #tpu.memory_space<vmem>>, vector<8x64xbf16>
    tpu.vector_store %arg4[%c0_5, %c0_6], %6 {strides = array<i32>} : memref<8x64xbf16, #tpu.memory_space<vmem>>, vector<8x64xbf16>,
    return
  }
  func.func @transform_0(%arg0: i32) -> (i32, i32) {
    %c0_i32 = arith.constant 0 : i32
    %c0_i32_0 = arith.constant 0 : i32
    return %arg0, %c0_i32 : i32, i32
  }
  func.func @transform_1(%arg0: i32) -> (i32, i32) {
    %c0_i32 = arith.constant 0 : i32
    %c0_i32_0 = arith.constant 0 : i32
    %c0_i32_1 = arith.constant 0 : i32
    return %c0_i32, %c0_i32_0 : i32, i32
  }
  func.func @transform_2(%arg0: i32) -> (i32, i32) {
    %c0_i32 = arith.constant 0 : i32
    %c0_i32_0 = arith.constant 0 : i32
    %c0_i32_1 = arith.constant 0 : i32
    return %c0_i32, %c0_i32_0 : i32, i32
  }
  func.func @transform_3(%arg0: i32) -> (i32, i32) {
    %c0_i32 = arith.constant 0 : i32
    %c0_i32_0 = arith.constant 0 : i32
    return %arg0, %c0_i32 : i32, i32
  }
}

module attributes {stable_mosaic.version = 11 : i64} {
  func.func @_ln_qkv_kernel(%arg0: i32, %arg1: memref<8x64xbf16, #tpu.memory_space<vmem>>, %arg2: memref<1x64xf32, #tpu.memory_space<vmem>>, %arg3: memref<1x64xf32, #tpu.memory_space<vmem>>, %arg4: memref<64x64xbf16, #tpu.memory_space<vmem>>, %arg5: memref<1x64xf32, #tpu.memory_space<vmem>>, %arg6: memref<64x64xbf16, #tpu.memory_space<vmem>>, %arg7: memref<1x64xf32, #tpu.memory_space<vmem>>, %arg8: memref<64x64xbf16, #tpu.memory_space<vmem>>, %arg9: memref<1x64xf32, #tpu.memory_space<vmem>>, %arg10: memref<8x64xbf16, #tpu.memory_space<vmem>>, %arg11: memref<8x64xbf16, #tpu.memory_space<vmem>>, %arg12: memref<8x64xbf16, #tpu.memory_space<vmem>>) attributes {dimension_semantics = [#tpu.dimension_semantics<parallel>], iteration_bounds = array<i64: 1>, scalar_prefetch = 0 : i64, scratch_operands = 0 : i64, tpu.core_type = #tpu.core_type<tc>, window_params = [{transform_indices = @transform_0, window_bounds = array<i64: 8, 64>}, {pipeline_mode = #tpu.pipeline_mode<synchronous>, transform_indices = @transform_1, window_bounds = array<i64: 1, 64>}, {pipeline_mode = #tpu.pipeline_mode<synchronous>, transform_indices = @transform_2, window_bounds = array<i64: 1, 64>}, {pipeline_mode = #tpu.pipeline_mode<synchronous>, transform_indices = @transform_3, window_bounds = array<i64: 64, 64>}, {pipeline_mode = #tpu.pipeline_mode<synchronous>, transform_indices = @transform_4, window_bounds = array<i64: 1, 64>}, {pipeline_mode = #tpu.pipeline_mode<synchronous>, transform_indices = @transform_5, window_bounds = array<i64: 64, 64>}, {pipeline_mode = #tpu.pipeline_mode<synchronous>, transform_indices = @transform_6, window_bounds = array<i64: 1, 64>}, {pipeline_mode = #tpu.pipeline_mode<synchronous>, transform_indices = @transform_7, window_bounds = array<i64: 64, 64>}, {pipeline_mode = #tpu.pipeline_mode<synchronous>, transform_indices = @transform_8, window_bounds = array<i64: 1, 64>}, {transform_indices = @transform_9, window_bounds = array<i64: 8, 64>}, {transform_indices = @transform_10, window_bounds = array<i64: 8, 64>}, {transform_indices = @transform_11, window_bounds = array<i64: 8, 64>}]} {
    %c0 = arith.constant 0 : index
    %c0_0 = arith.constant 0 : index
    %0 = vector.load %arg1[%c0, %c0_0] : memref<8x64xbf16, #tpu.memory_space<vmem>>, vector<8x64xbf16>
    %1 = arith.extf %0 : vector<8x64xbf16> to vector<8x64xf32>
    %cst = arith.constant dense<0.000000e+00> : vector<8xf32>
    %2 = vector.multi_reduction <add>, %1, %cst [1] : vector<8x64xf32> to vector<8xf32>
    %3 = vector.shape_cast %2 : vector<8xf32> to vector<8x1xf32>
    %cst_1 = arith.constant 6.400000e+01 : f32
    %4 = vector.broadcast %cst_1 : f32 to vector<8x1xf32>
    %5 = arith.divf %3, %4 : vector<8x1xf32>
    %6 = vector.broadcast %5 : vector<8x1xf32> to vector<8x64xf32>
    %7 = arith.subf %1, %6 : vector<8x64xf32>
    %8 = vector.broadcast %5 : vector<8x1xf32> to vector<8x64xf32>
    %9 = arith.subf %1, %8 : vector<8x64xf32>
    %10 = arith.mulf %7, %9 : vector<8x64xf32>
    %cst_2 = arith.constant dense<0.000000e+00> : vector<8xf32>
    %11 = vector.multi_reduction <add>, %10, %cst_2 [1] : vector<8x64xf32> to vector<8xf32>
    %12 = vector.shape_cast %11 : vector<8xf32> to vector<8x1xf32>
    %cst_3 = arith.constant 6.400000e+01 : f32
    %13 = vector.broadcast %cst_3 : f32 to vector<8x1xf32>
    %14 = arith.divf %12, %13 : vector<8x1xf32>
    %15 = vector.broadcast %5 : vector<8x1xf32> to vector<8x64xf32>
    %16 = arith.subf %1, %15 : vector<8x64xf32>
    %cst_4 = arith.constant 9.99999974E-6 : f32
    %17 = vector.broadcast %cst_4 : f32 to vector<8x1xf32>
    %18 = arith.addf %14, %17 : vector<8x1xf32>
    %19 = math.rsqrt %18 : vector<8x1xf32>
    %20 = vector.broadcast %19 : vector<8x1xf32> to vector<8x64xf32>
    %21 = arith.mulf %16, %20 : vector<8x64xf32>
    %c0_5 = arith.constant 0 : index
    %c0_6 = arith.constant 0 : index
    %22 = vector.load %arg2[%c0_5, %c0_6] : memref<1x64xf32, #tpu.memory_space<vmem>>, vector<1x64xf32>
    %23 = vector.broadcast %22 : vector<1x64xf32> to vector<8x64xf32>
    %24 = arith.mulf %21, %23 : vector<8x64xf32>
    %c0_7 = arith.constant 0 : index
    %c0_8 = arith.constant 0 : index
    %25 = vector.load %arg3[%c0_7, %c0_8] : memref<1x64xf32, #tpu.memory_space<vmem>>, vector<1x64xf32>
    %26 = vector.broadcast %25 : vector<1x64xf32> to vector<8x64xf32>
    %27 = arith.addf %24, %26 : vector<8x64xf32>
    %28 = arith.truncf %27 : vector<8x64xf32> to vector<8x64xbf16>
    %c0_9 = arith.constant 0 : index
    %c0_10 = arith.constant 0 : index
    %29 = vector.load %arg4[%c0_9, %c0_10] : memref<64x64xbf16, #tpu.memory_space<vmem>>, vector<64x64xbf16>
    %cst_11 = arith.constant dense<0.000000e+00> : vector<8x64xf32>
    %30 = tpu.matmul %28, %29, %cst_11 {dimension_numbers = #tpu.dot_dimension_numbers<[1], [0], [0], [1], [0, 0, 1, 1], [], []>} : vector<8x64xbf16>, vector<64x64xbf16>, vector<8x64xf32> -> vector<8x64xf32>
    %c0_12 = arith.constant 0 : index
    %c0_13 = arith.constant 0 : index
    %31 = vector.load %arg5[%c0_12, %c0_13] : memref<1x64xf32, #tpu.memory_space<vmem>>, vector<1x64xf32>
    %32 = vector.broadcast %31 : vector<1x64xf32> to vector<8x64xf32>
    %33 = arith.addf %30, %32 : vector<8x64xf32>
    %c0_14 = arith.constant 0 : index
    %c0_15 = arith.constant 0 : index
    %34 = vector.load %arg6[%c0_14, %c0_15] : memref<64x64xbf16, #tpu.memory_space<vmem>>, vector<64x64xbf16>
    %cst_16 = arith.constant dense<0.000000e+00> : vector<8x64xf32>
    %35 = tpu.matmul %28, %34, %cst_16 {dimension_numbers = #tpu.dot_dimension_numbers<[1], [0], [0], [1], [0, 0, 1, 1], [], []>} : vector<8x64xbf16>, vector<64x64xbf16>, vector<8x64xf32> -> vector<8x64xf32>
    %c0_17 = arith.constant 0 : index
    %c0_18 = arith.constant 0 : index
    %36 = vector.load %arg7[%c0_17, %c0_18] : memref<1x64xf32, #tpu.memory_space<vmem>>, vector<1x64xf32>
    %37 = vector.broadcast %36 : vector<1x64xf32> to vector<8x64xf32>
    %38 = arith.addf %35, %37 : vector<8x64xf32>
    %c0_19 = arith.constant 0 : index
    %c0_20 = arith.constant 0 : index
    %39 = vector.load %arg8[%c0_19, %c0_20] : memref<64x64xbf16, #tpu.memory_space<vmem>>, vector<64x64xbf16>
    %cst_21 = arith.constant dense<0.000000e+00> : vector<8x64xf32>
    %40 = tpu.matmul %28, %39, %cst_21 {dimension_numbers = #tpu.dot_dimension_numbers<[1], [0], [0], [1], [0, 0, 1, 1], [], []>} : vector<8x64xbf16>, vector<64x64xbf16>, vector<8x64xf32> -> vector<8x64xf32>
    %c0_22 = arith.constant 0 : index
    %c0_23 = arith.constant 0 : index
    %41 = vector.load %arg9[%c0_22, %c0_23] : memref<1x64xf32, #tpu.memory_space<vmem>>, vector<1x64xf32>
    %42 = vector.broadcast %41 : vector<1x64xf32> to vector<8x64xf32>
    %43 = arith.addf %40, %42 : vector<8x64xf32>
    %44 = arith.truncf %33 : vector<8x64xf32> to vector<8x64xbf16>
    %c0_24 = arith.constant 0 : index
    %c0_25 = arith.constant 0 : index
    %45 = vector.load %arg10[%c0_24, %c0_25] : memref<8x64xbf16, #tpu.memory_space<vmem>>, vector<8x64xbf16>
    tpu.vector_store %arg10[%c0_24, %c0_25], %44 {strides = array<i32>} : memref<8x64xbf16, #tpu.memory_space<vmem>>, vector<8x64xbf16>,
    %46 = arith.truncf %38 : vector<8x64xf32> to vector<8x64xbf16>
    %c0_26 = arith.constant 0 : index
    %c0_27 = arith.constant 0 : index
    %47 = vector.load %arg11[%c0_26, %c0_27] : memref<8x64xbf16, #tpu.memory_space<vmem>>, vector<8x64xbf16>
    tpu.vector_store %arg11[%c0_26, %c0_27], %46 {strides = array<i32>} : memref<8x64xbf16, #tpu.memory_space<vmem>>, vector<8x64xbf16>,
    %48 = arith.truncf %43 : vector<8x64xf32> to vector<8x64xbf16>
    %c0_28 = arith.constant 0 : index
    %c0_29 = arith.constant 0 : index
    %49 = vector.load %arg12[%c0_28, %c0_29] : memref<8x64xbf16, #tpu.memory_space<vmem>>, vector<8x64xbf16>
    tpu.vector_store %arg12[%c0_28, %c0_29], %48 {strides = array<i32>} : memref<8x64xbf16, #tpu.memory_space<vmem>>, vector<8x64xbf16>,
    return
  }
  func.func @transform_0(%arg0: i32) -> (i32, i32) {
    %c0_i32 = arith.constant 0 : i32
    %c0_i32_0 = arith.constant 0 : i32
    return %arg0, %c0_i32 : i32, i32
  }
  func.func @transform_1(%arg0: i32) -> (i32, i32) {
    %c0_i32 = arith.constant 0 : i32
    %c0_i32_0 = arith.constant 0 : i32
    %c0_i32_1 = arith.constant 0 : i32
    return %c0_i32, %c0_i32_0 : i32, i32
  }
  func.func @transform_2(%arg0: i32) -> (i32, i32) {
    %c0_i32 = arith.constant 0 : i32
    %c0_i32_0 = arith.constant 0 : i32
    %c0_i32_1 = arith.constant 0 : i32
    return %c0_i32, %c0_i32_0 : i32, i32
  }
  func.func @transform_3(%arg0: i32) -> (i32, i32) {
    %c0_i32 = arith.constant 0 : i32
    %c0_i32_0 = arith.constant 0 : i32
    %c0_i32_1 = arith.constant 0 : i32
    return %c0_i32, %c0_i32_0 : i32, i32
  }
  func.func @transform_4(%arg0: i32) -> (i32, i32) {
    %c0_i32 = arith.constant 0 : i32
    %c0_i32_0 = arith.constant 0 : i32
    %c0_i32_1 = arith.constant 0 : i32
    return %c0_i32, %c0_i32_0 : i32, i32
  }
  func.func @transform_5(%arg0: i32) -> (i32, i32) {
    %c0_i32 = arith.constant 0 : i32
    %c0_i32_0 = arith.constant 0 : i32
    %c0_i32_1 = arith.constant 0 : i32
    return %c0_i32, %c0_i32_0 : i32, i32
  }
  func.func @transform_6(%arg0: i32) -> (i32, i32) {
    %c0_i32 = arith.constant 0 : i32
    %c0_i32_0 = arith.constant 0 : i32
    %c0_i32_1 = arith.constant 0 : i32
    return %c0_i32, %c0_i32_0 : i32, i32
  }
  func.func @transform_7(%arg0: i32) -> (i32, i32) {
    %c0_i32 = arith.constant 0 : i32
    %c0_i32_0 = arith.constant 0 : i32
    %c0_i32_1 = arith.constant 0 : i32
    return %c0_i32, %c0_i32_0 : i32, i32
  }
  func.func @transform_8(%arg0: i32) -> (i32, i32) {
    %c0_i32 = arith.constant 0 : i32
    %c0_i32_0 = arith.constant 0 : i32
    %c0_i32_1 = arith.constant 0 : i32
    return %c0_i32, %c0_i32_0 : i32, i32
  }
  func.func @transform_9(%arg0: i32) -> (i32, i32) {
    %c0_i32 = arith.constant 0 : i32
    %c0_i32_0 = arith.constant 0 : i32
    return %arg0, %c0_i32 : i32, i32
  }
  func.func @transform_10(%arg0: i32) -> (i32, i32) {
    %c0_i32 = arith.constant 0 : i32
    %c0_i32_0 = arith.constant 0 : i32
    return %arg0, %c0_i32 : i32, i32
  }
  func.func @transform_11(%arg0: i32) -> (i32, i32) {
    %c0_i32 = arith.constant 0 : i32
    %c0_i32_0 = arith.constant 0 : i32
    return %arg0, %c0_i32 : i32, i32
  }
}

module attributes {stable_mosaic.version = 11 : i64} {
  func.func @_flash_attn_kernel(%arg0: i32, %arg1: i32, %arg2: i32, %arg3: memref<1x4x64xbf16, #tpu.memory_space<vmem>>, %arg4: memref<1x4x64xbf16, #tpu.memory_space<vmem>>, %arg5: memref<1x4x64xbf16, #tpu.memory_space<vmem>>, %arg6: memref<1x4x64xbf16, #tpu.memory_space<vmem>>, %arg7: memref<4x4xf32, #tpu.memory_space<vmem>>, %arg8: memref<4x4xf32, #tpu.memory_space<vmem>>, %arg9: memref<4x64xf32, #tpu.memory_space<vmem>>) attributes {dimension_semantics = [#tpu.dimension_semantics<parallel>, #tpu.dimension_semantics<parallel>, #tpu.dimension_semantics<arbitrary>], iteration_bounds = array<i64: 2, 1, 1>, scalar_prefetch = 0 : i64, scratch_operands = 3 : i64, tpu.core_type = #tpu.core_type<tc>, window_params = [{transform_indices = @transform_0, window_bounds = array<i64: 1, 4, 64>}, {transform_indices = @transform_1, window_bounds = array<i64: 1, 4, 64>}, {transform_indices = @transform_2, window_bounds = array<i64: 1, 4, 64>}, {transform_indices = @transform_3, window_bounds = array<i64: 1, 4, 64>}]} {
    %c0_i32 = arith.constant 0 : i32
    %0 = arith.cmpi eq, %arg2, %c0_i32 : i32
    %1 = arith.extui %0 : i1 to i32
    %c0_i32_0 = arith.constant 0 : i32
    %2 = arith.cmpi ne, %1, %c0_i32_0 : i32
    scf.if %2 {
      %cst_68 = arith.constant 0xFF800000 : f32
      %120 = vector.broadcast %cst_68 : f32 to vector<4x4xf32>
      %c0_69 = arith.constant 0 : index
      %c0_70 = arith.constant 0 : index
      %121 = vector.load %arg7[%c0_69, %c0_70] : memref<4x4xf32, #tpu.memory_space<vmem>>, vector<4x4xf32>
      tpu.vector_store %arg7[%c0_69, %c0_70], %120 {strides = array<i32>} : memref<4x4xf32, #tpu.memory_space<vmem>>, vector<4x4xf32>,
      %cst_71 = arith.constant 0.000000e+00 : f32
      %122 = vector.broadcast %cst_71 : f32 to vector<4x4xf32>
      %c0_72 = arith.constant 0 : index
      %c0_73 = arith.constant 0 : index
      %123 = vector.load %arg8[%c0_72, %c0_73] : memref<4x4xf32, #tpu.memory_space<vmem>>, vector<4x4xf32>
      tpu.vector_store %arg8[%c0_72, %c0_73], %122 {strides = array<i32>} : memref<4x4xf32, #tpu.memory_space<vmem>>, vector<4x4xf32>,
      %cst_74 = arith.constant 0.000000e+00 : f32
      %124 = vector.broadcast %cst_74 : f32 to vector<4x64xf32>
      %c0_75 = arith.constant 0 : index
      %c0_76 = arith.constant 0 : index
      %125 = vector.load %arg9[%c0_75, %c0_76] : memref<4x64xf32, #tpu.memory_space<vmem>>, vector<4x64xf32>
      tpu.vector_store %arg9[%c0_75, %c0_76], %124 {strides = array<i32>} : memref<4x64xf32, #tpu.memory_space<vmem>>, vector<4x64xf32>,
    } else {
    }
    %c0 = arith.constant 0 : index
    %c0_1 = arith.constant 0 : index
    %c0_2 = arith.constant 0 : index
    %3 = vector.load %arg3[%c0, %c0_1, %c0_2] : memref<1x4x64xbf16, #tpu.memory_space<vmem>>, vector<1x4x64xbf16>
    %4 = vector.shape_cast %3 : vector<1x4x64xbf16> to vector<4x64xbf16>
    %c0_3 = arith.constant 0 : index
    %c0_4 = arith.constant 0 : index
    %c0_5 = arith.constant 0 : index
    %5 = vector.load %arg4[%c0_3, %c0_4, %c0_5] : memref<1x4x64xbf16, #tpu.memory_space<vmem>>, vector<1x4x64xbf16>
    %6 = vector.shape_cast %5 : vector<1x4x64xbf16> to vector<4x64xbf16>
    %c0_6 = arith.constant 0 : index
    %c0_7 = arith.constant 0 : index
    %c0_8 = arith.constant 0 : index
    %7 = vector.load %arg5[%c0_6, %c0_7, %c0_8] : memref<1x4x64xbf16, #tpu.memory_space<vmem>>, vector<1x4x64xbf16>
    %8 = vector.shape_cast %7 : vector<1x4x64xbf16> to vector<4x64xbf16>
    %9 = vector.extract_strided_slice %4 {offsets = [0, 0], sizes = [4, 16], strides = [1, 1]} : vector<4x64xbf16> to vector<4x16xbf16>
    %10 = vector.extract_strided_slice %6 {offsets = [0, 0], sizes = [4, 16], strides = [1, 1]} : vector<4x64xbf16> to vector<4x16xbf16>
    %cst = arith.constant dense<0.000000e+00> : vector<4x4xf32>
    %11 = tpu.matmul %9, %10, %cst {dimension_numbers = #tpu.dot_dimension_numbers<[1], [1], [0], [0], [0, 0, 1, 0], [], []>} : vector<4x16xbf16>, vector<4x16xbf16>, vector<4x4xf32> -> vector<4x4xf32>
    %c0_9 = arith.constant 0 : index
    %c0_10 = arith.constant 0 : index
    %12 = vector.load %arg7[%c0_9, %c0_10] : memref<4x4xf32, #tpu.memory_space<vmem>>, vector<4x1xf32>
    %cst_11 = arith.constant dense<0xFF800000> : vector<4xf32>
    %13 = vector.multi_reduction <maximumf>, %11, %cst_11 [1] : vector<4x4xf32> to vector<4xf32>
    %14 = vector.shape_cast %13 : vector<4xf32> to vector<4x1xf32>
    %15 = arith.maximumf %12, %14 : vector<4x1xf32>
    %16 = arith.subf %12, %15 : vector<4x1xf32>
    %17 = math.exp %16 : vector<4x1xf32>
    %18 = vector.broadcast %15 : vector<4x1xf32> to vector<4x4xf32>
    %19 = arith.subf %11, %18 : vector<4x4xf32>
    %20 = math.exp %19 : vector<4x4xf32>
    %c0_12 = arith.constant 0 : index
    %c0_13 = arith.constant 0 : index
    %21 = vector.load %arg8[%c0_12, %c0_13] : memref<4x4xf32, #tpu.memory_space<vmem>>, vector<4x1xf32>
    %22 = arith.mulf %17, %21 : vector<4x1xf32>
    %cst_14 = arith.constant dense<0.000000e+00> : vector<4xf32>
    %23 = vector.multi_reduction <add>, %20, %cst_14 [1] : vector<4x4xf32> to vector<4xf32>
    %24 = vector.shape_cast %23 : vector<4xf32> to vector<4x1xf32>
    %25 = arith.addf %22, %24 : vector<4x1xf32>
    %c0_15 = arith.constant 0 : index
    %c0_16 = arith.constant 0 : index
    %26 = vector.load %arg8[%c0_15, %c0_16] : memref<4x4xf32, #tpu.memory_space<vmem>>, vector<4x1xf32>
    tpu.vector_store %arg8[%c0_15, %c0_16], %25 {strides = array<i32>} : memref<4x4xf32, #tpu.memory_space<vmem>>, vector<4x1xf32>,
    %27 = arith.truncf %20 : vector<4x4xf32> to vector<4x4xbf16>
    %28 = vector.extract_strided_slice %8 {offsets = [0, 0], sizes = [4, 16], strides = [1, 1]} : vector<4x64xbf16> to vector<4x16xbf16>
    %cst_17 = arith.constant dense<0.000000e+00> : vector<4x16xf32>
    %29 = tpu.matmul %27, %28, %cst_17 {dimension_numbers = #tpu.dot_dimension_numbers<[1], [0], [0], [1], [0, 0, 1, 1], [], []>} : vector<4x4xbf16>, vector<4x16xbf16>, vector<4x16xf32> -> vector<4x16xf32>
    %c0_18 = arith.constant 0 : index
    %c0_19 = arith.constant 0 : index
    %30 = vector.load %arg9[%c0_18, %c0_19] : memref<4x64xf32, #tpu.memory_space<vmem>>, vector<4x16xf32>
    %31 = vector.broadcast %17 : vector<4x1xf32> to vector<4x16xf32>
    %32 = arith.mulf %31, %30 : vector<4x16xf32>
    %33 = arith.addf %32, %29 : vector<4x16xf32>
    %c0_20 = arith.constant 0 : index
    %c0_21 = arith.constant 0 : index
    %34 = vector.load %arg9[%c0_20, %c0_21] : memref<4x64xf32, #tpu.memory_space<vmem>>, vector<4x16xf32>
    tpu.vector_store %arg9[%c0_20, %c0_21], %33 {strides = array<i32>} : memref<4x64xf32, #tpu.memory_space<vmem>>, vector<4x16xf32>,
    %c0_22 = arith.constant 0 : index
    %c0_23 = arith.constant 0 : index
    %35 = vector.load %arg7[%c0_22, %c0_23] : memref<4x4xf32, #tpu.memory_space<vmem>>, vector<4x1xf32>
    tpu.vector_store %arg7[%c0_22, %c0_23], %15 {strides = array<i32>} : memref<4x4xf32, #tpu.memory_space<vmem>>, vector<4x1xf32>,
    %36 = vector.extract_strided_slice %4 {offsets = [0, 16], sizes = [4, 16], strides = [1, 1]} : vector<4x64xbf16> to vector<4x16xbf16>
    %37 = vector.extract_strided_slice %6 {offsets = [0, 16], sizes = [4, 16], strides = [1, 1]} : vector<4x64xbf16> to vector<4x16xbf16>
    %cst_24 = arith.constant dense<0.000000e+00> : vector<4x4xf32>
    %38 = tpu.matmul %36, %37, %cst_24 {dimension_numbers = #tpu.dot_dimension_numbers<[1], [1], [0], [0], [0, 0, 1, 0], [], []>} : vector<4x16xbf16>, vector<4x16xbf16>, vector<4x4xf32> -> vector<4x4xf32>
    %c0_25 = arith.constant 0 : index
    %c1 = arith.constant 1 : index
    %39 = vector.load %arg7[%c0_25, %c1] : memref<4x4xf32, #tpu.memory_space<vmem>>, vector<4x1xf32>
    %cst_26 = arith.constant dense<0xFF800000> : vector<4xf32>
    %40 = vector.multi_reduction <maximumf>, %38, %cst_26 [1] : vector<4x4xf32> to vector<4xf32>
    %41 = vector.shape_cast %40 : vector<4xf32> to vector<4x1xf32>
    %42 = arith.maximumf %39, %41 : vector<4x1xf32>
    %43 = arith.subf %39, %42 : vector<4x1xf32>
    %44 = math.exp %43 : vector<4x1xf32>
    %45 = vector.broadcast %42 : vector<4x1xf32> to vector<4x4xf32>
    %46 = arith.subf %38, %45 : vector<4x4xf32>
    %47 = math.exp %46 : vector<4x4xf32>
    %c0_27 = arith.constant 0 : index
    %c1_28 = arith.constant 1 : index
    %48 = vector.load %arg8[%c0_27, %c1_28] : memref<4x4xf32, #tpu.memory_space<vmem>>, vector<4x1xf32>
    %49 = arith.mulf %44, %48 : vector<4x1xf32>
    %cst_29 = arith.constant dense<0.000000e+00> : vector<4xf32>
    %50 = vector.multi_reduction <add>, %47, %cst_29 [1] : vector<4x4xf32> to vector<4xf32>
    %51 = vector.shape_cast %50 : vector<4xf32> to vector<4x1xf32>
    %52 = arith.addf %49, %51 : vector<4x1xf32>
    %c0_30 = arith.constant 0 : index
    %c1_31 = arith.constant 1 : index
    %53 = vector.load %arg8[%c0_30, %c1_31] : memref<4x4xf32, #tpu.memory_space<vmem>>, vector<4x1xf32>
    tpu.vector_store %arg8[%c0_30, %c1_31], %52 {strides = array<i32>} : memref<4x4xf32, #tpu.memory_space<vmem>>, vector<4x1xf32>,
    %54 = arith.truncf %47 : vector<4x4xf32> to vector<4x4xbf16>
    %55 = vector.extract_strided_slice %8 {offsets = [0, 16], sizes = [4, 16], strides = [1, 1]} : vector<4x64xbf16> to vector<4x16xbf16>
    %cst_32 = arith.constant dense<0.000000e+00> : vector<4x16xf32>
    %56 = tpu.matmul %54, %55, %cst_32 {dimension_numbers = #tpu.dot_dimension_numbers<[1], [0], [0], [1], [0, 0, 1, 1], [], []>} : vector<4x4xbf16>, vector<4x16xbf16>, vector<4x16xf32> -> vector<4x16xf32>
    %c0_33 = arith.constant 0 : index
    %c16 = arith.constant 16 : index
    %57 = vector.load %arg9[%c0_33, %c16] : memref<4x64xf32, #tpu.memory_space<vmem>>, vector<4x16xf32>
    %58 = vector.broadcast %44 : vector<4x1xf32> to vector<4x16xf32>
    %59 = arith.mulf %58, %57 : vector<4x16xf32>
    %60 = arith.addf %59, %56 : vector<4x16xf32>
    %c0_34 = arith.constant 0 : index
    %c16_35 = arith.constant 16 : index
    %61 = vector.load %arg9[%c0_34, %c16_35] : memref<4x64xf32, #tpu.memory_space<vmem>>, vector<4x16xf32>
    tpu.vector_store %arg9[%c0_34, %c16_35], %60 {strides = array<i32>} : memref<4x64xf32, #tpu.memory_space<vmem>>, vector<4x16xf32>,
    %c0_36 = arith.constant 0 : index
    %c1_37 = arith.constant 1 : index
    %62 = vector.load %arg7[%c0_36, %c1_37] : memref<4x4xf32, #tpu.memory_space<vmem>>, vector<4x1xf32>
    tpu.vector_store %arg7[%c0_36, %c1_37], %42 {strides = array<i32>} : memref<4x4xf32, #tpu.memory_space<vmem>>, vector<4x1xf32>,
    %63 = vector.extract_strided_slice %4 {offsets = [0, 32], sizes = [4, 16], strides = [1, 1]} : vector<4x64xbf16> to vector<4x16xbf16>
    %64 = vector.extract_strided_slice %6 {offsets = [0, 32], sizes = [4, 16], strides = [1, 1]} : vector<4x64xbf16> to vector<4x16xbf16>
    %cst_38 = arith.constant dense<0.000000e+00> : vector<4x4xf32>
    %65 = tpu.matmul %63, %64, %cst_38 {dimension_numbers = #tpu.dot_dimension_numbers<[1], [1], [0], [0], [0, 0, 1, 0], [], []>} : vector<4x16xbf16>, vector<4x16xbf16>, vector<4x4xf32> -> vector<4x4xf32>
    %c0_39 = arith.constant 0 : index
    %c2 = arith.constant 2 : index
    %66 = vector.load %arg7[%c0_39, %c2] : memref<4x4xf32, #tpu.memory_space<vmem>>, vector<4x1xf32>
    %cst_40 = arith.constant dense<0xFF800000> : vector<4xf32>
    %67 = vector.multi_reduction <maximumf>, %65, %cst_40 [1] : vector<4x4xf32> to vector<4xf32>
    %68 = vector.shape_cast %67 : vector<4xf32> to vector<4x1xf32>
    %69 = arith.maximumf %66, %68 : vector<4x1xf32>
    %70 = arith.subf %66, %69 : vector<4x1xf32>
    %71 = math.exp %70 : vector<4x1xf32>
    %72 = vector.broadcast %69 : vector<4x1xf32> to vector<4x4xf32>
    %73 = arith.subf %65, %72 : vector<4x4xf32>
    %74 = math.exp %73 : vector<4x4xf32>
    %c0_41 = arith.constant 0 : index
    %c2_42 = arith.constant 2 : index
    %75 = vector.load %arg8[%c0_41, %c2_42] : memref<4x4xf32, #tpu.memory_space<vmem>>, vector<4x1xf32>
    %76 = arith.mulf %71, %75 : vector<4x1xf32>
    %cst_43 = arith.constant dense<0.000000e+00> : vector<4xf32>
    %77 = vector.multi_reduction <add>, %74, %cst_43 [1] : vector<4x4xf32> to vector<4xf32>
    %78 = vector.shape_cast %77 : vector<4xf32> to vector<4x1xf32>
    %79 = arith.addf %76, %78 : vector<4x1xf32>
    %c0_44 = arith.constant 0 : index
    %c2_45 = arith.constant 2 : index
    %80 = vector.load %arg8[%c0_44, %c2_45] : memref<4x4xf32, #tpu.memory_space<vmem>>, vector<4x1xf32>
    tpu.vector_store %arg8[%c0_44, %c2_45], %79 {strides = array<i32>} : memref<4x4xf32, #tpu.memory_space<vmem>>, vector<4x1xf32>,
    %81 = arith.truncf %74 : vector<4x4xf32> to vector<4x4xbf16>
    %82 = vector.extract_strided_slice %8 {offsets = [0, 32], sizes = [4, 16], strides = [1, 1]} : vector<4x64xbf16> to vector<4x16xbf16>
    %cst_46 = arith.constant dense<0.000000e+00> : vector<4x16xf32>
    %83 = tpu.matmul %81, %82, %cst_46 {dimension_numbers = #tpu.dot_dimension_numbers<[1], [0], [0], [1], [0, 0, 1, 1], [], []>} : vector<4x4xbf16>, vector<4x16xbf16>, vector<4x16xf32> -> vector<4x16xf32>
    %c0_47 = arith.constant 0 : index
    %c32 = arith.constant 32 : index
    %84 = vector.load %arg9[%c0_47, %c32] : memref<4x64xf32, #tpu.memory_space<vmem>>, vector<4x16xf32>
    %85 = vector.broadcast %71 : vector<4x1xf32> to vector<4x16xf32>
    %86 = arith.mulf %85, %84 : vector<4x16xf32>
    %87 = arith.addf %86, %83 : vector<4x16xf32>
    %c0_48 = arith.constant 0 : index
    %c32_49 = arith.constant 32 : index
    %88 = vector.load %arg9[%c0_48, %c32_49] : memref<4x64xf32, #tpu.memory_space<vmem>>, vector<4x16xf32>
    tpu.vector_store %arg9[%c0_48, %c32_49], %87 {strides = array<i32>} : memref<4x64xf32, #tpu.memory_space<vmem>>, vector<4x16xf32>,
    %c0_50 = arith.constant 0 : index
    %c2_51 = arith.constant 2 : index
    %89 = vector.load %arg7[%c0_50, %c2_51] : memref<4x4xf32, #tpu.memory_space<vmem>>, vector<4x1xf32>
    tpu.vector_store %arg7[%c0_50, %c2_51], %69 {strides = array<i32>} : memref<4x4xf32, #tpu.memory_space<vmem>>, vector<4x1xf32>,
    %90 = vector.extract_strided_slice %4 {offsets = [0, 48], sizes = [4, 16], strides = [1, 1]} : vector<4x64xbf16> to vector<4x16xbf16>
    %91 = vector.extract_strided_slice %6 {offsets = [0, 48], sizes = [4, 16], strides = [1, 1]} : vector<4x64xbf16> to vector<4x16xbf16>
    %cst_52 = arith.constant dense<0.000000e+00> : vector<4x4xf32>
    %92 = tpu.matmul %90, %91, %cst_52 {dimension_numbers = #tpu.dot_dimension_numbers<[1], [1], [0], [0], [0, 0, 1, 0], [], []>} : vector<4x16xbf16>, vector<4x16xbf16>, vector<4x4xf32> -> vector<4x4xf32>
    %c0_53 = arith.constant 0 : index
    %c3 = arith.constant 3 : index
    %93 = vector.load %arg7[%c0_53, %c3] : memref<4x4xf32, #tpu.memory_space<vmem>>, vector<4x1xf32>
    %cst_54 = arith.constant dense<0xFF800000> : vector<4xf32>
    %94 = vector.multi_reduction <maximumf>, %92, %cst_54 [1] : vector<4x4xf32> to vector<4xf32>
    %95 = vector.shape_cast %94 : vector<4xf32> to vector<4x1xf32>
    %96 = arith.maximumf %93, %95 : vector<4x1xf32>
    %97 = arith.subf %93, %96 : vector<4x1xf32>
    %98 = math.exp %97 : vector<4x1xf32>
    %99 = vector.broadcast %96 : vector<4x1xf32> to vector<4x4xf32>
    %100 = arith.subf %92, %99 : vector<4x4xf32>
    %101 = math.exp %100 : vector<4x4xf32>
    %c0_55 = arith.constant 0 : index
    %c3_56 = arith.constant 3 : index
    %102 = vector.load %arg8[%c0_55, %c3_56] : memref<4x4xf32, #tpu.memory_space<vmem>>, vector<4x1xf32>
    %103 = arith.mulf %98, %102 : vector<4x1xf32>
    %cst_57 = arith.constant dense<0.000000e+00> : vector<4xf32>
    %104 = vector.multi_reduction <add>, %101, %cst_57 [1] : vector<4x4xf32> to vector<4xf32>
    %105 = vector.shape_cast %104 : vector<4xf32> to vector<4x1xf32>
    %106 = arith.addf %103, %105 : vector<4x1xf32>
    %c0_58 = arith.constant 0 : index
    %c3_59 = arith.constant 3 : index
    %107 = vector.load %arg8[%c0_58, %c3_59] : memref<4x4xf32, #tpu.memory_space<vmem>>, vector<4x1xf32>
    tpu.vector_store %arg8[%c0_58, %c3_59], %106 {strides = array<i32>} : memref<4x4xf32, #tpu.memory_space<vmem>>, vector<4x1xf32>,
    %108 = arith.truncf %101 : vector<4x4xf32> to vector<4x4xbf16>
    %109 = vector.extract_strided_slice %8 {offsets = [0, 48], sizes = [4, 16], strides = [1, 1]} : vector<4x64xbf16> to vector<4x16xbf16>
    %cst_60 = arith.constant dense<0.000000e+00> : vector<4x16xf32>
    %110 = tpu.matmul %108, %109, %cst_60 {dimension_numbers = #tpu.dot_dimension_numbers<[1], [0], [0], [1], [0, 0, 1, 1], [], []>} : vector<4x4xbf16>, vector<4x16xbf16>, vector<4x16xf32> -> vector<4x16xf32>
    %c0_61 = arith.constant 0 : index
    %c48 = arith.constant 48 : index
    %111 = vector.load %arg9[%c0_61, %c48] : memref<4x64xf32, #tpu.memory_space<vmem>>, vector<4x16xf32>
    %112 = vector.broadcast %98 : vector<4x1xf32> to vector<4x16xf32>
    %113 = arith.mulf %112, %111 : vector<4x16xf32>
    %114 = arith.addf %113, %110 : vector<4x16xf32>
    %c0_62 = arith.constant 0 : index
    %c48_63 = arith.constant 48 : index
    %115 = vector.load %arg9[%c0_62, %c48_63] : memref<4x64xf32, #tpu.memory_space<vmem>>, vector<4x16xf32>
    tpu.vector_store %arg9[%c0_62, %c48_63], %114 {strides = array<i32>} : memref<4x64xf32, #tpu.memory_space<vmem>>, vector<4x16xf32>,
    %c0_64 = arith.constant 0 : index
    %c3_65 = arith.constant 3 : index
    %116 = vector.load %arg7[%c0_64, %c3_65] : memref<4x4xf32, #tpu.memory_space<vmem>>, vector<4x1xf32>
    tpu.vector_store %arg7[%c0_64, %c3_65], %96 {strides = array<i32>} : memref<4x4xf32, #tpu.memory_space<vmem>>, vector<4x1xf32>,
    %c0_i32_66 = arith.constant 0 : i32
    %117 = arith.cmpi eq, %arg2, %c0_i32_66 : i32
    %118 = arith.extui %117 : i1 to i32
    %c0_i32_67 = arith.constant 0 : i32
    %119 = arith.cmpi ne, %118, %c0_i32_67 : i32
    scf.if %119 {
      %c0_68 = arith.constant 0 : index
      %c0_69 = arith.constant 0 : index
      %120 = vector.load %arg8[%c0_68, %c0_69] : memref<4x4xf32, #tpu.memory_space<vmem>>, vector<4x4xf32>
      %121 = tpu.reciprocal %120 {approx = true} : vector<4x4xf32> -> vector<4x4xf32>
      %c0_70 = arith.constant 0 : index
      %c0_71 = arith.constant 0 : index
      %122 = vector.load %arg9[%c0_70, %c0_71] : memref<4x64xf32, #tpu.memory_space<vmem>>, vector<4x16xf32>
      %123 = vector.extract_strided_slice %121 {offsets = [0, 0], sizes = [4, 1], strides = [1, 1]} : vector<4x4xf32> to vector<4x1xf32>
      %124 = vector.broadcast %123 : vector<4x1xf32> to vector<4x16xf32>
      %125 = arith.mulf %122, %124 : vector<4x16xf32>
      %c0_72 = arith.constant 0 : index
      %c0_73 = arith.constant 0 : index
      %126 = vector.load %arg9[%c0_72, %c0_73] : memref<4x64xf32, #tpu.memory_space<vmem>>, vector<4x16xf32>
      tpu.vector_store %arg9[%c0_72, %c0_73], %125 {strides = array<i32>} : memref<4x64xf32, #tpu.memory_space<vmem>>, vector<4x16xf32>,
      %c0_74 = arith.constant 0 : index
      %c16_75 = arith.constant 16 : index
      %127 = vector.load %arg9[%c0_74, %c16_75] : memref<4x64xf32, #tpu.memory_space<vmem>>, vector<4x16xf32>
      %128 = vector.extract_strided_slice %121 {offsets = [0, 1], sizes = [4, 1], strides = [1, 1]} : vector<4x4xf32> to vector<4x1xf32>
      %129 = vector.broadcast %128 : vector<4x1xf32> to vector<4x16xf32>
      %130 = arith.mulf %127, %129 : vector<4x16xf32>
      %c0_76 = arith.constant 0 : index
      %c16_77 = arith.constant 16 : index
      %131 = vector.load %arg9[%c0_76, %c16_77] : memref<4x64xf32, #tpu.memory_space<vmem>>, vector<4x16xf32>
      tpu.vector_store %arg9[%c0_76, %c16_77], %130 {strides = array<i32>} : memref<4x64xf32, #tpu.memory_space<vmem>>, vector<4x16xf32>,
      %c0_78 = arith.constant 0 : index
      %c32_79 = arith.constant 32 : index
      %132 = vector.load %arg9[%c0_78, %c32_79] : memref<4x64xf32, #tpu.memory_space<vmem>>, vector<4x16xf32>
      %133 = vector.extract_strided_slice %121 {offsets = [0, 2], sizes = [4, 1], strides = [1, 1]} : vector<4x4xf32> to vector<4x1xf32>
      %134 = vector.broadcast %133 : vector<4x1xf32> to vector<4x16xf32>
      %135 = arith.mulf %132, %134 : vector<4x16xf32>
      %c0_80 = arith.constant 0 : index
      %c32_81 = arith.constant 32 : index
      %136 = vector.load %arg9[%c0_80, %c32_81] : memref<4x64xf32, #tpu.memory_space<vmem>>, vector<4x16xf32>
      tpu.vector_store %arg9[%c0_80, %c32_81], %135 {strides = array<i32>} : memref<4x64xf32, #tpu.memory_space<vmem>>, vector<4x16xf32>,
      %c0_82 = arith.constant 0 : index
      %c48_83 = arith.constant 48 : index
      %137 = vector.load %arg9[%c0_82, %c48_83] : memref<4x64xf32, #tpu.memory_space<vmem>>, vector<4x16xf32>
      %138 = vector.extract_strided_slice %121 {offsets = [0, 3], sizes = [4, 1], strides = [1, 1]} : vector<4x4xf32> to vector<4x1xf32>
      %139 = vector.broadcast %138 : vector<4x1xf32> to vector<4x16xf32>
      %140 = arith.mulf %137, %139 : vector<4x16xf32>
      %c0_84 = arith.constant 0 : index
      %c48_85 = arith.constant 48 : index
      %141 = vector.load %arg9[%c0_84, %c48_85] : memref<4x64xf32, #tpu.memory_space<vmem>>, vector<4x16xf32>
      tpu.vector_store %arg9[%c0_84, %c48_85], %140 {strides = array<i32>} : memref<4x64xf32, #tpu.memory_space<vmem>>, vector<4x16xf32>,
      %c0_86 = arith.constant 0 : index
      %c0_87 = arith.constant 0 : index
      %142 = vector.load %arg9[%c0_86, %c0_87] : memref<4x64xf32, #tpu.memory_space<vmem>>, vector<4x64xf32>
      %143 = arith.truncf %142 : vector<4x64xf32> to vector<4x64xbf16>
      %c0_88 = arith.constant 0 : index
      %c0_89 = arith.constant 0 : index
      %c0_90 = arith.constant 0 : index
      %144 = vector.load %arg6[%c0_88, %c0_89, %c0_90] : memref<1x4x64xbf16, #tpu.memory_space<vmem>>, vector<1x4x64xbf16>
      %145 = vector.shape_cast %144 : vector<1x4x64xbf16> to vector<4x64xbf16>
      %146 = vector.shape_cast %143 : vector<4x64xbf16> to vector<1x4x64xbf16>
      tpu.vector_store %arg6[%c0_88, %c0_89, %c0_90], %146 {strides = array<i32>} : memref<1x4x64xbf16, #tpu.memory_space<vmem>>, vector<1x4x64xbf16>,
    } else {
    }
    return
  }
  func.func @transform_0(%arg0: i32, %arg1: i32, %arg2: i32) -> (i32, i32, i32) {
    %c0_i32 = arith.constant 0 : i32
    %c0_i32_0 = arith.constant 0 : i32
    return %arg0, %arg1, %c0_i32 : i32, i32, i32
  }
  func.func @transform_1(%arg0: i32, %arg1: i32, %arg2: i32) -> (i32, i32, i32) {
    %c0_i32 = arith.constant 0 : i32
    %c0_i32_0 = arith.constant 0 : i32
    return %arg0, %arg2, %c0_i32 : i32, i32, i32
  }
  func.func @transform_2(%arg0: i32, %arg1: i32, %arg2: i32) -> (i32, i32, i32) {
    %c0_i32 = arith.constant 0 : i32
    %c0_i32_0 = arith.constant 0 : i32
    return %arg0, %arg2, %c0_i32 : i32, i32, i32
  }
  func.func @transform_3(%arg0: i32, %arg1: i32, %arg2: i32) -> (i32, i32, i32) {
    %c0_i32 = arith.constant 0 : i32
    %c0_i32_0 = arith.constant 0 : i32
    return %arg0, %arg1, %c0_i32 : i32, i32, i32
  }
}

module attributes {stable_mosaic.version = 11 : i64} {
  func.func @_linear_residual_kernel(%arg0: i32, %arg1: memref<8x64xbf16, #tpu.memory_space<vmem>>, %arg2: memref<64x64xbf16, #tpu.memory_space<vmem>>, %arg3: memref<1x64xf32, #tpu.memory_space<vmem>>, %arg4: memref<8x64xbf16, #tpu.memory_space<vmem>>, %arg5: memref<8x64xbf16, #tpu.memory_space<vmem>>) attributes {dimension_semantics = [#tpu.dimension_semantics<parallel>], iteration_bounds = array<i64: 1>, scalar_prefetch = 0 : i64, scratch_operands = 0 : i64, tpu.core_type = #tpu.core_type<tc>, window_params = [{transform_indices = @transform_0, window_bounds = array<i64: 8, 64>}, {pipeline_mode = #tpu.pipeline_mode<synchronous>, transform_indices = @transform_1, window_bounds = array<i64: 64, 64>}, {pipeline_mode = #tpu.pipeline_mode<synchronous>, transform_indices = @transform_2, window_bounds = array<i64: 1, 64>}, {transform_indices = @transform_3, window_bounds = array<i64: 8, 64>}, {transform_indices = @transform_4, window_bounds = array<i64: 8, 64>}]} {
    %c0 = arith.constant 0 : index
    %c0_0 = arith.constant 0 : index
    %0 = vector.load %arg1[%c0, %c0_0] : memref<8x64xbf16, #tpu.memory_space<vmem>>, vector<8x64xbf16>
    %c0_1 = arith.constant 0 : index
    %c0_2 = arith.constant 0 : index
    %1 = vector.load %arg2[%c0_1, %c0_2] : memref<64x64xbf16, #tpu.memory_space<vmem>>, vector<64x64xbf16>
    %cst = arith.constant dense<0.000000e+00> : vector<8x64xf32>
    %2 = tpu.matmul %0, %1, %cst {dimension_numbers = #tpu.dot_dimension_numbers<[1], [0], [0], [1], [0, 0, 1, 1], [], []>} : vector<8x64xbf16>, vector<64x64xbf16>, vector<8x64xf32> -> vector<8x64xf32>
    %c0_3 = arith.constant 0 : index
    %c0_4 = arith.constant 0 : index
    %3 = vector.load %arg3[%c0_3, %c0_4] : memref<1x64xf32, #tpu.memory_space<vmem>>, vector<1x64xf32>
    %4 = vector.broadcast %3 : vector<1x64xf32> to vector<8x64xf32>
    %5 = arith.addf %2, %4 : vector<8x64xf32>
    %c0_5 = arith.constant 0 : index
    %c0_6 = arith.constant 0 : index
    %6 = vector.load %arg4[%c0_5, %c0_6] : memref<8x64xbf16, #tpu.memory_space<vmem>>, vector<8x64xbf16>
    %7 = arith.extf %6 : vector<8x64xbf16> to vector<8x64xf32>
    %8 = arith.addf %5, %7 : vector<8x64xf32>
    %9 = arith.truncf %8 : vector<8x64xf32> to vector<8x64xbf16>
    %c0_7 = arith.constant 0 : index
    %c0_8 = arith.constant 0 : index
    %10 = vector.load %arg5[%c0_7, %c0_8] : memref<8x64xbf16, #tpu.memory_space<vmem>>, vector<8x64xbf16>
    tpu.vector_store %arg5[%c0_7, %c0_8], %9 {strides = array<i32>} : memref<8x64xbf16, #tpu.memory_space<vmem>>, vector<8x64xbf16>,
    return
  }
  func.func @transform_0(%arg0: i32) -> (i32, i32) {
    %c0_i32 = arith.constant 0 : i32
    %c0_i32_0 = arith.constant 0 : i32
    return %arg0, %c0_i32 : i32, i32
  }
  func.func @transform_1(%arg0: i32) -> (i32, i32) {
    %c0_i32 = arith.constant 0 : i32
    %c0_i32_0 = arith.constant 0 : i32
    %c0_i32_1 = arith.constant 0 : i32
    return %c0_i32, %c0_i32_0 : i32, i32
  }
  func.func @transform_2(%arg0: i32) -> (i32, i32) {
    %c0_i32 = arith.constant 0 : i32
    %c0_i32_0 = arith.constant 0 : i32
    %c0_i32_1 = arith.constant 0 : i32
    return %c0_i32, %c0_i32_0 : i32, i32
  }
  func.func @transform_3(%arg0: i32) -> (i32, i32) {
    %c0_i32 = arith.constant 0 : i32
    %c0_i32_0 = arith.constant 0 : i32
    return %arg0, %c0_i32 : i32, i32
  }
  func.func @transform_4(%arg0: i32) -> (i32, i32) {
    %c0_i32 = arith.constant 0 : i32
    %c0_i32_0 = arith.constant 0 : i32
    return %arg0, %c0_i32 : i32, i32
  }
}

module attributes {stable_mosaic.version = 11 : i64} {
  func.func @_ln_mlp_residual_kernel(%arg0: i32, %arg1: memref<8x64xbf16, #tpu.memory_space<vmem>>, %arg2: memref<1x64xf32, #tpu.memory_space<vmem>>, %arg3: memref<1x64xf32, #tpu.memory_space<vmem>>, %arg4: memref<64x128xbf16, #tpu.memory_space<vmem>>, %arg5: memref<1x128xf32, #tpu.memory_space<vmem>>, %arg6: memref<128x64xbf16, #tpu.memory_space<vmem>>, %arg7: memref<1x64xf32, #tpu.memory_space<vmem>>, %arg8: memref<8x64xbf16, #tpu.memory_space<vmem>>) attributes {dimension_semantics = [#tpu.dimension_semantics<parallel>], iteration_bounds = array<i64: 1>, scalar_prefetch = 0 : i64, scratch_operands = 0 : i64, tpu.core_type = #tpu.core_type<tc>, window_params = [{transform_indices = @transform_0, window_bounds = array<i64: 8, 64>}, {pipeline_mode = #tpu.pipeline_mode<synchronous>, transform_indices = @transform_1, window_bounds = array<i64: 1, 64>}, {pipeline_mode = #tpu.pipeline_mode<synchronous>, transform_indices = @transform_2, window_bounds = array<i64: 1, 64>}, {pipeline_mode = #tpu.pipeline_mode<synchronous>, transform_indices = @transform_3, window_bounds = array<i64: 64, 128>}, {pipeline_mode = #tpu.pipeline_mode<synchronous>, transform_indices = @transform_4, window_bounds = array<i64: 1, 128>}, {pipeline_mode = #tpu.pipeline_mode<synchronous>, transform_indices = @transform_5, window_bounds = array<i64: 128, 64>}, {pipeline_mode = #tpu.pipeline_mode<synchronous>, transform_indices = @transform_6, window_bounds = array<i64: 1, 64>}, {transform_indices = @transform_7, window_bounds = array<i64: 8, 64>}]} {
    %c0 = arith.constant 0 : index
    %c0_0 = arith.constant 0 : index
    %0 = vector.load %arg1[%c0, %c0_0] : memref<8x64xbf16, #tpu.memory_space<vmem>>, vector<8x64xbf16>
    %1 = arith.extf %0 : vector<8x64xbf16> to vector<8x64xf32>
    %cst = arith.constant dense<0.000000e+00> : vector<8xf32>
    %2 = vector.multi_reduction <add>, %1, %cst [1] : vector<8x64xf32> to vector<8xf32>
    %3 = vector.shape_cast %2 : vector<8xf32> to vector<8x1xf32>
    %cst_1 = arith.constant 6.400000e+01 : f32
    %4 = vector.broadcast %cst_1 : f32 to vector<8x1xf32>
    %5 = arith.divf %3, %4 : vector<8x1xf32>
    %6 = vector.broadcast %5 : vector<8x1xf32> to vector<8x64xf32>
    %7 = arith.subf %1, %6 : vector<8x64xf32>
    %8 = vector.broadcast %5 : vector<8x1xf32> to vector<8x64xf32>
    %9 = arith.subf %1, %8 : vector<8x64xf32>
    %10 = arith.mulf %7, %9 : vector<8x64xf32>
    %cst_2 = arith.constant dense<0.000000e+00> : vector<8xf32>
    %11 = vector.multi_reduction <add>, %10, %cst_2 [1] : vector<8x64xf32> to vector<8xf32>
    %12 = vector.shape_cast %11 : vector<8xf32> to vector<8x1xf32>
    %cst_3 = arith.constant 6.400000e+01 : f32
    %13 = vector.broadcast %cst_3 : f32 to vector<8x1xf32>
    %14 = arith.divf %12, %13 : vector<8x1xf32>
    %15 = vector.broadcast %5 : vector<8x1xf32> to vector<8x64xf32>
    %16 = arith.subf %1, %15 : vector<8x64xf32>
    %cst_4 = arith.constant 9.99999974E-6 : f32
    %17 = vector.broadcast %cst_4 : f32 to vector<8x1xf32>
    %18 = arith.addf %14, %17 : vector<8x1xf32>
    %19 = math.rsqrt %18 : vector<8x1xf32>
    %20 = vector.broadcast %19 : vector<8x1xf32> to vector<8x64xf32>
    %21 = arith.mulf %16, %20 : vector<8x64xf32>
    %c0_5 = arith.constant 0 : index
    %c0_6 = arith.constant 0 : index
    %22 = vector.load %arg2[%c0_5, %c0_6] : memref<1x64xf32, #tpu.memory_space<vmem>>, vector<1x64xf32>
    %23 = vector.broadcast %22 : vector<1x64xf32> to vector<8x64xf32>
    %24 = arith.mulf %21, %23 : vector<8x64xf32>
    %c0_7 = arith.constant 0 : index
    %c0_8 = arith.constant 0 : index
    %25 = vector.load %arg3[%c0_7, %c0_8] : memref<1x64xf32, #tpu.memory_space<vmem>>, vector<1x64xf32>
    %26 = vector.broadcast %25 : vector<1x64xf32> to vector<8x64xf32>
    %27 = arith.addf %24, %26 : vector<8x64xf32>
    %28 = arith.truncf %27 : vector<8x64xf32> to vector<8x64xbf16>
    %c0_9 = arith.constant 0 : index
    %c0_10 = arith.constant 0 : index
    %29 = vector.load %arg4[%c0_9, %c0_10] : memref<64x128xbf16, #tpu.memory_space<vmem>>, vector<64x128xbf16>
    %cst_11 = arith.constant dense<0.000000e+00> : vector<8x128xf32>
    %30 = tpu.matmul %28, %29, %cst_11 {dimension_numbers = #tpu.dot_dimension_numbers<[1], [0], [0], [1], [0, 0, 1, 1], [], []>} : vector<8x64xbf16>, vector<64x128xbf16>, vector<8x128xf32> -> vector<8x128xf32>
    %c0_12 = arith.constant 0 : index
    %c0_13 = arith.constant 0 : index
    %31 = vector.load %arg5[%c0_12, %c0_13] : memref<1x128xf32, #tpu.memory_space<vmem>>, vector<1x128xf32>
    %32 = vector.broadcast %31 : vector<1x128xf32> to vector<8x128xf32>
    %33 = arith.addf %30, %32 : vector<8x128xf32>
    %cst_14 = arith.constant 5.000000e-01 : f32
    %34 = vector.broadcast %cst_14 : f32 to vector<8x128xf32>
    %35 = arith.mulf %34, %33 : vector<8x128xf32>
    %cst_15 = arith.constant 4.471500e-02 : f32
    %36 = vector.broadcast %cst_15 : f32 to vector<8x128xf32>
    %37 = arith.mulf %36, %33 : vector<8x128xf32>
    %38 = arith.mulf %37, %33 : vector<8x128xf32>
    %39 = arith.mulf %38, %33 : vector<8x128xf32>
    %40 = arith.addf %33, %39 : vector<8x128xf32>
    %cst_16 = arith.constant 0.797884583 : f32
    %41 = vector.broadcast %cst_16 : f32 to vector<8x128xf32>
    %42 = arith.mulf %41, %40 : vector<8x128xf32>
    %43 = math.tanh %42 : vector<8x128xf32>
    %cst_17 = arith.constant 1.000000e+00 : f32
    %44 = vector.broadcast %cst_17 : f32 to vector<8x128xf32>
    %45 = arith.addf %44, %43 : vector<8x128xf32>
    %46 = arith.mulf %35, %45 : vector<8x128xf32>
    %47 = arith.truncf %46 : vector<8x128xf32> to vector<8x128xbf16>
    %c0_18 = arith.constant 0 : index
    %c0_19 = arith.constant 0 : index
    %48 = vector.load %arg6[%c0_18, %c0_19] : memref<128x64xbf16, #tpu.memory_space<vmem>>, vector<128x64xbf16>
    %cst_20 = arith.constant dense<0.000000e+00> : vector<8x64xf32>
    %49 = tpu.matmul %47, %48, %cst_20 {dimension_numbers = #tpu.dot_dimension_numbers<[1], [0], [0], [1], [0, 0, 1, 1], [], []>} : vector<8x128xbf16>, vector<128x64xbf16>, vector<8x64xf32> -> vector<8x64xf32>
    %c0_21 = arith.constant 0 : index
    %c0_22 = arith.constant 0 : index
    %50 = vector.load %arg7[%c0_21, %c0_22] : memref<1x64xf32, #tpu.memory_space<vmem>>, vector<1x64xf32>
    %51 = vector.broadcast %50 : vector<1x64xf32> to vector<8x64xf32>
    %52 = arith.addf %49, %51 : vector<8x64xf32>
    %53 = arith.addf %1, %52 : vector<8x64xf32>
    %54 = arith.truncf %53 : vector<8x64xf32> to vector<8x64xbf16>
    %c0_23 = arith.constant 0 : index
    %c0_24 = arith.constant 0 : index
    %55 = vector.load %arg8[%c0_23, %c0_24] : memref<8x64xbf16, #tpu.memory_space<vmem>>, vector<8x64xbf16>
    tpu.vector_store %arg8[%c0_23, %c0_24], %54 {strides = array<i32>} : memref<8x64xbf16, #tpu.memory_space<vmem>>, vector<8x64xbf16>,
    return
  }
  func.func @transform_0(%arg0: i32) -> (i32, i32) {
    %c0_i32 = arith.constant 0 : i32
    %c0_i32_0 = arith.constant 0 : i32
    return %arg0, %c0_i32 : i32, i32
  }
  func.func @transform_1(%arg0: i32) -> (i32, i32) {
    %c0_i32 = arith.constant 0 : i32
    %c0_i32_0 = arith.constant 0 : i32
    %c0_i32_1 = arith.constant 0 : i32
    return %c0_i32, %c0_i32_0 : i32, i32
  }
  func.func @transform_2(%arg0: i32) -> (i32, i32) {
    %c0_i32 = arith.constant 0 : i32
    %c0_i32_0 = arith.constant 0 : i32
    %c0_i32_1 = arith.constant 0 : i32
    return %c0_i32, %c0_i32_0 : i32, i32
  }
  func.func @transform_3(%arg0: i32) -> (i32, i32) {
    %c0_i32 = arith.constant 0 : i32
    %c0_i32_0 = arith.constant 0 : i32
    %c0_i32_1 = arith.constant 0 : i32
    return %c0_i32, %c0_i32_0 : i32, i32
  }
  func.func @transform_4(%arg0: i32) -> (i32, i32) {
    %c0_i32 = arith.constant 0 : i32
    %c0_i32_0 = arith.constant 0 : i32
    %c0_i32_1 = arith.constant 0 : i32
    return %c0_i32, %c0_i32_0 : i32, i32
  }
  func.func @transform_5(%arg0: i32) -> (i32, i32) {
    %c0_i32 = arith.constant 0 : i32
    %c0_i32_0 = arith.constant 0 : i32
    %c0_i32_1 = arith.constant 0 : i32
    return %c0_i32, %c0_i32_0 : i32, i32
  }
  func.func @transform_6(%arg0: i32) -> (i32, i32) {
    %c0_i32 = arith.constant 0 : i32
    %c0_i32_0 = arith.constant 0 : i32
    %c0_i32_1 = arith.constant 0 : i32
    return %c0_i32, %c0_i32_0 : i32, i32
  }
  func.func @transform_7(%arg0: i32) -> (i32, i32) {
    %c0_i32 = arith.constant 0 : i32
    %c0_i32_0 = arith.constant 0 : i32
    return %arg0, %c0_i32 : i32, i32
  }
}

module attributes {stable_mosaic.version = 11 : i64} {
  func.func @_linear_kernel(%arg0: i32, %arg1: memref<8x64xbf16, #tpu.memory_space<vmem>>, %arg2: memref<64x32xbf16, #tpu.memory_space<vmem>>, %arg3: memref<1x32xf32, #tpu.memory_space<vmem>>, %arg4: memref<8x32xbf16, #tpu.memory_space<vmem>>) attributes {dimension_semantics = [#tpu.dimension_semantics<parallel>], iteration_bounds = array<i64: 1>, scalar_prefetch = 0 : i64, scratch_operands = 0 : i64, tpu.core_type = #tpu.core_type<tc>, window_params = [{transform_indices = @transform_0, window_bounds = array<i64: 8, 64>}, {pipeline_mode = #tpu.pipeline_mode<synchronous>, transform_indices = @transform_1, window_bounds = array<i64: 64, 32>}, {pipeline_mode = #tpu.pipeline_mode<synchronous>, transform_indices = @transform_2, window_bounds = array<i64: 1, 32>}, {transform_indices = @transform_3, window_bounds = array<i64: 8, 32>}]} {
    %c0 = arith.constant 0 : index
    %c0_0 = arith.constant 0 : index
    %0 = vector.load %arg1[%c0, %c0_0] : memref<8x64xbf16, #tpu.memory_space<vmem>>, vector<8x64xbf16>
    %c0_1 = arith.constant 0 : index
    %c0_2 = arith.constant 0 : index
    %1 = vector.load %arg2[%c0_1, %c0_2] : memref<64x32xbf16, #tpu.memory_space<vmem>>, vector<64x32xbf16>
    %cst = arith.constant dense<0.000000e+00> : vector<8x32xf32>
    %2 = tpu.matmul %0, %1, %cst {dimension_numbers = #tpu.dot_dimension_numbers<[1], [0], [0], [1], [0, 0, 1, 1], [], []>} : vector<8x64xbf16>, vector<64x32xbf16>, vector<8x32xf32> -> vector<8x32xf32>
    %c0_3 = arith.constant 0 : index
    %c0_4 = arith.constant 0 : index
    %3 = vector.load %arg3[%c0_3, %c0_4] : memref<1x32xf32, #tpu.memory_space<vmem>>, vector<1x32xf32>
    %4 = vector.broadcast %3 : vector<1x32xf32> to vector<8x32xf32>
    %5 = arith.addf %2, %4 : vector<8x32xf32>
    %6 = arith.truncf %5 : vector<8x32xf32> to vector<8x32xbf16>
    %c0_5 = arith.constant 0 : index
    %c0_6 = arith.constant 0 : index
    %7 = vector.load %arg4[%c0_5, %c0_6] : memref<8x32xbf16, #tpu.memory_space<vmem>>, vector<8x32xbf16>
    tpu.vector_store %arg4[%c0_5, %c0_6], %6 {strides = array<i32>} : memref<8x32xbf16, #tpu.memory_space<vmem>>, vector<8x32xbf16>,
    return
  }
  func.func @transform_0(%arg0: i32) -> (i32, i32) {
    %c0_i32 = arith.constant 0 : i32
    %c0_i32_0 = arith.constant 0 : i32
    return %arg0, %c0_i32 : i32, i32
  }
  func.func @transform_1(%arg0: i32) -> (i32, i32) {
    %c0_i32 = arith.constant 0 : i32
    %c0_i32_0 = arith.constant 0 : i32
    %c0_i32_1 = arith.constant 0 : i32
    return %c0_i32, %c0_i32_0 : i32, i32
  }
  func.func @transform_2(%arg0: i32) -> (i32, i32) {
    %c0_i32 = arith.constant 0 : i32
    %c0_i32_0 = arith.constant 0 : i32
    %c0_i32_1 = arith.constant 0 : i32
    return %c0_i32, %c0_i32_0 : i32, i32
  }
  func.func @transform_3(%arg0: i32) -> (i32, i32) {
    %c0_i32 = arith.constant 0 : i32
    %c0_i32_0 = arith.constant 0 : i32
    return %arg0, %c0_i32 : i32, i32
  }
}

module attributes {stable_mosaic.version = 11 : i64} {
  func.func @_linear_kernel(%arg0: i32, %arg1: memref<32x32xbf16, #tpu.memory_space<vmem>>, %arg2: memref<32x128xbf16, #tpu.memory_space<vmem>>, %arg3: memref<1x128xf32, #tpu.memory_space<vmem>>, %arg4: memref<32x128xbf16, #tpu.memory_space<vmem>>) attributes {dimension_semantics = [#tpu.dimension_semantics<parallel>], iteration_bounds = array<i64: 1>, scalar_prefetch = 0 : i64, scratch_operands = 0 : i64, tpu.core_type = #tpu.core_type<tc>, window_params = [{transform_indices = @transform_0, window_bounds = array<i64: 32, 32>}, {pipeline_mode = #tpu.pipeline_mode<synchronous>, transform_indices = @transform_1, window_bounds = array<i64: 32, 128>}, {pipeline_mode = #tpu.pipeline_mode<synchronous>, transform_indices = @transform_2, window_bounds = array<i64: 1, 128>}, {transform_indices = @transform_3, window_bounds = array<i64: 32, 128>}]} {
    %c0 = arith.constant 0 : index
    %c0_0 = arith.constant 0 : index
    %0 = vector.load %arg1[%c0, %c0_0] : memref<32x32xbf16, #tpu.memory_space<vmem>>, vector<32x32xbf16>
    %c0_1 = arith.constant 0 : index
    %c0_2 = arith.constant 0 : index
    %1 = vector.load %arg2[%c0_1, %c0_2] : memref<32x128xbf16, #tpu.memory_space<vmem>>, vector<32x128xbf16>
    %cst = arith.constant dense<0.000000e+00> : vector<32x128xf32>
    %2 = tpu.matmul %0, %1, %cst {dimension_numbers = #tpu.dot_dimension_numbers<[1], [0], [0], [1], [0, 0, 1, 1], [], []>} : vector<32x32xbf16>, vector<32x128xbf16>, vector<32x128xf32> -> vector<32x128xf32>
    %c0_3 = arith.constant 0 : index
    %c0_4 = arith.constant 0 : index
    %3 = vector.load %arg3[%c0_3, %c0_4] : memref<1x128xf32, #tpu.memory_space<vmem>>, vector<1x128xf32>
    %4 = vector.broadcast %3 : vector<1x128xf32> to vector<32x128xf32>
    %5 = arith.addf %2, %4 : vector<32x128xf32>
    %6 = arith.truncf %5 : vector<32x128xf32> to vector<32x128xbf16>
    %c0_5 = arith.constant 0 : index
    %c0_6 = arith.constant 0 : index
    %7 = vector.load %arg4[%c0_5, %c0_6] : memref<32x128xbf16, #tpu.memory_space<vmem>>, vector<32x128xbf16>
    tpu.vector_store %arg4[%c0_5, %c0_6], %6 {strides = array<i32>} : memref<32x128xbf16, #tpu.memory_space<vmem>>, vector<32x128xbf16>,
    return
  }
  func.func @transform_0(%arg0: i32) -> (i32, i32) {
    %c0_i32 = arith.constant 0 : i32
    %c0_i32_0 = arith.constant 0 : i32
    return %arg0, %c0_i32 : i32, i32
  }
  func.func @transform_1(%arg0: i32) -> (i32, i32) {
    %c0_i32 = arith.constant 0 : i32
    %c0_i32_0 = arith.constant 0 : i32
    %c0_i32_1 = arith.constant 0 : i32
    return %c0_i32, %c0_i32_0 : i32, i32
  }
  func.func @transform_2(%arg0: i32) -> (i32, i32) {
    %c0_i32 = arith.constant 0 : i32
    %c0_i32_0 = arith.constant 0 : i32
    %c0_i32_1 = arith.constant 0 : i32
    return %c0_i32, %c0_i32_0 : i32, i32
  }
  func.func @transform_3(%arg0: i32) -> (i32, i32) {
    %c0_i32 = arith.constant 0 : i32
    %c0_i32_0 = arith.constant 0 : i32
    return %arg0, %c0_i32 : i32, i32
  }
}

</mosaic_0001>

<llo_original>
// kernel: bi_unet_forward.16
$region0: #{bi_unet_forward.16}
  #allocation0 [shape = 'u32[]', space=smem, size = 0x4, offset = 0x4, fixed_abs, tag = 'smem constant byte address 0x4 - core index']
  #allocation1 [shape = 'u32[144,128]{1,0:T(1,128)}', space=vmem, size = 0x12000, scoped, tag = 'internal scratch']
  %s0 = inlined_call_operand.vmem [shape: bf16[32,48], index: 0, kind: input, shape index: {}]
  %s1 = inlined_call_operand.vmem [shape: bf16[48,32], index: 1, kind: input, shape index: {}]
  %s2 = inlined_call_operand.vmem [shape: f32[1,32], index: 2, kind: input, shape index: {}]
  %s3 = inlined_call_operand.vmem [shape: bf16[32,32], index: 3, kind: output, shape index: {}]
  %s4 = sld [smem:[#allocation0]]
  $region22: #{bi_unet_forward.16} parent=0
    _
  %s6 = ssub.s32 1, %s4
  %s7 = scalar_select 0, %s6, %s4
  // Predicated region
  $region2: #{bi_unet_forward.16} parent=0 // pred_check
    _
  $region3: #{bi_unet_forward.16} parent=0 // pred_check_branch
    %9 = sbr.rel (0) target = $region5
  $region4: #{bi_unet_forward.16} parent=0 // pred_region
    _
  $region5: #{bi_unet_forward.16} parent=0 // pred_fallthru
    _
  // Predicated region
  $region6: #{bi_unet_forward.16} parent=0 // pred_check
    _
  $region7: #{bi_unet_forward.16} parent=0 // pred_check_branch
    %11 = sbr.rel (0) target = $region9
  $region8: #{bi_unet_forward.16} parent=0 // pred_region
    _
  $region9: #{bi_unet_forward.16} parent=0 // pred_fallthru
    _
  // Predicated region
  $region10: #{bi_unet_forward.16} parent=0 // pred_check
    _
  $region11: #{bi_unet_forward.16} parent=0 // pred_check_branch
    %13 = sbr.rel (0) target = $region13
  $region12: #{bi_unet_forward.16} parent=0 // pred_region
    _
  $region13: #{bi_unet_forward.16} parent=0 // pred_fallthru
    _
  %v15 = vld [vmem:[%s0] sm:$0xf]
  %v16 = vld [vmem:[%s0 + $0x4] sm:$0xf]
  %v17 = vld [vmem:[%s0 + $0x8] sm:$0xf]
  %v18 = vld [vmem:[%s0 + $0xc] sm:$0xf]
  %v19 = vld [vmem:[%s1] sm:$0xf]
  %v20 = vld [vmem:[%s1 + $0x4] sm:$0xf]
  %v21 = vld [vmem:[%s1 + $0x8] sm:$0xf]
  %v22 = vld [vmem:[%s1 + $0xc] sm:$0xf]
  %v23 = vld [vmem:[%s1 + $0x10] sm:$0xf]
  %v24 = vld [vmem:[%s1 + $0x14] sm:$0xf]
  %v25 = vld [vmem:[%s2] sm:$0x1]
  %v27 = vlaneseq
  %v28 = vshrl.u32 %v27, 7
  %v29 = vsub.s32 0, %v28
  %v30 = vrot.slane %v25, %v29
  %v36 = vunpack.c.l.b16 %v15
  %v37 = vunpack.c.l.b16 %v16
  %v38 = vunpack.c.l.b16 %v17
  %v39 = vunpack.c.l.b16 %v18
  %v40 = vpack.c.b16 %v37, %v36
  %v41 = vpack.c.b16 %v39, %v38
  %v48 = vunpack.c.l.b16 %v19
  %v49 = vunpack.c.l.b16 %v20
  %v50 = vunpack.c.l.b16 %v21
  %v51 = vunpack.c.l.b16 %v22
  %v52 = vunpack.c.l.b16 %v23
  %v53 = vunpack.c.l.b16 %v24
  %v54 = vpack.c.b16 %v49, %v48
  %v55 = vpack.c.b16 %v51, %v50
  %v56 = vpack.c.b16 %v53, %v52
  %vm60 = vcmask 392192
  %v62 = vsel %vm60, %v40, 0
  %v65 = vsel %vm60, %v41, 0
  %67 = vmatprep.subr.bf16.mxu0 0
  %68 = vmatpush1.bf16.msra.mxu0 %v54
  %69 = vmatprep.subr.bf16.mxu0 0
  %70 = vmatpush1.bf16.msra.mxu0 %v55
  %71 = vmatprep.subr.bf16.mxu0 0
  %72 = vmatpush1.bf16.msra.mxu0 %v56
  %73 = vmatprep.subr.bf16.mxu0 0
  %74 = vmatpush1.bf16.msra.mxu0 0
  %75 = vmatprep.subr.bf16.mxu0 0
  %76 = vmatpush1.bf16.msra.mxu0 0
  %77 = vmatprep.subr.bf16.mxu0 0
  %78 = vmatpush1.bf16.msra.mxu0 0
  %79 = vmatprep.subr.bf16.mxu0 0
  %80 = vmatpush1.bf16.msra.mxu0 0
  %81 = vmatprep.subr.bf16.mxu0 0
  %82 = vmatpush1.bf16.msra.mxu0 0
  %83 = vmatprep.subr.bf16.mxu0 0
  %84 = vmatpush1.bf16.msra.mxu0 0
  %85 = vmatprep.subr.bf16.mxu0 0
  %86 = vmatpush1.bf16.msra.mxu0 0
  %87 = vmatprep.subr.bf16.mxu0 0
  %88 = vmatpush1.bf16.msra.mxu0 0
  %89 = vmatprep.subr.bf16.mxu0 0
  %90 = vmatpush1.bf16.msra.mxu0 0
  %91 = vmatprep.subr.bf16.mxu0 0
  %92 = vmatpush1.bf16.msra.mxu0 0
  %93 = vmatprep.subr.bf16.mxu0 0
  %94 = vmatpush1.bf16.msra.mxu0 0
  %95 = vmatprep.subr.bf16.mxu0 0
  %96 = vmatpush1.bf16.msra.mxu0 0
  %97 = vmatprep.subr.bf16.mxu0 0
  %98 = vmatpush1.bf16.msra.mxu0 0
  %99 = vmatprep.mubr.bf16.mxu0 0
  %100 = vmatmul.mubr.bf16.gmra.mrb[0].mxu0 %v62
  %v101 = vpop.f32.mrb[0].mxu0
  %v102 = vadd.f32 %v30, %v101
  %v103 = vpop.f32.mrb[0].mxu0
  %v104 = vpop.f32.mrb[0].mxu0
  %v105 = vadd.f32 %v30, %v104
  %v106 = vpop.f32.mrb[0].mxu0
  %107 = vmatprep.mubr.bf16.mxu0 0
  %108 = vmatmul.mubr.bf16.gmra.mrb[0].mxu0 %v65
  %v109 = vpop.f32.mrb[0].mxu0
  %v110 = vadd.f32 %v30, %v109
  %v111 = vpop.f32.mrb[0].mxu0
  %v112 = vpop.f32.mrb[0].mxu0
  %v113 = vadd.f32 %v30, %v112
  %v114 = vpop.f32.mrb[0].mxu0
  %115 = vdwg.mxu0
  %v116 = vpack.c.bf16 %v105, %v102
  %v117 = vpack.c.bf16 %v113, %v110
  %v120 = vunpack.c.l.b16 %v116
  %v121 = vunpack.c.h.b16 %v116
  %v122 = vunpack.c.l.b16 %v117
  %v123 = vunpack.c.h.b16 %v117
  %v124 = vpack.c.b16 %v120, %v120
  %v125 = vpack.c.b16 %v121, %v121
  %v126 = vpack.c.b16 %v122, %v122
  %v127 = vpack.c.b16 %v123, %v123
  %vm132 = vcmask 257024
  %133 = vst.msk [vmem:[%s3] sm:$0xf] %vm132, %v124
  %134 = vst.msk [vmem:[%s3 + $0x4] sm:$0xf] %vm132, %v125
  %135 = vst.msk [vmem:[%s3 + $0x8] sm:$0xf] %vm132, %v126
  %136 = vst.msk [vmem:[%s3 + $0xc] sm:$0xf] %vm132, %v127
  // Predicated region
  $region14: #{bi_unet_forward.16} parent=0 // pred_check
    _
  $region15: #{bi_unet_forward.16} parent=0 // pred_check_branch
    %138 = sbr.rel (0) target = $region17
  $region16: #{bi_unet_forward.16} parent=0 // pred_region
    _
  $region17: #{bi_unet_forward.16} parent=0 // pred_fallthru
    _
  // Predicated region
  $region18: #{bi_unet_forward.16} parent=0 // pred_check
    _
  $region19: #{bi_unet_forward.16} parent=0 // pred_check_branch
    %140 = sbr.rel (0) target = $region21
  $region20: #{bi_unet_forward.16} parent=0 // pred_region
    _
  $region21: #{bi_unet_forward.16} parent=0 // pred_fallthru
    _

// kernel: bi_unet_forward.18
$region0: #{bi_unet_forward.18}
  #allocation0 [shape = 'u32[]', space=smem, size = 0x4, offset = 0x4, fixed_abs, tag = 'smem constant byte address 0x4 - core index']
  #allocation1 [shape = 'u32[144,128]{1,0:T(1,128)}', space=vmem, size = 0x12000, scoped, tag = 'internal scratch']
  #allocation2 [shape = 'f32[16,2]{1,0:T(8,128)}', space=vmem, size = 0x2000, scoped, tag = 'scratch operand']
  #allocation3 [shape = 'f32[16,2]{1,0:T(8,128)}', space=vmem, size = 0x2000, scoped, tag = 'scratch operand']
  #allocation4 [shape = 'f32[16,32]{1,0:T(8,128)}', space=vmem, size = 0x2000, scoped, tag = 'scratch operand']
  %s0 = inlined_call_operand.vmem [shape: bf16[2,16,32], index: 0, kind: input, shape index: {}]
  %s1 = inlined_call_operand.vmem [shape: bf16[2,16,32], index: 1, kind: input, shape index: {}]
  %s2 = inlined_call_operand.vmem [shape: bf16[2,16,32], index: 2, kind: input, shape index: {}]
  %s3 = inlined_call_operand.vmem [shape: bf16[2,16,32], index: 3, kind: output, shape index: {}]
  %s4 = sld [smem:[#allocation0]]
  $region53: #{bi_unet_forward.18} parent=0
    _
  %s6 = ssub.s32 1, %s4
  %s7 = scalar_select 0, %s6, %s4
  loop: start=0, step=1, limit=4
  $region2: #{bi_unet_forward.18} parent=0 // loop_pre_header
    _
  $region3: #{bi_unet_forward.18} parent=0 // loop_header
    %s9 = sphi 0, %s13
    %p10 = scmp.ge.s32.totalorder %s9, 4
    %s16 = sphi 0, %s35
    %s17 = sphi 0, %s31
    %s18 = sphi 0, %s27
    %s19 = sphi 0, %s16
    %s20 = sphi 0, %s17
    %s21 = sphi 0, %s18
    %s22 = sphi 0, %s19
    %s23 = sphi 0, %s20
    %s24 = sphi 0, %s21
    %s40 = sphi 0, %s42
    %s43 = sphi 0, %s40
    %s44 = sphi 0, %s43
    %s60 = sphi 0, %s44
    %s68 = sphi 0, %s70
    %s71 = sphi 0, %s68
    %s72 = sphi 0, %s71
    %s88 = sphi 0, %s72
    %s96 = sphi 0, %s98
    %s99 = sphi 0, %s96
    %s100 = sphi 0, %s99
    %s116 = sphi 0, %s100
    %s124 = sphi 0, %s126
    %s127 = sphi 0, %s124
    %s128 = sphi 0, %s127
    %s144 = sphi 0, %s128
  $region4: #{bi_unet_forward.18} parent=0 // loop_header_branch
    %12 = sbr.rel (%p10) target = $region8
  $region5: #{bi_unet_forward.18} parent=0 // loop_body
    %s14 = ssub.s32 %s9, 1
    %s15 = ssub.s32 %s9, 2
    %s25 = sadd.s32 1, %s18
    %p26 = scmp.ge.s32.totalorder %s25, 1
    %s27 = scalar_select %p26, 0, %s25
    %s28 = sadd.s32 1, %s17
    %s29 = scalar_select %p26, %s28, %s17
    %p30 = scmp.ge.s32.totalorder %s29, 1
    %s31 = scalar_select %p30, 0, %s29
    %s32 = sadd.s32 1, %s16
    %s33 = scalar_select %p30, %s32, %s16
    %p34 = scmp.ge.s32.totalorder %s33, 2
    %s35 = scalar_select %p34, 0, %s33
    %s36 = ssub.s32 %s16, %s35
    %s37 = ssub.s32 %s17, %s31
    %s38 = sor.u32 %s36, %s37
    %p39 = scmp.eq.s32.totalorder %s38, 0
    %s41 = sadd.s32 %s40, 1
    %s42 = scalar_select %p39, %s40, %s41
    %p45 = pneg %p39
    %p46 = scmp.eq.s32.totalorder %s9, 1
    %p47 = por %p45, %p46
    %p48 = scmp.ne.s32.totalorder %s40, %s43
    %p49 = scmp.eq.s32.totalorder %s9, 0
    %p50 = por %p48, %p49
    %p51 = scmp.ne.s32.totalorder %s40, %s43
    %p52 = scmp.eq.s32.totalorder %s14, 1
    %p53 = por %p51, %p52
    %p54 = scmp.ne.s32.totalorder %s43, %s44
    %p55 = scmp.eq.s32.totalorder %s14, 0
    %p56 = por %p54, %p55
    %p57 = scmp.ne.s32.totalorder %s43, %s44
    %p58 = scmp.eq.s32.totalorder %s15, 1
    %p59 = por %p57, %p58
    %p61 = scmp.ne.s32.totalorder %s44, %s60
    %p62 = scmp.eq.s32.totalorder %s15, 0
    %p63 = por %p61, %p62
    %s64 = ssub.s32 %s16, %s35
    %s65 = ssub.s32 %s18, %s27
    %s66 = sor.u32 %s64, %s65
    %p67 = scmp.eq.s32.totalorder %s66, 0
    %s69 = sadd.s32 %s68, 1
    %s70 = scalar_select %p67, %s68, %s69
    %p73 = pneg %p67
    %p74 = scmp.eq.s32.totalorder %s9, 1
    %p75 = por %p73, %p74
    %p76 = scmp.ne.s32.totalorder %s68, %s71
    %p77 = scmp.eq.s32.totalorder %s9, 0
    %p78 = por %p76, %p77
    %p79 = scmp.ne.s32.totalorder %s68, %s71
    %p80 = scmp.eq.s32.totalorder %s14, 1
    %p81 = por %p79, %p80
    %p82 = scmp.ne.s32.totalorder %s71, %s72
    %p83 = scmp.eq.s32.totalorder %s14, 0
    %p84 = por %p82, %p83
    %p85 = scmp.ne.s32.totalorder %s71, %s72
    %p86 = scmp.eq.s32.totalorder %s15, 1
    %p87 = por %p85, %p86
    %p89 = scmp.ne.s32.totalorder %s72, %s88
    %p90 = scmp.eq.s32.totalorder %s15, 0
    %p91 = por %p89, %p90
    %s92 = ssub.s32 %s16, %s35
    %s93 = ssub.s32 %s18, %s27
    %s94 = sor.u32 %s92, %s93
    %p95 = scmp.eq.s32.totalorder %s94, 0
    %s97 = sadd.s32 %s96, 1
    %s98 = scalar_select %p95, %s96, %s97
    %p101 = pneg %p95
    %p102 = scmp.eq.s32.totalorder %s9, 1
    %p103 = por %p101, %p102
    %p104 = scmp.ne.s32.totalorder %s96, %s99
    %p105 = scmp.eq.s32.totalorder %s9, 0
    %p106 = por %p104, %p105
    %p107 = scmp.ne.s32.totalorder %s96, %s99
    %p108 = scmp.eq.s32.totalorder %s14, 1
    %p109 = por %p107, %p108
    %p110 = scmp.ne.s32.totalorder %s99, %s100
    %p111 = scmp.eq.s32.totalorder %s14, 0
    %p112 = por %p110, %p111
    %p113 = scmp.ne.s32.totalorder %s99, %s100
    %p114 = scmp.eq.s32.totalorder %s15, 1
    %p115 = por %p113, %p114
    %p117 = scmp.ne.s32.totalorder %s100, %s116
    %p118 = scmp.eq.s32.totalorder %s15, 0
    %p119 = por %p117, %p118
    %s120 = ssub.s32 %s16, %s35
    %s121 = ssub.s32 %s17, %s31
    %s122 = sor.u32 %s120, %s121
    %p123 = scmp.eq.s32.totalorder %s122, 0
    %s125 = sadd.s32 %s124, 1
    %s126 = scalar_select %p123, %s124, %s125
    %p129 = pneg %p123
    %p130 = scmp.eq.s32.totalorder %s9, 1
    %p131 = por %p129, %p130
    %p132 = scmp.ne.s32.totalorder %s124, %s127
    %p133 = scmp.eq.s32.totalorder %s9, 0
    %p134 = por %p132, %p133
    %p135 = scmp.ne.s32.totalorder %s124, %s127
    %p136 = scmp.eq.s32.totalorder %s14, 1
    %p137 = por %p135, %p136
    %p138 = scmp.ne.s32.totalorder %s127, %s128
    %p139 = scmp.eq.s32.totalorder %s14, 0
    %p140 = por %p138, %p139
    %p141 = scmp.ne.s32.totalorder %s127, %s128
    %p142 = scmp.eq.s32.totalorder %s15, 1
    %p143 = por %p141, %p142
    %p145 = scmp.ne.s32.totalorder %s128, %s144
    %p146 = scmp.eq.s32.totalorder %s15, 0
    %p147 = por %p145, %p146
    %p148 = scmp.le.s32.totalorder 1, %s9
    %p149 = scmp.lt.s32.totalorder %s9, 3
    %p150 = pnand %p148, %p149
    %p151 = pneg %p150
    // Predicated region
    $region9: #{bi_unet_forward.18} parent=5 // pred_check
      _
    $region10: #{bi_unet_forward.18} parent=5 // pred_check_branch
      %153 = sbr.rel (%p150) target = $region12
    $region11: #{bi_unet_forward.18} parent=5 // pred_region
      %s154 = ssub.s32 %s9, 1
    $region12: #{bi_unet_forward.18} parent=5 // pred_fallthru
      _
    %p155 = scmp.lt.s32.totalorder %s9, 2
    // Predicated region
    $region13: #{bi_unet_forward.18} parent=5 // pred_check
      %p156 = pneg %p155
    $region14: #{bi_unet_forward.18} parent=5 // pred_check_branch
      %158 = sbr.rel (%p156) target = $region16
    $region15: #{bi_unet_forward.18} parent=5 // pred_region
      // Predicated region
      $region17: #{bi_unet_forward.18} parent=15 // pred_check
        %p159 = pneg %p50
      $region18: #{bi_unet_forward.18} parent=15 // pred_check_branch
        %161 = sbr.rel (%p159) target = $region20
      $region19: #{bi_unet_forward.18} parent=15 // pred_region
        %s162 = smul.u32 2, %s17
        %p163 = scmp.lt.s32.totalorder %s16, 1
        %s164 = scalar_select %p163, %s16, 1
        %p165 = scmp.lt.s32.totalorder %s162, 1
        %s166 = scalar_select %p165, %s162, 1
        %s167 = smul.addr %s164, 2
        %s168 = sadd.s32 %s166, %s167
        %s169 = smul.addr %s168, 4
        %s170 = scalar_lea.vmem %s0, %s169
        %s171 = smul.u32 2, %s17
      $region20: #{bi_unet_forward.18} parent=15 // pred_fallthru
        _
      // Predicated region
      $region21: #{bi_unet_forward.18} parent=15 // pred_check
        %p172 = pneg %p78
      $region22: #{bi_unet_forward.18} parent=15 // pred_check_branch
        %174 = sbr.rel (%p172) target = $region24
      $region23: #{bi_unet_forward.18} parent=15 // pred_region
        %s175 = smul.u32 2, %s18
        %p176 = scmp.lt.s32.totalorder %s16, 1
        %s177 = scalar_select %p176, %s16, 1
        %p178 = scmp.lt.s32.totalorder %s175, 1
        %s179 = scalar_select %p178, %s175, 1
        %s180 = smul.addr %s177, 2
        %s181 = sadd.s32 %s179, %s180
        %s182 = smul.addr %s181, 4
        %s183 = scalar_lea.vmem %s1, %s182
        %s184 = smul.u32 2, %s18
      $region24: #{bi_unet_forward.18} parent=15 // pred_fallthru
        _
      // Predicated region
      $region25: #{bi_unet_forward.18} parent=15 // pred_check
        %p185 = pneg %p106
      $region26: #{bi_unet_forward.18} parent=15 // pred_check_branch
        %187 = sbr.rel (%p185) target = $region28
      $region27: #{bi_unet_forward.18} parent=15 // pred_region
        %s188 = smul.u32 2, %s18
        %p189 = scmp.lt.s32.totalorder %s16, 1
        %s190 = scalar_select %p189, %s16, 1
        %p191 = scmp.lt.s32.totalorder %s188, 1
        %s192 = scalar_select %p191, %s188, 1
        %s193 = smul.addr %s190, 2
        %s194 = sadd.s32 %s192, %s193
        %s195 = smul.addr %s194, 4
        %s196 = scalar_lea.vmem %s2, %s195
        %s197 = smul.u32 2, %s18
      $region28: #{bi_unet_forward.18} parent=15 // pred_fallthru
        _
    $region16: #{bi_unet_forward.18} parent=5 // pred_fallthru
      _
    %p198 = scmp.le.s32.totalorder 1, %s9
    %p199 = scmp.lt.s32.totalorder %s9, 3
    %p200 = pnand %p198, %p199
    %p201 = pneg %p200
    // Predicated region
    $region29: #{bi_unet_forward.18} parent=5 // pred_check
      _
    $region30: #{bi_unet_forward.18} parent=5 // pred_check_branch
      %203 = sbr.rel (%p200) target = $region32
    $region31: #{bi_unet_forward.18} parent=5 // pred_region
      %s204 = ssub.s32 %s9, 1
      %s205 = smul.u32 2, %s20
      %p206 = scmp.lt.s32.totalorder %s19, 1
      %s207 = scalar_select %p206, %s19, 1
      %p208 = scmp.lt.s32.totalorder %s205, 1
      %s209 = scalar_select %p208, %s205, 1
      %s210 = smul.addr %s207, 2
      %s211 = sadd.s32 %s209, %s210
      %s212 = smul.addr %s211, 4
      %s213 = scalar_lea.vmem %s0, %s212
      %p214 = pneg %p56
      %p215 = pneg %p53
      %s216 = smul.u32 2, %s21
      %p217 = scmp.lt.s32.totalorder %s19, 1
      %s218 = scalar_select %p217, %s19, 1
      %p219 = scmp.lt.s32.totalorder %s216, 1
      %s220 = scalar_select %p219, %s216, 1
      %s221 = smul.addr %s218, 2
      %s222 = sadd.s32 %s220, %s221
      %s223 = smul.addr %s222, 4
      %s224 = scalar_lea.vmem %s1, %s223
      %p225 = pneg %p84
      %p226 = pneg %p81
      %s227 = smul.u32 2, %s21
      %p228 = scmp.lt.s32.totalorder %s19, 1
      %s229 = scalar_select %p228, %s19, 1
      %p230 = scmp.lt.s32.totalorder %s227, 1
      %s231 = scalar_select %p230, %s227, 1
      %s232 = smul.addr %s229, 2
      %s233 = sadd.s32 %s231, %s232
      %s234 = smul.addr %s233, 4
      %s235 = scalar_lea.vmem %s2, %s234
      %p236 = pneg %p112
      %p237 = pneg %p109
      %p238 = pneg %p140
      %p239 = pneg %p137
      %s240 = smul.u32 2, %s20
      %p241 = scmp.lt.s32.totalorder %s19, 1
      %s242 = scalar_select %p241, %s19, 1
      %p243 = scmp.lt.s32.totalorder %s240, 1
      %s244 = scalar_select %p243, %s240, 1
      %s245 = smul.addr %s242, 2
      %s246 = sadd.s32 %s244, %s245
      %s247 = smul.addr %s246, 4
      %s248 = scalar_lea.vmem %s3, %s247
      %s249 = smul.u32 2, %s20
      %p250 = scmp.lt.s32.totalorder %s19, 1
      %s251 = scalar_select %p250, %s19, 1
      %p252 = scmp.lt.s32.totalorder %s249, 1
      %s253 = scalar_select %p252, %s249, 1
      %s254 = smul.addr %s251, 2
      %s255 = sadd.s32 %s253, %s254
      %s256 = smul.addr %s255, 4
      %s257 = scalar_lea.vmem %s0, %s256
      %s258 = smul.u32 2, %s20
      %s259 = smul.u32 2, %s21
      %p260 = scmp.lt.s32.totalorder %s19, 1
      %s261 = scalar_select %p260, %s19, 1
      %p262 = scmp.lt.s32.totalorder %s259, 1
      %s263 = scalar_select %p262, %s259, 1
      %s264 = smul.addr %s261, 2
      %s265 = sadd.s32 %s263, %s264
      %s266 = smul.addr %s265, 4
      %s267 = scalar_lea.vmem %s1, %s266
      %s268 = smul.u32 2, %s21
      %s269 = smul.u32 2, %s21
      %p270 = scmp.lt.s32.totalorder %s19, 1
      %s271 = scalar_select %p270, %s19, 1
      %p272 = scmp.lt.s32.totalorder %s269, 1
      %s273 = scalar_select %p272, %s269, 1
      %s274 = smul.addr %s271, 2
      %s275 = sadd.s32 %s273, %s274
      %s276 = smul.addr %s275, 4
      %s277 = scalar_lea.vmem %s2, %s276
      %s278 = smul.u32 2, %s21
      %s279 = smul.u32 2, %s20
      %p280 = scmp.lt.s32.totalorder %s19, 1
      %s281 = scalar_select %p280, %s19, 1
      %p282 = scmp.lt.s32.totalorder %s279, 1
      %s283 = scalar_select %p282, %s279, 1
      %s284 = smul.addr %s281, 2
      %s285 = sadd.s32 %s283, %s284
      %s286 = smul.addr %s285, 4
      %s287 = scalar_lea.vmem %s3, %s286
      %s288 = smul.u32 2, %s20
      %p290 = scmp.eq.s32.totalorder %s21, 0
      // Predicated region
      $region33: #{bi_unet_forward.18} parent=31 // pred_check
        %p291 = pneg %p290
      $region34: #{bi_unet_forward.18} parent=31 // pred_check_branch
        %293 = sbr.rel (%p291) target = $region36
      $region35: #{bi_unet_forward.18} parent=31 // pred_region
        %vm294 = vcmask 15360
        %295 = vst.msk [vmem:[#allocation2] sm:$0xff] %vm294, -inf
        %296 = vst.msk [vmem:[#allocation2 + $0x8] sm:$0xff] %vm294, -inf
        %297 = vst.msk [vmem:[#allocation3] sm:$0xff] %vm294, 0.0
        %298 = vst.msk [vmem:[#allocation3 + $0x8] sm:$0xff] %vm294, 0.0
        %vm299 = vcmask 261120
        %300 = vst.msk [vmem:[#allocation4] sm:$0xff] %vm299, 0.0
        %301 = vst.msk [vmem:[#allocation4 + $0x8] sm:$0xff] %vm299, 0.0
      $region36: #{bi_unet_forward.18} parent=31 // pred_fallthru
        _
      %v302 = vld [vmem:[%s257] sm:$0xf]
      %v303 = vld [vmem:[%s257 + $0x4] sm:$0xf]
      %v304 = vld [vmem:[%s267] sm:$0xf]
      %v305 = vld [vmem:[%s267 + $0x4] sm:$0xf]
      %v306 = vld [vmem:[%s277] sm:$0xf]
      %v307 = vld [vmem:[%s277 + $0x4] sm:$0xf]
      %v310 = vunpack.c.l.b16 %v302
      %v311 = vunpack.c.l.b16 %v303
      %v312 = vpack.c.b16 %v311, %v310
      %v315 = vunpack.c.l.b16 %v304
      %v316 = vunpack.c.l.b16 %v305
      %v317 = vpack.c.b16 %v316, %v315
      %vm318 = vcmask 130048
      %v320 = vsel %vm318, %v312, 0
      %v323 = vsel %vm318, %v317, 0
      %325 = vmatprep.subr.bf16.mxu0 0
      %326 = vmatpush1.bf16.xpose.msra.mxu0 %v323
      %327 = vmatprep.subr.bf16.mxu0 0
      %328 = vmatpush1.bf16.xpose.msra.mxu0 0
      %329 = vmatprep.subr.bf16.mxu0 0
      %330 = vmatpush1.bf16.xpose.msra.mxu0 0
      %331 = vmatprep.subr.bf16.mxu0 0
      %332 = vmatpush1.bf16.xpose.msra.mxu0 0
      %333 = vmatprep.subr.bf16.mxu0 0
      %334 = vmatpush1.bf16.xpose.msra.mxu0 0
      %335 = vmatprep.subr.bf16.mxu0 0
      %336 = vmatpush1.bf16.xpose.msra.mxu0 0
      %337 = vmatprep.subr.bf16.mxu0 0
      %338 = vmatpush1.bf16.xpose.msra.mxu0 0
      %339 = vmatprep.subr.bf16.mxu0 0
      %340 = vmatpush1.bf16.xpose.msra.mxu0 0
      %341 = vmatprep.subr.bf16.mxu0 0
      %342 = vmatpush1.bf16.xpose.msra.mxu0 0
      %343 = vmatprep.subr.bf16.mxu0 0
      %344 = vmatpush1.bf16.xpose.msra.mxu0 0
      %345 = vmatprep.subr.bf16.mxu0 0
      %346 = vmatpush1.bf16.xpose.msra.mxu0 0
      %347 = vmatprep.subr.bf16.mxu0 0
      %348 = vmatpush1.bf16.xpose.msra.mxu0 0
      %349 = vmatprep.subr.bf16.mxu0 0
      %350 = vmatpush1.bf16.xpose.msra.mxu0 0
      %351 = vmatprep.subr.bf16.mxu0 0
      %352 = vmatpush1.bf16.xpose.msra.mxu0 0
      %353 = vmatprep.subr.bf16.mxu0 0
      %354 = vmatpush1.bf16.xpose.msra.mxu0 0
      %355 = vmatprep.subr.bf16.mxu0 0
      %356 = vmatpush1.bf16.xpose.msra.mxu0 0
      %357 = vmatprep.mubr.bf16.mxu0 0
      %358 = vmatmul.mubr.bf16.gmra.mrb[0].mxu0 %v320
      %v359 = vpop.f32.mrb[0].mxu0
      %v360 = vadd.f32 0.0, %v359
      %v361 = vpop.f32.mrb[0].mxu0
      %v362 = vpop.f32.mrb[0].mxu0
      %v363 = vadd.f32 0.0, %v362
      %v364 = vpop.f32.mrb[0].mxu0
      %365 = vdwg.mxu0
      %v366 = vld [vmem:[#allocation2] sm:$0xff]
      %v367 = vld [vmem:[#allocation2 + $0x8] sm:$0xff]
      %v368 = vsel %vm318, %v360, -inf
      %369 = vmax.xlane.f32.xlu0 %v368
      %v370 = vpop.xlane.xlu0 %369
      %v371 = vsel %vm318, %v363, -inf
      %372 = vmax.xlane.f32.xlu0 %v371
      %v373 = vpop.xlane.xlu0 %372
      %v374 = vmax.f32 %v366, %v370
      %v375 = vmax.f32 %v367, %v373
      %v376 = vsub.f32 %v366, %v374
      %v377 = vsub.f32 %v367, %v375
      %v378 = vmul.f32 %v376, 1.442695
      %v379 = vpow.pop %v378
      %v380 = vmul.f32 %v377, 1.442695
      %v381 = vpow.pop %v380
      %383 = vset.pattern.permute.xlu0 0
      %384 = vperm.xlu0 %383, %v374
      %v385 = vpop.permute.xlu0 %384
      %388 = vset.pattern.permute.xlu0 0
      %389 = vperm.xlu0 %388, %v375
      %v390 = vpop.permute.xlu0 %389
      %v392 = vsub.f32 %v360, %v385
      %v393 = vsub.f32 %v363, %v390
      %v394 = vmul.f32 %v392, 1.442695
      %v395 = vpow.pop %v394
      %v396 = vmul.f32 %v393, 1.442695
      %v397 = vpow.pop %v396
      %v398 = vld [vmem:[#allocation3] sm:$0xff]
      %v399 = vld [vmem:[#allocation3 + $0x8] sm:$0xff]
      %v400 = vmul.f32 %v379, %v398
      %v401 = vmul.f32 %v381, %v399
      %v402 = vsel %vm318, %v395, 0.0
      %403 = vadd.xlane.f32.xlu0 %v402
      %v404 = vpop.xlane.xlu0 %403
      %v405 = vsel %vm318, %v397, 0.0
      %406 = vadd.xlane.f32.xlu0 %v405
      %v407 = vpop.xlane.xlu0 %406
      %v408 = vadd.f32 %v400, %v404
      %v409 = vadd.f32 %v401, %v407
      %vm410 = vcmask 7168
      %411 = vst.msk [vmem:[#allocation3] sm:$0xff] %vm410, %v408
      %412 = vst.msk [vmem:[#allocation3 + $0x8] sm:$0xff] %vm410, %v409
      %v413 = vpack.c.bf16 %v397, %v395
      %v416 = vunpack.c.l.b16 %v306
      %v417 = vunpack.c.l.b16 %v307
      %v418 = vpack.c.b16 %v417, %v416
      %v421 = vsel %vm318, %v413, 0
      %423 = vmatprep.subr.bf16.mxu0 0
      %424 = vmatpush1.bf16.msra.mxu0 %v418
      %425 = vmatprep.subr.bf16.mxu0 0
      %426 = vmatpush1.bf16.msra.mxu0 0
      %427 = vmatprep.subr.bf16.mxu0 0
      %428 = vmatpush1.bf16.msra.mxu0 0
      %429 = vmatprep.subr.bf16.mxu0 0
      %430 = vmatpush1.bf16.msra.mxu0 0
      %431 = vmatprep.subr.bf16.mxu0 0
      %432 = vmatpush1.bf16.msra.mxu0 0
      %433 = vmatprep.subr.bf16.mxu0 0
      %434 = vmatpush1.bf16.msra.mxu0 0
      %435 = vmatprep.subr.bf16.mxu0 0
      %436 = vmatpush1.bf16.msra.mxu0 0
      %437 = vmatprep.subr.bf16.mxu0 0
      %438 = vmatpush1.bf16.msra.mxu0 0
      %439 = vmatprep.subr.bf16.mxu0 0
      %440 = vmatpush1.bf16.msra.mxu0 0
      %441 = vmatprep.subr.bf16.mxu0 0
      %442 = vmatpush1.bf16.msra.mxu0 0
      %443 = vmatprep.subr.bf16.mxu0 0
      %444 = vmatpush1.bf16.msra.mxu0 0
      %445 = vmatprep.subr.bf16.mxu0 0
      %446 = vmatpush1.bf16.msra.mxu0 0
      %447 = vmatprep.subr.bf16.mxu0 0
      %448 = vmatpush1.bf16.msra.mxu0 0
      %449 = vmatprep.subr.bf16.mxu0 0
      %450 = vmatpush1.bf16.msra.mxu0 0
      %451 = vmatprep.subr.bf16.mxu0 0
      %452 = vmatpush1.bf16.msra.mxu0 0
      %453 = vmatprep.subr.bf16.mxu0 0
      %454 = vmatpush1.bf16.msra.mxu0 0
      %455 = vmatprep.mubr.bf16.mxu0 0
      %456 = vmatmul.mubr.bf16.gmra.mrb[0].mxu0 %v421
      %v457 = vpop.f32.mrb[0].mxu0
      %v458 = vadd.f32 0.0, %v457
      %v459 = vpop.f32.mrb[0].mxu0
      %v460 = vpop.f32.mrb[0].mxu0
      %v461 = vadd.f32 0.0, %v460
      %v462 = vpop.f32.mrb[0].mxu0
      %463 = vdwg.mxu0
      %v464 = vld [vmem:[#allocation4] sm:$0xff]
      %v465 = vld [vmem:[#allocation4 + $0x8] sm:$0xff]
      %467 = vset.pattern.permute.xlu0 0
      %468 = vperm.xlu0 %467, %v379
      %v469 = vpop.permute.xlu0 %468
      %472 = vset.pattern.permute.xlu0 0
      %473 = vperm.xlu0 %472, %v381
      %v474 = vpop.permute.xlu0 %473
      %v476 = vmul.f32 %v469, %v464
      %v477 = vmul.f32 %v474, %v465
      %v478 = vadd.f32 %v476, %v458
      %v479 = vadd.f32 %v477, %v461
      %480 = vst.msk [vmem:[#allocation4] sm:$0xff] %vm318, %v478
      %481 = vst.msk [vmem:[#allocation4 + $0x8] sm:$0xff] %vm318, %v479
      %482 = vst.msk [vmem:[#allocation2] sm:$0xff] %vm410, %v374
      %483 = vst.msk [vmem:[#allocation2 + $0x8] sm:$0xff] %vm410, %v375
      %484 = vrot.lane.b32.xlu0 %v312, 112
      %v485 = vpop.permute.xlu0 %484
      %486 = vrot.lane.b32.xlu0 %v317, 112
      %v487 = vpop.permute.xlu0 %486
      %v489 = vsel %vm318, %v485, 0
      %v492 = vsel %vm318, %v487, 0
      %494 = vmatprep.subr.bf16.mxu0 0
      %495 = vmatpush1.bf16.xpose.msra.mxu0 %v492
      %496 = vmatprep.subr.bf16.mxu0 0
      %497 = vmatpush1.bf16.xpose.msra.mxu0 0
      %498 = vmatprep.subr.bf16.mxu0 0
      %499 = vmatpush1.bf16.xpose.msra.mxu0 0
      %500 = vmatprep.subr.bf16.mxu0 0
      %501 = vmatpush1.bf16.xpose.msra.mxu0 0
      %502 = vmatprep.subr.bf16.mxu0 0
      %503 = vmatpush1.bf16.xpose.msra.mxu0 0
      %504 = vmatprep.subr.bf16.mxu0 0
      %505 = vmatpush1.bf16.xpose.msra.mxu0 0
      %506 = vmatprep.subr.bf16.mxu0 0
      %507 = vmatpush1.bf16.xpose.msra.mxu0 0
      %508 = vmatprep.subr.bf16.mxu0 0
      %509 = vmatpush1.bf16.xpose.msra.mxu0 0
      %510 = vmatprep.subr.bf16.mxu0 0
      %511 = vmatpush1.bf16.xpose.msra.mxu0 0
      %512 = vmatprep.subr.bf16.mxu0 0
      %513 = vmatpush1.bf16.xpose.msra.mxu0 0
      %514 = vmatprep.subr.bf16.mxu0 0
      %515 = vmatpush1.bf16.xpose.msra.mxu0 0
      %516 = vmatprep.subr.bf16.mxu0 0
      %517 = vmatpush1.bf16.xpose.msra.mxu0 0
      %518 = vmatprep.subr.bf16.mxu0 0
      %519 = vmatpush1.bf16.xpose.msra.mxu0 0
      %520 = vmatprep.subr.bf16.mxu0 0
      %521 = vmatpush1.bf16.xpose.msra.mxu0 0
      %522 = vmatprep.subr.bf16.mxu0 0
      %523 = vmatpush1.bf16.xpose.msra.mxu0 0
      %524 = vmatprep.subr.bf16.mxu0 0
      %525 = vmatpush1.bf16.xpose.msra.mxu0 0
      %526 = vmatprep.mubr.bf16.mxu0 0
      %527 = vmatmul.mubr.bf16.gmra.mrb[0].mxu0 %v489
      %v528 = vpop.f32.mrb[0].mxu0
      %v529 = vadd.f32 0.0, %v528
      %v530 = vpop.f32.mrb[0].mxu0
      %v531 = vpop.f32.mrb[0].mxu0
      %v532 = vadd.f32 0.0, %v531
      %v533 = vpop.f32.mrb[0].mxu0
      %534 = vdwg.mxu0
      %v535 = vld [vmem:[#allocation2] sm:$0xff]
      %v536 = vld [vmem:[#allocation2 + $0x8] sm:$0xff]
      %v537 = vsel %vm318, %v529, -inf
      %538 = vmax.xlane.f32.xlu0 %v537
      %v539 = vpop.xlane.xlu0 %538
      %v540 = vsel %vm318, %v532, -inf
      %541 = vmax.xlane.f32.xlu0 %v540
      %v542 = vpop.xlane.xlu0 %541
      %v543 = vmax.f32 %v535, %v539
      %v544 = vmax.f32 %v536, %v542
      %v545 = vsub.f32 %v535, %v543
      %v546 = vsub.f32 %v536, %v544
      %v547 = vmul.f32 %v545, 1.442695
      %v548 = vpow.pop %v547
      %v549 = vmul.f32 %v546, 1.442695
      %v550 = vpow.pop %v549
      %552 = vset.pattern.permute.xlu0 1
      %553 = vperm.xlu0 %552, %v543
      %v554 = vpop.permute.xlu0 %553
      %557 = vset.pattern.permute.xlu0 1
      %558 = vperm.xlu0 %557, %v544
      %v559 = vpop.permute.xlu0 %558
      %v561 = vsub.f32 %v529, %v554
      %v562 = vsub.f32 %v532, %v559
      %v563 = vmul.f32 %v561, 1.442695
      %v564 = vpow.pop %v563
      %v565 = vmul.f32 %v562, 1.442695
      %v566 = vpow.pop %v565
      %v567 = vld [vmem:[#allocation3] sm:$0xff]
      %v568 = vld [vmem:[#allocation3 + $0x8] sm:$0xff]
      %v569 = vmul.f32 %v548, %v567
      %v570 = vmul.f32 %v550, %v568
      %v571 = vsel %vm318, %v564, 0.0
      %572 = vadd.xlane.f32.xlu0 %v571
      %v573 = vpop.xlane.xlu0 %572
      %v574 = vsel %vm318, %v566, 0.0
      %575 = vadd.xlane.f32.xlu0 %v574
      %v576 = vpop.xlane.xlu0 %575
      %v577 = vadd.f32 %v569, %v573
      %v578 = vadd.f32 %v570, %v576
      %vm579 = vcmask 15368
      %580 = vst.msk [vmem:[#allocation3] sm:$0xff] %vm579, %v577
      %581 = vst.msk [vmem:[#allocation3 + $0x8] sm:$0xff] %vm579, %v578
      %v582 = vpack.c.bf16 %v566, %v564
      %583 = vrot.lane.b32.xlu0 %v418, 112
      %v584 = vpop.permute.xlu0 %583
      %v587 = vsel %vm318, %v582, 0
      %589 = vmatprep.subr.bf16.mxu0 0
      %590 = vmatpush1.bf16.msra.mxu0 %v584
      %591 = vmatprep.subr.bf16.mxu0 0
      %592 = vmatpush1.bf16.msra.mxu0 0
      %593 = vmatprep.subr.bf16.mxu0 0
      %594 = vmatpush1.bf16.msra.mxu0 0
      %595 = vmatprep.subr.bf16.mxu0 0
      %596 = vmatpush1.bf16.msra.mxu0 0
      %597 = vmatprep.subr.bf16.mxu0 0
      %598 = vmatpush1.bf16.msra.mxu0 0
      %599 = vmatprep.subr.bf16.mxu0 0
      %600 = vmatpush1.bf16.msra.mxu0 0
      %601 = vmatprep.subr.bf16.mxu0 0
      %602 = vmatpush1.bf16.msra.mxu0 0
      %603 = vmatprep.subr.bf16.mxu0 0
      %604 = vmatpush1.bf16.msra.mxu0 0
      %605 = vmatprep.subr.bf16.mxu0 0
      %606 = vmatpush1.bf16.msra.mxu0 0
      %607 = vmatprep.subr.bf16.mxu0 0
      %608 = vmatpush1.bf16.msra.mxu0 0
      %609 = vmatprep.subr.bf16.mxu0 0
      %610 = vmatpush1.bf16.msra.mxu0 0
      %611 = vmatprep.subr.bf16.mxu0 0
      %612 = vmatpush1.bf16.msra.mxu0 0
      %613 = vmatprep.subr.bf16.mxu0 0
      %614 = vmatpush1.bf16.msra.mxu0 0
      %615 = vmatprep.subr.bf16.mxu0 0
      %616 = vmatpush1.bf16.msra.mxu0 0
      %617 = vmatprep.subr.bf16.mxu0 0
      %618 = vmatpush1.bf16.msra.mxu0 0
      %619 = vmatprep.subr.bf16.mxu0 0
      %620 = vmatpush1.bf16.msra.mxu0 0
      %621 = vmatprep.mubr.bf16.mxu0 0
      %622 = vmatmul.mubr.bf16.gmra.mrb[0].mxu0 %v587
      %v623 = vpop.f32.mrb[0].mxu0
      %v624 = vadd.f32 0.0, %v623
      %v625 = vpop.f32.mrb[0].mxu0
      %v626 = vpop.f32.mrb[0].mxu0
      %v627 = vadd.f32 0.0, %v626
      %v628 = vpop.f32.mrb[0].mxu0
      %629 = vdwg.mxu0
      %v630 = vld [vmem:[#allocation4] sm:$0xff]
      %v631 = vld [vmem:[#allocation4 + $0x8] sm:$0xff]
      %633 = vset.pattern.permute.xlu0 1
      %634 = vperm.xlu0 %633, %v548
      %v635 = vpop.permute.xlu0 %634
      %638 = vset.pattern.permute.xlu0 1
      %639 = vperm.xlu0 %638, %v550
      %v640 = vpop.permute.xlu0 %639
      %v642 = vmul.f32 %v635, %v630
      %v643 = vmul.f32 %v640, %v631
      %646 = vrot.lane.b32.xlu0 %v624, 16
      %v647 = vpop.permute.xlu0 %646
      %648 = vrot.lane.b32.xlu0 %v627, 16
      %v649 = vpop.permute.xlu0 %648
      %v652 = vadd.f32 %v642, %v647
      %v653 = vadd.f32 %v643, %v649
      %vm654 = vcmask 261248
      %655 = vst.msk [vmem:[#allocation4] sm:$0xff] %vm654, %v652
      %656 = vst.msk [vmem:[#allocation4 + $0x8] sm:$0xff] %vm654, %v653
      %657 = vst.msk [vmem:[#allocation2] sm:$0xff] %vm579, %v543
      %658 = vst.msk [vmem:[#allocation2 + $0x8] sm:$0xff] %vm579, %v544
      // Predicated region
      $region37: #{bi_unet_forward.18} parent=31 // pred_check
        %p659 = pneg %p290
      $region38: #{bi_unet_forward.18} parent=31 // pred_check_branch
        %661 = sbr.rel (%p659) target = $region40
      $region39: #{bi_unet_forward.18} parent=31 // pred_region
        %v662 = vld [vmem:[#allocation3] sm:$0xff]
        %v663 = vld [vmem:[#allocation3 + $0x8] sm:$0xff]
        %v664 = vrcp.pop %v662
        %v665 = vrcp.pop %v663
        %v666 = vld [vmem:[#allocation4] sm:$0xff]
        %v667 = vld [vmem:[#allocation4 + $0x8] sm:$0xff]
        %669 = vset.pattern.permute.xlu0 0
        %670 = vperm.xlu0 %669, %v664
        %v671 = vpop.permute.xlu0 %670
        %674 = vset.pattern.permute.xlu0 0
        %675 = vperm.xlu0 %674, %v665
        %v676 = vpop.permute.xlu0 %675
        %v678 = vmul.f32 %v666, %v671
        %v679 = vmul.f32 %v667, %v676
        %680 = vst.msk [vmem:[#allocation4] sm:$0xff] %vm318, %v678
        %681 = vst.msk [vmem:[#allocation4 + $0x8] sm:$0xff] %vm318, %v679
        %v682 = vld [vmem:[#allocation4] sm:$0xff]
        %v683 = vld [vmem:[#allocation4 + $0x8] sm:$0xff]
        %684 = vset.pattern.permute.xlu0 1
        %685 = vperm.xlu0 %684, %v664
        %v686 = vpop.permute.xlu0 %685
        %688 = vset.pattern.permute.xlu0 1
        %689 = vperm.xlu0 %688, %v665
        %v690 = vpop.permute.xlu0 %689
        %v692 = vmul.f32 %v682, %v686
        %v693 = vmul.f32 %v683, %v690
        %694 = vst.msk [vmem:[#allocation4] sm:$0xff] %vm654, %v692
        %695 = vst.msk [vmem:[#allocation4 + $0x8] sm:$0xff] %vm654, %v693
        %v696 = vld [vmem:[#allocation4] sm:$0xff]
        %v697 = vld [vmem:[#allocation4 + $0x8] sm:$0xff]
        %v698 = vpack.c.bf16 %v697, %v696
        %v700 = vunpack.c.l.b16 %v698
        %v701 = vunpack.c.h.b16 %v698
        %v702 = vpack.c.b16 %v700, %v700
        %v703 = vpack.c.b16 %v701, %v701
        %vm706 = vcmask 257024
        %707 = vst.msk [vmem:[%s287] sm:$0xf] %vm706, %v702
        %708 = vst.msk [vmem:[%s287 + $0x4] sm:$0xf] %vm706, %v703
      $region40: #{bi_unet_forward.18} parent=31 // pred_fallthru
        _
      %s709 = smul.u32 2, %s20
      %p710 = scmp.lt.s32.totalorder %s19, 1
      %s711 = scalar_select %p710, %s19, 1
      %p712 = scmp.lt.s32.totalorder %s709, 1
      %s713 = scalar_select %p712, %s709, 1
      %s714 = smul.addr %s711, 2
      %s715 = sadd.s32 %s713, %s714
      %s716 = smul.addr %s715, 4
      %s717 = scalar_lea.vmem %s3, %s716
      // Predicated region
      $region41: #{bi_unet_forward.18} parent=31 // pred_check
        %p718 = pneg %p137
      $region42: #{bi_unet_forward.18} parent=31 // pred_check_branch
        %720 = sbr.rel (%p718) target = $region44
      $region43: #{bi_unet_forward.18} parent=31 // pred_region
        %s721 = smul.u32 2, %s20
      $region44: #{bi_unet_forward.18} parent=31 // pred_fallthru
        _
    $region32: #{bi_unet_forward.18} parent=5 // pred_fallthru
      _
    %p722 = scmp.le.s32.totalorder 2, %s9
    // Predicated region
    $region45: #{bi_unet_forward.18} parent=5 // pred_check
      %p723 = pneg %p722
    $region46: #{bi_unet_forward.18} parent=5 // pred_check_branch
      %725 = sbr.rel (%p723) target = $region48
    $region47: #{bi_unet_forward.18} parent=5 // pred_region
      %s726 = ssub.s32 %s9, 2
      // Predicated region
      $region49: #{bi_unet_forward.18} parent=47 // pred_check
        %p727 = pneg %p143
      $region50: #{bi_unet_forward.18} parent=47 // pred_check_branch
        %729 = sbr.rel (%p727) target = $region52
      $region51: #{bi_unet_forward.18} parent=47 // pred_region
        %s730 = smul.u32 2, %s23
        %p731 = scmp.lt.s32.totalorder %s22, 1
        %s732 = scalar_select %p731, %s22, 1
        %p733 = scmp.lt.s32.totalorder %s730, 1
        %s734 = scalar_select %p733, %s730, 1
        %s735 = smul.addr %s732, 2
        %s736 = sadd.s32 %s734, %s735
        %s737 = smul.addr %s736, 4
        %s738 = scalar_lea.vmem %s3, %s737
      $region52: #{bi_unet_forward.18} parent=47 // pred_fallthru
        _
    $region48: #{bi_unet_forward.18} parent=5 // pred_fallthru
      _
  $region6: #{bi_unet_forward.18} parent=0 // loop_footer
    %s13 = sadd.s32 1, %s9
  $region7: #{bi_unet_forward.18} parent=0 // loop_footer_branch
    %8 = sbr.rel target = $region3
  $region8: #{bi_unet_forward.18} parent=0 // loop_exit
    _

// kernel: bi_unet_forward.17
$region0: #{bi_unet_forward.17}
  #allocation0 [shape = 'u32[]', space=smem, size = 0x4, offset = 0x4, fixed_abs, tag = 'smem constant byte address 0x4 - core index']
  #allocation1 [shape = 'u32[144,128]{1,0:T(1,128)}', space=vmem, size = 0x12000, scoped, tag = 'internal scratch']
  %s0 = inlined_call_operand.vmem [shape: bf16[32,32], index: 0, kind: input, shape index: {}]
  %s1 = inlined_call_operand.vmem [shape: f32[1,32], index: 1, kind: input, shape index: {}]
  %s2 = inlined_call_operand.vmem [shape: f32[1,32], index: 2, kind: input, shape index: {}]
  %s3 = inlined_call_operand.vmem [shape: bf16[32,32], index: 3, kind: input, shape index: {}]
  %s4 = inlined_call_operand.vmem [shape: f32[1,32], index: 4, kind: input, shape index: {}]
  %s5 = inlined_call_operand.vmem [shape: bf16[32,32], index: 5, kind: input, shape index: {}]
  %s6 = inlined_call_operand.vmem [shape: f32[1,32], index: 6, kind: input, shape index: {}]
  %s7 = inlined_call_operand.vmem [shape: bf16[32,32], index: 7, kind: input, shape index: {}]
  %s8 = inlined_call_operand.vmem [shape: f32[1,32], index: 8, kind: input, shape index: {}]
  %s9 = inlined_call_operand.vmem [shape: bf16[32,32], index: 9, kind: output, shape index: {0}]
  %s10 = inlined_call_operand.vmem [shape: bf16[32,32], index: 10, kind: output, shape index: {1}]
  %s11 = inlined_call_operand.vmem [shape: bf16[32,32], index: 11, kind: output, shape index: {2}]
  %12 = xla_tuple %s9, %s10, %s11
  %s13 = sld [smem:[#allocation0]]
  $region62: #{bi_unet_forward.17} parent=0
    _
  %s15 = ssub.s32 1, %s13
  %s16 = scalar_select 0, %s15, %s13
  // Predicated region
  $region2: #{bi_unet_forward.17} parent=0 // pred_check
    _
  $region3: #{bi_unet_forward.17} parent=0 // pred_check_branch
    %18 = sbr.rel (0) target = $region5
  $region4: #{bi_unet_forward.17} parent=0 // pred_region
    _
  $region5: #{bi_unet_forward.17} parent=0 // pred_fallthru
    _
  // Predicated region
  $region6: #{bi_unet_forward.17} parent=0 // pred_check
    _
  $region7: #{bi_unet_forward.17} parent=0 // pred_check_branch
    %20 = sbr.rel (0) target = $region9
  $region8: #{bi_unet_forward.17} parent=0 // pred_region
    _
  $region9: #{bi_unet_forward.17} parent=0 // pred_fallthru
    _
  // Predicated region
  $region10: #{bi_unet_forward.17} parent=0 // pred_check
    _
  $region11: #{bi_unet_forward.17} parent=0 // pred_check_branch
    %22 = sbr.rel (0) target = $region13
  $region12: #{bi_unet_forward.17} parent=0 // pred_region
    _
  $region13: #{bi_unet_forward.17} parent=0 // pred_fallthru
    _
  // Predicated region
  $region14: #{bi_unet_forward.17} parent=0 // pred_check
    _
  $region15: #{bi_unet_forward.17} parent=0 // pred_check_branch
    %24 = sbr.rel (0) target = $region17
  $region16: #{bi_unet_forward.17} parent=0 // pred_region
    _
  $region17: #{bi_unet_forward.17} parent=0 // pred_fallthru
    _
  // Predicated region
  $region18: #{bi_unet_forward.17} parent=0 // pred_check
    _
  $region19: #{bi_unet_forward.17} parent=0 // pred_check_branch
    %26 = sbr.rel (0) target = $region21
  $region20: #{bi_unet_forward.17} parent=0 // pred_region
    _
  $region21: #{bi_unet_forward.17} parent=0 // pred_fallthru
    _
  // Predicated region
  $region22: #{bi_unet_forward.17} parent=0 // pred_check
    _
  $region23: #{bi_unet_forward.17} parent=0 // pred_check_branch
    %28 = sbr.rel (0) target = $region25
  $region24: #{bi_unet_forward.17} parent=0 // pred_region
    _
  $region25: #{bi_unet_forward.17} parent=0 // pred_fallthru
    _
  // Predicated region
  $region26: #{bi_unet_forward.17} parent=0 // pred_check
    _
  $region27: #{bi_unet_forward.17} parent=0 // pred_check_branch
    %30 = sbr.rel (0) target = $region29
  $region28: #{bi_unet_forward.17} parent=0 // pred_region
    _
  $region29: #{bi_unet_forward.17} parent=0 // pred_fallthru
    _
  // Predicated region
  $region30: #{bi_unet_forward.17} parent=0 // pred_check
    _
  $region31: #{bi_unet_forward.17} parent=0 // pred_check_branch
    %32 = sbr.rel (0) target = $region33
  $region32: #{bi_unet_forward.17} parent=0 // pred_region
    _
  $region33: #{bi_unet_forward.17} parent=0 // pred_fallthru
    _
  // Predicated region
  $region34: #{bi_unet_forward.17} parent=0 // pred_check
    _
  $region35: #{bi_unet_forward.17} parent=0 // pred_check_branch
    %34 = sbr.rel (0) target = $region37
  $region36: #{bi_unet_forward.17} parent=0 // pred_region
    _
  $region37: #{bi_unet_forward.17} parent=0 // pred_fallthru
    _
  %v36 = vld [vmem:[%s0] sm:$0xf]
  %v37 = vld [vmem:[%s0 + $0x4] sm:$0xf]
  %v38 = vld [vmem:[%s0 + $0x8] sm:$0xf]
  %v39 = vld [vmem:[%s0 + $0xc] sm:$0xf]
  %v40 = vunpack.c.l.bf16 %v36
  %v41 = vunpack.c.l.bf16 %v37
  %v42 = vunpack.c.l.bf16 %v38
  %v43 = vunpack.c.l.bf16 %v39
  %vm44 = vcmask 261120
  %v45 = vsel %vm44, %v40, 0.0
  %46 = vadd.xlane.f32.xlu0 %v45
  %v47 = vpop.xlane.xlu0 %46
  %v48 = vsel %vm44, %v41, 0.0
  %49 = vadd.xlane.f32.xlu0 %v48
  %v50 = vpop.xlane.xlu0 %49
  %v51 = vsel %vm44, %v42, 0.0
  %52 = vadd.xlane.f32.xlu0 %v51
  %v53 = vpop.xlane.xlu0 %52
  %v54 = vsel %vm44, %v43, 0.0
  %55 = vadd.xlane.f32.xlu0 %v54
  %v56 = vpop.xlane.xlu0 %55
  %v57 = vrcp.pop 32.0
  %v58 = vmul.f32 %v47, %v57
  %v59 = vmul.f32 %v50, %v57
  %v60 = vmul.f32 %v53, %v57
  %v61 = vmul.f32 %v56, %v57
  %v62 = vsub.f32 %v40, %v58
  %v63 = vsub.f32 %v41, %v59
  %v64 = vsub.f32 %v42, %v60
  %v65 = vsub.f32 %v43, %v61
  %v66 = vmul.f32 %v62, %v62
  %v67 = vmul.f32 %v63, %v63
  %v68 = vmul.f32 %v64, %v64
  %v69 = vmul.f32 %v65, %v65
  %v70 = vsel %vm44, %v66, 0.0
  %71 = vadd.xlane.f32.xlu0 %v70
  %v72 = vpop.xlane.xlu0 %71
  %v73 = vsel %vm44, %v67, 0.0
  %74 = vadd.xlane.f32.xlu0 %v73
  %v75 = vpop.xlane.xlu0 %74
  %v76 = vsel %vm44, %v68, 0.0
  %77 = vadd.xlane.f32.xlu0 %v76
  %v78 = vpop.xlane.xlu0 %77
  %v79 = vsel %vm44, %v69, 0.0
  %80 = vadd.xlane.f32.xlu0 %v79
  %v81 = vpop.xlane.xlu0 %80
  %v82 = vmul.f32 %v72, %v57
  %v83 = vmul.f32 %v75, %v57
  %v84 = vmul.f32 %v78, %v57
  %v85 = vmul.f32 %v81, %v57
  %v86 = vadd.f32 %v82, 1e-05
  %v87 = vadd.f32 %v83, 1e-05
  %v88 = vadd.f32 %v84, 1e-05
  %v89 = vadd.f32 %v85, 1e-05
  %v90 = vrsqrt.pop %v86
  %v91 = vrsqrt.pop %v87
  %v92 = vrsqrt.pop %v88
  %v93 = vrsqrt.pop %v89
  %v94 = vmul.f32 %v62, %v90
  %v95 = vmul.f32 %v63, %v91
  %v96 = vmul.f32 %v64, %v92
  %v97 = vmul.f32 %v65, %v93
  %v98 = vld [vmem:[%s1] sm:$0x1]
  %v100 = vlaneseq
  %v101 = vshrl.u32 %v100, 7
  %v102 = vsub.s32 0, %v101
  %v103 = vrot.slane %v98, %v102
  %v105 = vmul.f32 %v94, %v103
  %v106 = vmul.f32 %v95, %v103
  %v107 = vmul.f32 %v96, %v103
  %v108 = vmul.f32 %v97, %v103
  %v109 = vld [vmem:[%s2] sm:$0x1]
  %v111 = vlaneseq
  %v112 = vshrl.u32 %v111, 7
  %v113 = vsub.s32 0, %v112
  %v114 = vrot.slane %v109, %v113
  %v116 = vadd.f32 %v105, %v114
  %v117 = vadd.f32 %v106, %v114
  %v118 = vadd.f32 %v107, %v114
  %v119 = vadd.f32 %v108, %v114
  %v120 = vpack.c.bf16 %v117, %v116
  %v121 = vpack.c.bf16 %v119, %v118
  %v122 = vld [vmem:[%s3] sm:$0xf]
  %v123 = vld [vmem:[%s3 + $0x4] sm:$0xf]
  %v124 = vld [vmem:[%s3 + $0x8] sm:$0xf]
  %v125 = vld [vmem:[%s3 + $0xc] sm:$0xf]
  %v126 = vld [vmem:[%s4] sm:$0x1]
  %v128 = vlaneseq
  %v129 = vshrl.u32 %v128, 7
  %v130 = vsub.s32 0, %v129
  %v131 = vrot.slane %v126, %v130
  %v137 = vunpack.c.l.b16 %v122
  %v138 = vunpack.c.l.b16 %v123
  %v139 = vunpack.c.l.b16 %v124
  %v140 = vunpack.c.l.b16 %v125
  %v141 = vpack.c.b16 %v138, %v137
  %v142 = vpack.c.b16 %v140, %v139
  %v146 = vsel %vm44, %v120, 0
  %v149 = vsel %vm44, %v121, 0
  %151 = vmatprep.subr.bf16.mxu0 0
  %152 = vmatpush1.bf16.msra.mxu0 %v141
  %153 = vmatprep.subr.bf16.mxu0 0
  %154 = vmatpush1.bf16.msra.mxu0 %v142
  %155 = vmatprep.subr.bf16.mxu0 0
  %156 = vmatpush1.bf16.msra.mxu0 0
  %157 = vmatprep.subr.bf16.mxu0 0
  %158 = vmatpush1.bf16.msra.mxu0 0
  %159 = vmatprep.subr.bf16.mxu0 0
  %160 = vmatpush1.bf16.msra.mxu0 0
  %161 = vmatprep.subr.bf16.mxu0 0
  %162 = vmatpush1.bf16.msra.mxu0 0
  %163 = vmatprep.subr.bf16.mxu0 0
  %164 = vmatpush1.bf16.msra.mxu0 0
  %165 = vmatprep.subr.bf16.mxu0 0
  %166 = vmatpush1.bf16.msra.mxu0 0
  %167 = vmatprep.subr.bf16.mxu0 0
  %168 = vmatpush1.bf16.msra.mxu0 0
  %169 = vmatprep.subr.bf16.mxu0 0
  %170 = vmatpush1.bf16.msra.mxu0 0
  %171 = vmatprep.subr.bf16.mxu0 0
  %172 = vmatpush1.bf16.msra.mxu0 0
  %173 = vmatprep.subr.bf16.mxu0 0
  %174 = vmatpush1.bf16.msra.mxu0 0
  %175 = vmatprep.subr.bf16.mxu0 0
  %176 = vmatpush1.bf16.msra.mxu0 0
  %177 = vmatprep.subr.bf16.mxu0 0
  %178 = vmatpush1.bf16.msra.mxu0 0
  %179 = vmatprep.subr.bf16.mxu0 0
  %180 = vmatpush1.bf16.msra.mxu0 0
  %181 = vmatprep.subr.bf16.mxu0 0
  %182 = vmatpush1.bf16.msra.mxu0 0
  %183 = vmatprep.mubr.bf16.mxu0 0
  %184 = vmatmul.mubr.bf16.gmra.mrb[0].mxu0 %v146
  %v185 = vpop.f32.mrb[0].mxu0
  %v186 = vadd.f32 %v131, %v185
  %v187 = vpop.f32.mrb[0].mxu0
  %v188 = vpop.f32.mrb[0].mxu0
  %v189 = vadd.f32 %v131, %v188
  %v190 = vpop.f32.mrb[0].mxu0
  %191 = vmatprep.mubr.bf16.mxu0 0
  %192 = vmatmul.mubr.bf16.gmra.mrb[0].mxu0 %v149
  %v193 = vpop.f32.mrb[0].mxu0
  %v194 = vadd.f32 %v131, %v193
  %v195 = vpop.f32.mrb[0].mxu0
  %v196 = vpop.f32.mrb[0].mxu0
  %v197 = vadd.f32 %v131, %v196
  %v198 = vpop.f32.mrb[0].mxu0
  %199 = vdwg.mxu0
  %v200 = vld [vmem:[%s5] sm:$0xf]
  %v201 = vld [vmem:[%s5 + $0x4] sm:$0xf]
  %v202 = vld [vmem:[%s5 + $0x8] sm:$0xf]
  %v203 = vld [vmem:[%s5 + $0xc] sm:$0xf]
  %v204 = vld [vmem:[%s6] sm:$0x1]
  %v206 = vlaneseq
  %v207 = vshrl.u32 %v206, 7
  %v208 = vsub.s32 0, %v207
  %v209 = vrot.slane %v204, %v208
  %v215 = vunpack.c.l.b16 %v200
  %v216 = vunpack.c.l.b16 %v201
  %v217 = vunpack.c.l.b16 %v202
  %v218 = vunpack.c.l.b16 %v203
  %v219 = vpack.c.b16 %v216, %v215
  %v220 = vpack.c.b16 %v218, %v217
  %223 = vmatprep.subr.bf16.mxu0 0
  %224 = vmatpush1.bf16.msra.mxu0 %v219
  %225 = vmatprep.subr.bf16.mxu0 0
  %226 = vmatpush1.bf16.msra.mxu0 %v220
  %227 = vmatprep.subr.bf16.mxu0 0
  %228 = vmatpush1.bf16.msra.mxu0 0
  %229 = vmatprep.subr.bf16.mxu0 0
  %230 = vmatpush1.bf16.msra.mxu0 0
  %231 = vmatprep.subr.bf16.mxu0 0
  %232 = vmatpush1.bf16.msra.mxu0 0
  %233 = vmatprep.subr.bf16.mxu0 0
  %234 = vmatpush1.bf16.msra.mxu0 0
  %235 = vmatprep.subr.bf16.mxu0 0
  %236 = vmatpush1.bf16.msra.mxu0 0
  %237 = vmatprep.subr.bf16.mxu0 0
  %238 = vmatpush1.bf16.msra.mxu0 0
  %239 = vmatprep.subr.bf16.mxu0 0
  %240 = vmatpush1.bf16.msra.mxu0 0
  %241 = vmatprep.subr.bf16.mxu0 0
  %242 = vmatpush1.bf16.msra.mxu0 0
  %243 = vmatprep.subr.bf16.mxu0 0
  %244 = vmatpush1.bf16.msra.mxu0 0
  %245 = vmatprep.subr.bf16.mxu0 0
  %246 = vmatpush1.bf16.msra.mxu0 0
  %247 = vmatprep.subr.bf16.mxu0 0
  %248 = vmatpush1.bf16.msra.mxu0 0
  %249 = vmatprep.subr.bf16.mxu0 0
  %250 = vmatpush1.bf16.msra.mxu0 0
  %251 = vmatprep.subr.bf16.mxu0 0
  %252 = vmatpush1.bf16.msra.mxu0 0
  %253 = vmatprep.subr.bf16.mxu0 0
  %254 = vmatpush1.bf16.msra.mxu0 0
  %255 = vmatprep.mubr.bf16.mxu0 0
  %256 = vmatmul.mubr.bf16.gmra.mrb[0].mxu0 %v146
  %v257 = vpop.f32.mrb[0].mxu0
  %v258 = vadd.f32 %v209, %v257
  %v259 = vpop.f32.mrb[0].mxu0
  %v260 = vpop.f32.mrb[0].mxu0
  %v261 = vadd.f32 %v209, %v260
  %v262 = vpop.f32.mrb[0].mxu0
  %263 = vmatprep.mubr.bf16.mxu0 0
  %264 = vmatmul.mubr.bf16.gmra.mrb[0].mxu0 %v149
  %v265 = vpop.f32.mrb[0].mxu0
  %v266 = vadd.f32 %v209, %v265
  %v267 = vpop.f32.mrb[0].mxu0
  %v268 = vpop.f32.mrb[0].mxu0
  %v269 = vadd.f32 %v209, %v268
  %v270 = vpop.f32.mrb[0].mxu0
  %271 = vdwg.mxu0
  %v272 = vld [vmem:[%s7] sm:$0xf]
  %v273 = vld [vmem:[%s7 + $0x4] sm:$0xf]
  %v274 = vld [vmem:[%s7 + $0x8] sm:$0xf]
  %v275 = vld [vmem:[%s7 + $0xc] sm:$0xf]
  %v276 = vld [vmem:[%s8] sm:$0x1]
  %v278 = vlaneseq
  %v279 = vshrl.u32 %v278, 7
  %v280 = vsub.s32 0, %v279
  %v281 = vrot.slane %v276, %v280
  %v287 = vunpack.c.l.b16 %v272
  %v288 = vunpack.c.l.b16 %v273
  %v289 = vunpack.c.l.b16 %v274
  %v290 = vunpack.c.l.b16 %v275
  %v291 = vpack.c.b16 %v288, %v287
  %v292 = vpack.c.b16 %v290, %v289
  %295 = vmatprep.subr.bf16.mxu0 0
  %296 = vmatpush1.bf16.msra.mxu0 %v291
  %297 = vmatprep.subr.bf16.mxu0 0
  %298 = vmatpush1.bf16.msra.mxu0 %v292
  %299 = vmatprep.subr.bf16.mxu0 0
  %300 = vmatpush1.bf16.msra.mxu0 0
  %301 = vmatprep.subr.bf16.mxu0 0
  %302 = vmatpush1.bf16.msra.mxu0 0
  %303 = vmatprep.subr.bf16.mxu0 0
  %304 = vmatpush1.bf16.msra.mxu0 0
  %305 = vmatprep.subr.bf16.mxu0 0
  %306 = vmatpush1.bf16.msra.mxu0 0
  %307 = vmatprep.subr.bf16.mxu0 0
  %308 = vmatpush1.bf16.msra.mxu0 0
  %309 = vmatprep.subr.bf16.mxu0 0
  %310 = vmatpush1.bf16.msra.mxu0 0
  %311 = vmatprep.subr.bf16.mxu0 0
  %312 = vmatpush1.bf16.msra.mxu0 0
  %313 = vmatprep.subr.bf16.mxu0 0
  %314 = vmatpush1.bf16.msra.mxu0 0
  %315 = vmatprep.subr.bf16.mxu0 0
  %316 = vmatpush1.bf16.msra.mxu0 0
  %317 = vmatprep.subr.bf16.mxu0 0
  %318 = vmatpush1.bf16.msra.mxu0 0
  %319 = vmatprep.subr.bf16.mxu0 0
  %320 = vmatpush1.bf16.msra.mxu0 0
  %321 = vmatprep.subr.bf16.mxu0 0
  %322 = vmatpush1.bf16.msra.mxu0 0
  %323 = vmatprep.subr.bf16.mxu0 0
  %324 = vmatpush1.bf16.msra.mxu0 0
  %325 = vmatprep.subr.bf16.mxu0 0
  %326 = vmatpush1.bf16.msra.mxu0 0
  %327 = vmatprep.mubr.bf16.mxu0 0
  %328 = vmatmul.mubr.bf16.gmra.mrb[0].mxu0 %v146
  %v329 = vpop.f32.mrb[0].mxu0
  %v330 = vadd.f32 %v281, %v329
  %v331 = vpop.f32.mrb[0].mxu0
  %v332 = vpop.f32.mrb[0].mxu0
  %v333 = vadd.f32 %v281, %v332
  %v334 = vpop.f32.mrb[0].mxu0
  %335 = vmatprep.mubr.bf16.mxu0 0
  %336 = vmatmul.mubr.bf16.gmra.mrb[0].mxu0 %v149
  %v337 = vpop.f32.mrb[0].mxu0
  %v338 = vadd.f32 %v281, %v337
  %v339 = vpop.f32.mrb[0].mxu0
  %v340 = vpop.f32.mrb[0].mxu0
  %v341 = vadd.f32 %v281, %v340
  %v342 = vpop.f32.mrb[0].mxu0
  %343 = vdwg.mxu0
  %v344 = vpack.c.bf16 %v189, %v186
  %v345 = vpack.c.bf16 %v197, %v194
  %v348 = vunpack.c.l.b16 %v344
  %v349 = vunpack.c.h.b16 %v344
  %v350 = vunpack.c.l.b16 %v345
  %v351 = vunpack.c.h.b16 %v345
  %v352 = vpack.c.b16 %v348, %v348
  %v353 = vpack.c.b16 %v349, %v349
  %v354 = vpack.c.b16 %v350, %v350
  %v355 = vpack.c.b16 %v351, %v351
  %vm360 = vcmask 257024
  %361 = vst.msk [vmem:[%s9] sm:$0xf] %vm360, %v352
  %362 = vst.msk [vmem:[%s9 + $0x4] sm:$0xf] %vm360, %v353
  %363 = vst.msk [vmem:[%s9 + $0x8] sm:$0xf] %vm360, %v354
  %364 = vst.msk [vmem:[%s9 + $0xc] sm:$0xf] %vm360, %v355
  %v365 = vpack.c.bf16 %v261, %v258
  %v366 = vpack.c.bf16 %v269, %v266
  %v369 = vunpack.c.l.b16 %v365
  %v370 = vunpack.c.h.b16 %v365
  %v371 = vunpack.c.l.b16 %v366
  %v372 = vunpack.c.h.b16 %v366
  %v373 = vpack.c.b16 %v369, %v369
  %v374 = vpack.c.b16 %v370, %v370
  %v375 = vpack.c.b16 %v371, %v371
  %v376 = vpack.c.b16 %v372, %v372
  %381 = vst.msk [vmem:[%s10] sm:$0xf] %vm360, %v373
  %382 = vst.msk [vmem:[%s10 + $0x4] sm:$0xf] %vm360, %v374
  %383 = vst.msk [vmem:[%s10 + $0x8] sm:$0xf] %vm360, %v375
  %384 = vst.msk [vmem:[%s10 + $0xc] sm:$0xf] %vm360, %v376
  %v385 = vpack.c.bf16 %v333, %v330
  %v386 = vpack.c.bf16 %v341, %v338
  %v389 = vunpack.c.l.b16 %v385
  %v390 = vunpack.c.h.b16 %v385
  %v391 = vunpack.c.l.b16 %v386
  %v392 = vunpack.c.h.b16 %v386
  %v393 = vpack.c.b16 %v389, %v389
  %v394 = vpack.c.b16 %v390, %v390
  %v395 = vpack.c.b16 %v391, %v391
  %v396 = vpack.c.b16 %v392, %v392
  %401 = vst.msk [vmem:[%s11] sm:$0xf] %vm360, %v393
  %402 = vst.msk [vmem:[%s11 + $0x4] sm:$0xf] %vm360, %v394
  %403 = vst.msk [vmem:[%s11 + $0x8] sm:$0xf] %vm360, %v395
  %404 = vst.msk [vmem:[%s11 + $0xc] sm:$0xf] %vm360, %v396
  // Predicated region
  $region38: #{bi_unet_forward.17} parent=0 // pred_check
    _
  $region39: #{bi_unet_forward.17} parent=0 // pred_check_branch
    %406 = sbr.rel (0) target = $region41
  $region40: #{bi_unet_forward.17} parent=0 // pred_region
    _
  $region41: #{bi_unet_forward.17} parent=0 // pred_fallthru
    _
  // Predicated region
  $region42: #{bi_unet_forward.17} parent=0 // pred_check
    _
  $region43: #{bi_unet_forward.17} parent=0 // pred_check_branch
    %408 = sbr.rel (0) target = $region45
  $region44: #{bi_unet_forward.17} parent=0 // pred_region
    _
  $region45: #{bi_unet_forward.17} parent=0 // pred_fallthru
    _
  // Predicated region
  $region46: #{bi_unet_forward.17} parent=0 // pred_check
    _
  $region47: #{bi_unet_forward.17} parent=0 // pred_check_branch
    %410 = sbr.rel (0) target = $region49
  $region48: #{bi_unet_forward.17} parent=0 // pred_region
    _
  $region49: #{bi_unet_forward.17} parent=0 // pred_fallthru
    _
  // Predicated region
  $region50: #{bi_unet_forward.17} parent=0 // pred_check
    _
  $region51: #{bi_unet_forward.17} parent=0 // pred_check_branch
    %412 = sbr.rel (0) target = $region53
  $region52: #{bi_unet_forward.17} parent=0 // pred_region
    _
  $region53: #{bi_unet_forward.17} parent=0 // pred_fallthru
    _
  // Predicated region
  $region54: #{bi_unet_forward.17} parent=0 // pred_check
    _
  $region55: #{bi_unet_forward.17} parent=0 // pred_check_branch
    %414 = sbr.rel (0) target = $region57
  $region56: #{bi_unet_forward.17} parent=0 // pred_region
    _
  $region57: #{bi_unet_forward.17} parent=0 // pred_fallthru
    _
  // Predicated region
  $region58: #{bi_unet_forward.17} parent=0 // pred_check
    _
  $region59: #{bi_unet_forward.17} parent=0 // pred_check_branch
    %416 = sbr.rel (0) target = $region61
  $region60: #{bi_unet_forward.17} parent=0 // pred_region
    _
  $region61: #{bi_unet_forward.17} parent=0 // pred_fallthru
    _

// kernel: bi_unet_forward.19
$region0: #{bi_unet_forward.19}
  #allocation0 [shape = 'u32[]', space=smem, size = 0x4, offset = 0x4, fixed_abs, tag = 'smem constant byte address 0x4 - core index']
  #allocation1 [shape = 'u32[144,128]{1,0:T(1,128)}', space=vmem, size = 0x12000, scoped, tag = 'internal scratch']
  %s0 = inlined_call_operand.vmem [shape: bf16[32,32], index: 0, kind: input, shape index: {}]
  %s1 = inlined_call_operand.vmem [shape: bf16[32,32], index: 1, kind: input, shape index: {}]
  %s2 = inlined_call_operand.vmem [shape: f32[1,32], index: 2, kind: input, shape index: {}]
  %s3 = inlined_call_operand.vmem [shape: bf16[32,32], index: 3, kind: input, shape index: {}]
  %s4 = inlined_call_operand.vmem [shape: bf16[32,32], index: 4, kind: output, shape index: {}]
  %s5 = sld [smem:[#allocation0]]
  $region26: #{bi_unet_forward.19} parent=0
    _
  %s7 = ssub.s32 1, %s5
  %s8 = scalar_select 0, %s7, %s5
  // Predicated region
  $region2: #{bi_unet_forward.19} parent=0 // pred_check
    _
  $region3: #{bi_unet_forward.19} parent=0 // pred_check_branch
    %10 = sbr.rel (0) target = $region5
  $region4: #{bi_unet_forward.19} parent=0 // pred_region
    _
  $region5: #{bi_unet_forward.19} parent=0 // pred_fallthru
    _
  // Predicated region
  $region6: #{bi_unet_forward.19} parent=0 // pred_check
    _
  $region7: #{bi_unet_forward.19} parent=0 // pred_check_branch
    %12 = sbr.rel (0) target = $region9
  $region8: #{bi_unet_forward.19} parent=0 // pred_region
    _
  $region9: #{bi_unet_forward.19} parent=0 // pred_fallthru
    _
  // Predicated region
  $region10: #{bi_unet_forward.19} parent=0 // pred_check
    _
  $region11: #{bi_unet_forward.19} parent=0 // pred_check_branch
    %14 = sbr.rel (0) target = $region13
  $region12: #{bi_unet_forward.19} parent=0 // pred_region
    _
  $region13: #{bi_unet_forward.19} parent=0 // pred_fallthru
    _
  // Predicated region
  $region14: #{bi_unet_forward.19} parent=0 // pred_check
    _
  $region15: #{bi_unet_forward.19} parent=0 // pred_check_branch
    %16 = sbr.rel (0) target = $region17
  $region16: #{bi_unet_forward.19} parent=0 // pred_region
    _
  $region17: #{bi_unet_forward.19} parent=0 // pred_fallthru
    _
  %v18 = vld [vmem:[%s0] sm:$0xf]
  %v19 = vld [vmem:[%s0 + $0x4] sm:$0xf]
  %v20 = vld [vmem:[%s0 + $0x8] sm:$0xf]
  %v21 = vld [vmem:[%s0 + $0xc] sm:$0xf]
  %v22 = vld [vmem:[%s1] sm:$0xf]
  %v23 = vld [vmem:[%s1 + $0x4] sm:$0xf]
  %v24 = vld [vmem:[%s1 + $0x8] sm:$0xf]
  %v25 = vld [vmem:[%s1 + $0xc] sm:$0xf]
  %v26 = vld [vmem:[%s2] sm:$0x1]
  %v28 = vlaneseq
  %v29 = vshrl.u32 %v28, 7
  %v30 = vsub.s32 0, %v29
  %v31 = vrot.slane %v26, %v30
  %v37 = vunpack.c.l.b16 %v18
  %v38 = vunpack.c.l.b16 %v19
  %v39 = vunpack.c.l.b16 %v20
  %v40 = vunpack.c.l.b16 %v21
  %v41 = vpack.c.b16 %v38, %v37
  %v42 = vpack.c.b16 %v40, %v39
  %v47 = vunpack.c.l.b16 %v22
  %v48 = vunpack.c.l.b16 %v23
  %v49 = vunpack.c.l.b16 %v24
  %v50 = vunpack.c.l.b16 %v25
  %v51 = vpack.c.b16 %v48, %v47
  %v52 = vpack.c.b16 %v50, %v49
  %vm55 = vcmask 261120
  %v57 = vsel %vm55, %v41, 0
  %v60 = vsel %vm55, %v42, 0
  %62 = vmatprep.subr.bf16.mxu0 0
  %63 = vmatpush1.bf16.msra.mxu0 %v51
  %64 = vmatprep.subr.bf16.mxu0 0
  %65 = vmatpush1.bf16.msra.mxu0 %v52
  %66 = vmatprep.subr.bf16.mxu0 0
  %67 = vmatpush1.bf16.msra.mxu0 0
  %68 = vmatprep.subr.bf16.mxu0 0
  %69 = vmatpush1.bf16.msra.mxu0 0
  %70 = vmatprep.subr.bf16.mxu0 0
  %71 = vmatpush1.bf16.msra.mxu0 0
  %72 = vmatprep.subr.bf16.mxu0 0
  %73 = vmatpush1.bf16.msra.mxu0 0
  %74 = vmatprep.subr.bf16.mxu0 0
  %75 = vmatpush1.bf16.msra.mxu0 0
  %76 = vmatprep.subr.bf16.mxu0 0
  %77 = vmatpush1.bf16.msra.mxu0 0
  %78 = vmatprep.subr.bf16.mxu0 0
  %79 = vmatpush1.bf16.msra.mxu0 0
  %80 = vmatprep.subr.bf16.mxu0 0
  %81 = vmatpush1.bf16.msra.mxu0 0
  %82 = vmatprep.subr.bf16.mxu0 0
  %83 = vmatpush1.bf16.msra.mxu0 0
  %84 = vmatprep.subr.bf16.mxu0 0
  %85 = vmatpush1.bf16.msra.mxu0 0
  %86 = vmatprep.subr.bf16.mxu0 0
  %87 = vmatpush1.bf16.msra.mxu0 0
  %88 = vmatprep.subr.bf16.mxu0 0
  %89 = vmatpush1.bf16.msra.mxu0 0
  %90 = vmatprep.subr.bf16.mxu0 0
  %91 = vmatpush1.bf16.msra.mxu0 0
  %92 = vmatprep.subr.bf16.mxu0 0
  %93 = vmatpush1.bf16.msra.mxu0 0
  %94 = vmatprep.mubr.bf16.mxu0 0
  %95 = vmatmul.mubr.bf16.gmra.mrb[0].mxu0 %v57
  %v96 = vpop.f32.mrb[0].mxu0
  %v97 = vadd.f32 %v31, %v96
  %v98 = vpop.f32.mrb[0].mxu0
  %v99 = vpop.f32.mrb[0].mxu0
  %v100 = vadd.f32 %v31, %v99
  %v101 = vpop.f32.mrb[0].mxu0
  %102 = vmatprep.mubr.bf16.mxu0 0
  %103 = vmatmul.mubr.bf16.gmra.mrb[0].mxu0 %v60
  %v104 = vpop.f32.mrb[0].mxu0
  %v105 = vadd.f32 %v31, %v104
  %v106 = vpop.f32.mrb[0].mxu0
  %v107 = vpop.f32.mrb[0].mxu0
  %v108 = vadd.f32 %v31, %v107
  %v109 = vpop.f32.mrb[0].mxu0
  %110 = vdwg.mxu0
  %v111 = vld [vmem:[%s3] sm:$0xf]
  %v112 = vld [vmem:[%s3 + $0x4] sm:$0xf]
  %v113 = vld [vmem:[%s3 + $0x8] sm:$0xf]
  %v114 = vld [vmem:[%s3 + $0xc] sm:$0xf]
  %v115 = vunpack.c.l.bf16 %v111
  %v116 = vunpack.c.l.bf16 %v112
  %v117 = vunpack.c.l.bf16 %v113
  %v118 = vunpack.c.l.bf16 %v114
  %v119 = vadd.f32 %v97, %v115
  %v120 = vadd.f32 %v100, %v116
  %v121 = vadd.f32 %v105, %v117
  %v122 = vadd.f32 %v108, %v118
  %v123 = vpack.c.bf16 %v120, %v119
  %v124 = vpack.c.bf16 %v122, %v121
  %v127 = vunpack.c.l.b16 %v123
  %v128 = vunpack.c.h.b16 %v123
  %v129 = vunpack.c.l.b16 %v124
  %v130 = vunpack.c.h.b16 %v124
  %v131 = vpack.c.b16 %v127, %v127
  %v132 = vpack.c.b16 %v128, %v128
  %v133 = vpack.c.b16 %v129, %v129
  %v134 = vpack.c.b16 %v130, %v130
  %vm139 = vcmask 257024
  %140 = vst.msk [vmem:[%s4] sm:$0xf] %vm139, %v131
  %141 = vst.msk [vmem:[%s4 + $0x4] sm:$0xf] %vm139, %v132
  %142 = vst.msk [vmem:[%s4 + $0x8] sm:$0xf] %vm139, %v133
  %143 = vst.msk [vmem:[%s4 + $0xc] sm:$0xf] %vm139, %v134
  // Predicated region
  $region18: #{bi_unet_forward.19} parent=0 // pred_check
    _
  $region19: #{bi_unet_forward.19} parent=0 // pred_check_branch
    %145 = sbr.rel (0) target = $region21
  $region20: #{bi_unet_forward.19} parent=0 // pred_region
    _
  $region21: #{bi_unet_forward.19} parent=0 // pred_fallthru
    _
  // Predicated region
  $region22: #{bi_unet_forward.19} parent=0 // pred_check
    _
  $region23: #{bi_unet_forward.19} parent=0 // pred_check_branch
    %147 = sbr.rel (0) target = $region25
  $region24: #{bi_unet_forward.19} parent=0 // pred_region
    _
  $region25: #{bi_unet_forward.19} parent=0 // pred_fallthru
    _

// kernel: bi_unet_forward.21
$region0: #{bi_unet_forward.21}
  #allocation0 [shape = 'u32[]', space=smem, size = 0x4, offset = 0x4, fixed_abs, tag = 'smem constant byte address 0x4 - core index']
  #allocation1 [shape = 'u32[144,128]{1,0:T(1,128)}', space=vmem, size = 0x12000, scoped, tag = 'internal scratch']
  %s0 = inlined_call_operand.vmem [shape: bf16[8,128], index: 0, kind: input, shape index: {}]
  %s1 = inlined_call_operand.vmem [shape: bf16[128,64], index: 1, kind: input, shape index: {}]
  %s2 = inlined_call_operand.vmem [shape: f32[1,64], index: 2, kind: input, shape index: {}]
  %s3 = inlined_call_operand.vmem [shape: bf16[8,64], index: 3, kind: output, shape index: {}]
  %s4 = sld [smem:[#allocation0]]
  $region22: #{bi_unet_forward.21} parent=0
    _
  %s6 = ssub.s32 1, %s4
  %s7 = scalar_select 0, %s6, %s4
  // Predicated region
  $region2: #{bi_unet_forward.21} parent=0 // pred_check
    _
  $region3: #{bi_unet_forward.21} parent=0 // pred_check_branch
    %9 = sbr.rel (0) target = $region5
  $region4: #{bi_unet_forward.21} parent=0 // pred_region
    _
  $region5: #{bi_unet_forward.21} parent=0 // pred_fallthru
    _
  // Predicated region
  $region6: #{bi_unet_forward.21} parent=0 // pred_check
    _
  $region7: #{bi_unet_forward.21} parent=0 // pred_check_branch
    %11 = sbr.rel (0) target = $region9
  $region8: #{bi_unet_forward.21} parent=0 // pred_region
    _
  $region9: #{bi_unet_forward.21} parent=0 // pred_fallthru
    _
  // Predicated region
  $region10: #{bi_unet_forward.21} parent=0 // pred_check
    _
  $region11: #{bi_unet_forward.21} parent=0 // pred_check_branch
    %13 = sbr.rel (0) target = $region13
  $region12: #{bi_unet_forward.21} parent=0 // pred_region
    _
  $region13: #{bi_unet_forward.21} parent=0 // pred_fallthru
    _
  %v15 = vld [vmem:[%s0] sm:$0xf]
  %v16 = vld [vmem:[%s1] sm:$0xf]
  %v17 = vld [vmem:[%s1 + $0x4] sm:$0xf]
  %v18 = vld [vmem:[%s1 + $0x8] sm:$0xf]
  %v19 = vld [vmem:[%s1 + $0xc] sm:$0xf]
  %v20 = vld [vmem:[%s1 + $0x10] sm:$0xf]
  %v21 = vld [vmem:[%s1 + $0x14] sm:$0xf]
  %v22 = vld [vmem:[%s1 + $0x18] sm:$0xf]
  %v23 = vld [vmem:[%s1 + $0x1c] sm:$0xf]
  %v24 = vld [vmem:[%s1 + $0x20] sm:$0xf]
  %v25 = vld [vmem:[%s1 + $0x24] sm:$0xf]
  %v26 = vld [vmem:[%s1 + $0x28] sm:$0xf]
  %v27 = vld [vmem:[%s1 + $0x2c] sm:$0xf]
  %v28 = vld [vmem:[%s1 + $0x30] sm:$0xf]
  %v29 = vld [vmem:[%s1 + $0x34] sm:$0xf]
  %v30 = vld [vmem:[%s1 + $0x38] sm:$0xf]
  %v31 = vld [vmem:[%s1 + $0x3c] sm:$0xf]
  %v32 = vld [vmem:[%s2] sm:$0x1]
  %v34 = vlaneseq
  %v35 = vshrl.u32 %v34, 7
  %v36 = vsub.s32 0, %v35
  %v37 = vrot.slane %v32, %v36
  %v55 = vunpack.c.l.b16 %v16
  %v56 = vunpack.c.l.b16 %v17
  %v57 = vunpack.c.l.b16 %v18
  %v58 = vunpack.c.l.b16 %v19
  %v59 = vunpack.c.l.b16 %v20
  %v60 = vunpack.c.l.b16 %v21
  %v61 = vunpack.c.l.b16 %v22
  %v62 = vunpack.c.l.b16 %v23
  %v63 = vunpack.c.l.b16 %v24
  %v64 = vunpack.c.l.b16 %v25
  %v65 = vunpack.c.l.b16 %v26
  %v66 = vunpack.c.l.b16 %v27
  %v67 = vunpack.c.l.b16 %v28
  %v68 = vunpack.c.l.b16 %v29
  %v69 = vunpack.c.l.b16 %v30
  %v70 = vunpack.c.l.b16 %v31
  %v71 = vpack.c.b16 %v56, %v55
  %v72 = vpack.c.b16 %v58, %v57
  %v73 = vpack.c.b16 %v60, %v59
  %v74 = vpack.c.b16 %v62, %v61
  %v75 = vpack.c.b16 %v64, %v63
  %v76 = vpack.c.b16 %v66, %v65
  %v77 = vpack.c.b16 %v68, %v67
  %v78 = vpack.c.b16 %v70, %v69
  %87 = vmatprep.subr.bf16.mxu0 0
  %88 = vmatpush1.bf16.msra.mxu0 %v71
  %89 = vmatprep.subr.bf16.mxu0 0
  %90 = vmatpush1.bf16.msra.mxu0 %v72
  %91 = vmatprep.subr.bf16.mxu0 0
  %92 = vmatpush1.bf16.msra.mxu0 %v73
  %93 = vmatprep.subr.bf16.mxu0 0
  %94 = vmatpush1.bf16.msra.mxu0 %v74
  %95 = vmatprep.subr.bf16.mxu0 0
  %96 = vmatpush1.bf16.msra.mxu0 %v75
  %97 = vmatprep.subr.bf16.mxu0 0
  %98 = vmatpush1.bf16.msra.mxu0 %v76
  %99 = vmatprep.subr.bf16.mxu0 0
  %100 = vmatpush1.bf16.msra.mxu0 %v77
  %101 = vmatprep.subr.bf16.mxu0 0
  %102 = vmatpush1.bf16.msra.mxu0 %v78
  %103 = vmatprep.subr.bf16.mxu0 0
  %104 = vmatpush1.bf16.msra.mxu0 0
  %105 = vmatprep.subr.bf16.mxu0 0
  %106 = vmatpush1.bf16.msra.mxu0 0
  %107 = vmatprep.subr.bf16.mxu0 0
  %108 = vmatpush1.bf16.msra.mxu0 0
  %109 = vmatprep.subr.bf16.mxu0 0
  %110 = vmatpush1.bf16.msra.mxu0 0
  %111 = vmatprep.subr.bf16.mxu0 0
  %112 = vmatpush1.bf16.msra.mxu0 0
  %113 = vmatprep.subr.bf16.mxu0 0
  %114 = vmatpush1.bf16.msra.mxu0 0
  %115 = vmatprep.subr.bf16.mxu0 0
  %116 = vmatpush1.bf16.msra.mxu0 0
  %117 = vmatprep.subr.bf16.mxu0 0
  %118 = vmatpush1.bf16.msra.mxu0 0
  %119 = vmatprep.mubr.bf16.mxu0 0
  %120 = vmatmul.mubr.bf16.gmra.mrb[0].mxu0 %v15
  %v121 = vpop.f32.mrb[0].mxu0
  %v122 = vadd.f32 %v37, %v121
  %v123 = vpop.f32.mrb[0].mxu0
  %v124 = vpop.f32.mrb[0].mxu0
  %v125 = vpop.f32.mrb[0].mxu0
  %126 = vdwg.mxu0
  %v127 = vpack.c.bf16 %v122, %v122
  %vm128 = vcmask 519168
  %129 = vst.msk [vmem:[%s3] sm:$0xf] %vm128, %v127
  // Predicated region
  $region14: #{bi_unet_forward.21} parent=0 // pred_check
    _
  $region15: #{bi_unet_forward.21} parent=0 // pred_check_branch
    %131 = sbr.rel (0) target = $region17
  $region16: #{bi_unet_forward.21} parent=0 // pred_region
    _
  $region17: #{bi_unet_forward.21} parent=0 // pred_fallthru
    _
  // Predicated region
  $region18: #{bi_unet_forward.21} parent=0 // pred_check
    _
  $region19: #{bi_unet_forward.21} parent=0 // pred_check_branch
    %133 = sbr.rel (0) target = $region21
  $region20: #{bi_unet_forward.21} parent=0 // pred_region
    _
  $region21: #{bi_unet_forward.21} parent=0 // pred_fallthru
    _

// kernel: bi_unet_forward.20
$region0: #{bi_unet_forward.20}
  #allocation0 [shape = 'u32[]', space=smem, size = 0x4, offset = 0x4, fixed_abs, tag = 'smem constant byte address 0x4 - core index']
  #allocation1 [shape = 'u32[144,128]{1,0:T(1,128)}', space=vmem, size = 0x12000, scoped, tag = 'internal scratch']
  %s0 = inlined_call_operand.vmem [shape: bf16[32,32], index: 0, kind: input, shape index: {}]
  %s1 = inlined_call_operand.vmem [shape: f32[1,32], index: 1, kind: input, shape index: {}]
  %s2 = inlined_call_operand.vmem [shape: f32[1,32], index: 2, kind: input, shape index: {}]
  %s3 = inlined_call_operand.vmem [shape: bf16[32,64], index: 3, kind: input, shape index: {}]
  %s4 = inlined_call_operand.vmem [shape: f32[1,64], index: 4, kind: input, shape index: {}]
  %s5 = inlined_call_operand.vmem [shape: bf16[64,32], index: 5, kind: input, shape index: {}]
  %s6 = inlined_call_operand.vmem [shape: f32[1,32], index: 6, kind: input, shape index: {}]
  %s7 = inlined_call_operand.vmem [shape: bf16[32,32], index: 7, kind: output, shape index: {}]
  %s8 = sld [smem:[#allocation0]]
  $region38: #{bi_unet_forward.20} parent=0
    _
  %s10 = ssub.s32 1, %s8
  %s11 = scalar_select 0, %s10, %s8
  // Predicated region
  $region2: #{bi_unet_forward.20} parent=0 // pred_check
    _
  $region3: #{bi_unet_forward.20} parent=0 // pred_check_branch
    %13 = sbr.rel (0) target = $region5
  $region4: #{bi_unet_forward.20} parent=0 // pred_region
    _
  $region5: #{bi_unet_forward.20} parent=0 // pred_fallthru
    _
  // Predicated region
  $region6: #{bi_unet_forward.20} parent=0 // pred_check
    _
  $region7: #{bi_unet_forward.20} parent=0 // pred_check_branch
    %15 = sbr.rel (0) target = $region9
  $region8: #{bi_unet_forward.20} parent=0 // pred_region
    _
  $region9: #{bi_unet_forward.20} parent=0 // pred_fallthru
    _
  // Predicated region
  $region10: #{bi_unet_forward.20} parent=0 // pred_check
    _
  $region11: #{bi_unet_forward.20} parent=0 // pred_check_branch
    %17 = sbr.rel (0) target = $region13
  $region12: #{bi_unet_forward.20} parent=0 // pred_region
    _
  $region13: #{bi_unet_forward.20} parent=0 // pred_fallthru
    _
  // Predicated region
  $region14: #{bi_unet_forward.20} parent=0 // pred_check
    _
  $region15: #{bi_unet_forward.20} parent=0 // pred_check_branch
    %19 = sbr.rel (0) target = $region17
  $region16: #{bi_unet_forward.20} parent=0 // pred_region
    _
  $region17: #{bi_unet_forward.20} parent=0 // pred_fallthru
    _
  // Predicated region
  $region18: #{bi_unet_forward.20} parent=0 // pred_check
    _
  $region19: #{bi_unet_forward.20} parent=0 // pred_check_branch
    %21 = sbr.rel (0) target = $region21
  $region20: #{bi_unet_forward.20} parent=0 // pred_region
    _
  $region21: #{bi_unet_forward.20} parent=0 // pred_fallthru
    _
  // Predicated region
  $region22: #{bi_unet_forward.20} parent=0 // pred_check
    _
  $region23: #{bi_unet_forward.20} parent=0 // pred_check_branch
    %23 = sbr.rel (0) target = $region25
  $region24: #{bi_unet_forward.20} parent=0 // pred_region
    _
  $region25: #{bi_unet_forward.20} parent=0 // pred_fallthru
    _
  // Predicated region
  $region26: #{bi_unet_forward.20} parent=0 // pred_check
    _
  $region27: #{bi_unet_forward.20} parent=0 // pred_check_branch
    %25 = sbr.rel (0) target = $region29
  $region28: #{bi_unet_forward.20} parent=0 // pred_region
    _
  $region29: #{bi_unet_forward.20} parent=0 // pred_fallthru
    _
  %v27 = vld [vmem:[%s0] sm:$0xf]
  %v28 = vld [vmem:[%s0 + $0x4] sm:$0xf]
  %v29 = vld [vmem:[%s0 + $0x8] sm:$0xf]
  %v30 = vld [vmem:[%s0 + $0xc] sm:$0xf]
  %v31 = vunpack.c.l.bf16 %v27
  %v32 = vunpack.c.l.bf16 %v28
  %v33 = vunpack.c.l.bf16 %v29
  %v34 = vunpack.c.l.bf16 %v30
  %vm35 = vcmask 261120
  %v36 = vsel %vm35, %v31, 0.0
  %37 = vadd.xlane.f32.xlu0 %v36
  %v38 = vpop.xlane.xlu0 %37
  %v39 = vsel %vm35, %v32, 0.0
  %40 = vadd.xlane.f32.xlu0 %v39
  %v41 = vpop.xlane.xlu0 %40
  %v42 = vsel %vm35, %v33, 0.0
  %43 = vadd.xlane.f32.xlu0 %v42
  %v44 = vpop.xlane.xlu0 %43
  %v45 = vsel %vm35, %v34, 0.0
  %46 = vadd.xlane.f32.xlu0 %v45
  %v47 = vpop.xlane.xlu0 %46
  %v48 = vrcp.pop 32.0
  %v49 = vmul.f32 %v38, %v48
  %v50 = vmul.f32 %v41, %v48
  %v51 = vmul.f32 %v44, %v48
  %v52 = vmul.f32 %v47, %v48
  %v53 = vsub.f32 %v31, %v49
  %v54 = vsub.f32 %v32, %v50
  %v55 = vsub.f32 %v33, %v51
  %v56 = vsub.f32 %v34, %v52
  %v57 = vmul.f32 %v53, %v53
  %v58 = vmul.f32 %v54, %v54
  %v59 = vmul.f32 %v55, %v55
  %v60 = vmul.f32 %v56, %v56
  %v61 = vsel %vm35, %v57, 0.0
  %62 = vadd.xlane.f32.xlu0 %v61
  %v63 = vpop.xlane.xlu0 %62
  %v64 = vsel %vm35, %v58, 0.0
  %65 = vadd.xlane.f32.xlu0 %v64
  %v66 = vpop.xlane.xlu0 %65
  %v67 = vsel %vm35, %v59, 0.0
  %68 = vadd.xlane.f32.xlu0 %v67
  %v69 = vpop.xlane.xlu0 %68
  %v70 = vsel %vm35, %v60, 0.0
  %71 = vadd.xlane.f32.xlu0 %v70
  %v72 = vpop.xlane.xlu0 %71
  %v73 = vmul.f32 %v63, %v48
  %v74 = vmul.f32 %v66, %v48
  %v75 = vmul.f32 %v69, %v48
  %v76 = vmul.f32 %v72, %v48
  %v77 = vadd.f32 %v73, 1e-05
  %v78 = vadd.f32 %v74, 1e-05
  %v79 = vadd.f32 %v75, 1e-05
  %v80 = vadd.f32 %v76, 1e-05
  %v81 = vrsqrt.pop %v77
  %v82 = vrsqrt.pop %v78
  %v83 = vrsqrt.pop %v79
  %v84 = vrsqrt.pop %v80
  %v85 = vmul.f32 %v53, %v81
  %v86 = vmul.f32 %v54, %v82
  %v87 = vmul.f32 %v55, %v83
  %v88 = vmul.f32 %v56, %v84
  %v89 = vld [vmem:[%s1] sm:$0x1]
  %v91 = vlaneseq
  %v92 = vshrl.u32 %v91, 7
  %v93 = vsub.s32 0, %v92
  %v94 = vrot.slane %v89, %v93
  %v96 = vmul.f32 %v85, %v94
  %v97 = vmul.f32 %v86, %v94
  %v98 = vmul.f32 %v87, %v94
  %v99 = vmul.f32 %v88, %v94
  %v100 = vld [vmem:[%s2] sm:$0x1]
  %v102 = vlaneseq
  %v103 = vshrl.u32 %v102, 7
  %v104 = vsub.s32 0, %v103
  %v105 = vrot.slane %v100, %v104
  %v107 = vadd.f32 %v96, %v105
  %v108 = vadd.f32 %v97, %v105
  %v109 = vadd.f32 %v98, %v105
  %v110 = vadd.f32 %v99, %v105
  %v111 = vpack.c.bf16 %v108, %v107
  %v112 = vpack.c.bf16 %v110, %v109
  %v113 = vld [vmem:[%s3] sm:$0xf]
  %v114 = vld [vmem:[%s3 + $0x4] sm:$0xf]
  %v115 = vld [vmem:[%s3 + $0x8] sm:$0xf]
  %v116 = vld [vmem:[%s3 + $0xc] sm:$0xf]
  %v117 = vld [vmem:[%s4] sm:$0x1]
  %v119 = vlaneseq
  %v120 = vshrl.u32 %v119, 7
  %v121 = vsub.s32 0, %v120
  %v122 = vrot.slane %v117, %v121
  %v128 = vunpack.c.l.b16 %v113
  %v129 = vunpack.c.l.b16 %v114
  %v130 = vunpack.c.l.b16 %v115
  %v131 = vunpack.c.l.b16 %v116
  %v132 = vpack.c.b16 %v129, %v128
  %v133 = vpack.c.b16 %v131, %v130
  %v137 = vsel %vm35, %v111, 0
  %v140 = vsel %vm35, %v112, 0
  %142 = vmatprep.subr.bf16.mxu0 0
  %143 = vmatpush1.bf16.msra.mxu0 %v132
  %144 = vmatprep.subr.bf16.mxu0 0
  %145 = vmatpush1.bf16.msra.mxu0 %v133
  %146 = vmatprep.subr.bf16.mxu0 0
  %147 = vmatpush1.bf16.msra.mxu0 0
  %148 = vmatprep.subr.bf16.mxu0 0
  %149 = vmatpush1.bf16.msra.mxu0 0
  %150 = vmatprep.subr.bf16.mxu0 0
  %151 = vmatpush1.bf16.msra.mxu0 0
  %152 = vmatprep.subr.bf16.mxu0 0
  %153 = vmatpush1.bf16.msra.mxu0 0
  %154 = vmatprep.subr.bf16.mxu0 0
  %155 = vmatpush1.bf16.msra.mxu0 0
  %156 = vmatprep.subr.bf16.mxu0 0
  %157 = vmatpush1.bf16.msra.mxu0 0
  %158 = vmatprep.subr.bf16.mxu0 0
  %159 = vmatpush1.bf16.msra.mxu0 0
  %160 = vmatprep.subr.bf16.mxu0 0
  %161 = vmatpush1.bf16.msra.mxu0 0
  %162 = vmatprep.subr.bf16.mxu0 0
  %163 = vmatpush1.bf16.msra.mxu0 0
  %164 = vmatprep.subr.bf16.mxu0 0
  %165 = vmatpush1.bf16.msra.mxu0 0
  %166 = vmatprep.subr.bf16.mxu0 0
  %167 = vmatpush1.bf16.msra.mxu0 0
  %168 = vmatprep.subr.bf16.mxu0 0
  %169 = vmatpush1.bf16.msra.mxu0 0
  %170 = vmatprep.subr.bf16.mxu0 0
  %171 = vmatpush1.bf16.msra.mxu0 0
  %172 = vmatprep.subr.bf16.mxu0 0
  %173 = vmatpush1.bf16.msra.mxu0 0
  %174 = vmatprep.mubr.bf16.mxu0 0
  %175 = vmatmul.mubr.bf16.gmra.mrb[0].mxu0 %v137
  %v176 = vpop.f32.mrb[0].mxu0
  %v177 = vadd.f32 %v122, %v176
  %v178 = vpop.f32.mrb[0].mxu0
  %v179 = vpop.f32.mrb[0].mxu0
  %v180 = vadd.f32 %v122, %v179
  %v181 = vpop.f32.mrb[0].mxu0
  %182 = vmatprep.mubr.bf16.mxu0 0
  %183 = vmatmul.mubr.bf16.gmra.mrb[0].mxu0 %v140
  %v184 = vpop.f32.mrb[0].mxu0
  %v185 = vadd.f32 %v122, %v184
  %v186 = vpop.f32.mrb[0].mxu0
  %v187 = vpop.f32.mrb[0].mxu0
  %v188 = vadd.f32 %v122, %v187
  %v189 = vpop.f32.mrb[0].mxu0
  %190 = vdwg.mxu0
  %v191 = vmul.f32 %v177, 0.5
  %v192 = vmul.f32 %v180, 0.5
  %v193 = vmul.f32 %v185, 0.5
  %v194 = vmul.f32 %v188, 0.5
  %v195 = vmul.f32 %v177, 0.044715
  %v196 = vmul.f32 %v180, 0.044715
  %v197 = vmul.f32 %v185, 0.044715
  %v198 = vmul.f32 %v188, 0.044715
  %v199 = vmul.f32 %v195, %v177
  %v200 = vmul.f32 %v196, %v180
  %v201 = vmul.f32 %v197, %v185
  %v202 = vmul.f32 %v198, %v188
  %v203 = vmul.f32 %v199, %v177
  %v204 = vmul.f32 %v200, %v180
  %v205 = vmul.f32 %v201, %v185
  %v206 = vmul.f32 %v202, %v188
  %v207 = vadd.f32 %v177, %v203
  %v208 = vadd.f32 %v180, %v204
  %v209 = vadd.f32 %v185, %v205
  %v210 = vadd.f32 %v188, %v206
  %v211 = vmul.f32 %v207, 0.7978846
  %v212 = vmul.f32 %v208, 0.7978846
  %v213 = vmul.f32 %v209, 0.7978846
  %v214 = vmul.f32 %v210, 0.7978846
  %v215 = vtanh.pop %v211
  %v216 = vtanh.pop %v212
  %v217 = vtanh.pop %v213
  %v218 = vtanh.pop %v214
  %v219 = vadd.f32 %v215, 1.0
  %v220 = vadd.f32 %v216, 1.0
  %v221 = vadd.f32 %v217, 1.0
  %v222 = vadd.f32 %v218, 1.0
  %v223 = vmul.f32 %v191, %v219
  %v224 = vmul.f32 %v192, %v220
  %v225 = vmul.f32 %v193, %v221
  %v226 = vmul.f32 %v194, %v222
  %v227 = vpack.c.bf16 %v224, %v223
  %v228 = vpack.c.bf16 %v226, %v225
  %v229 = vld [vmem:[%s5] sm:$0xf]
  %v230 = vld [vmem:[%s5 + $0x4] sm:$0xf]
  %v231 = vld [vmem:[%s5 + $0x8] sm:$0xf]
  %v232 = vld [vmem:[%s5 + $0xc] sm:$0xf]
  %v233 = vld [vmem:[%s5 + $0x10] sm:$0xf]
  %v234 = vld [vmem:[%s5 + $0x14] sm:$0xf]
  %v235 = vld [vmem:[%s5 + $0x18] sm:$0xf]
  %v236 = vld [vmem:[%s5 + $0x1c] sm:$0xf]
  %v237 = vld [vmem:[%s6] sm:$0x1]
  %v239 = vlaneseq
  %v240 = vshrl.u32 %v239, 7
  %v241 = vsub.s32 0, %v240
  %v242 = vrot.slane %v237, %v241
  %v252 = vunpack.c.l.b16 %v229
  %v253 = vunpack.c.l.b16 %v230
  %v254 = vunpack.c.l.b16 %v231
  %v255 = vunpack.c.l.b16 %v232
  %v256 = vunpack.c.l.b16 %v233
  %v257 = vunpack.c.l.b16 %v234
  %v258 = vunpack.c.l.b16 %v235
  %v259 = vunpack.c.l.b16 %v236
  %v260 = vpack.c.b16 %v253, %v252
  %v261 = vpack.c.b16 %v255, %v254
  %v262 = vpack.c.b16 %v257, %v256
  %v263 = vpack.c.b16 %v259, %v258
  %vm268 = vcmask 523264
  %v270 = vsel %vm268, %v227, 0
  %v273 = vsel %vm268, %v228, 0
  %275 = vmatprep.subr.bf16.mxu0 0
  %276 = vmatpush1.bf16.msra.mxu0 %v260
  %277 = vmatprep.subr.bf16.mxu0 0
  %278 = vmatpush1.bf16.msra.mxu0 %v261
  %279 = vmatprep.subr.bf16.mxu0 0
  %280 = vmatpush1.bf16.msra.mxu0 %v262
  %281 = vmatprep.subr.bf16.mxu0 0
  %282 = vmatpush1.bf16.msra.mxu0 %v263
  %283 = vmatprep.subr.bf16.mxu0 0
  %284 = vmatpush1.bf16.msra.mxu0 0
  %285 = vmatprep.subr.bf16.mxu0 0
  %286 = vmatpush1.bf16.msra.mxu0 0
  %287 = vmatprep.subr.bf16.mxu0 0
  %288 = vmatpush1.bf16.msra.mxu0 0
  %289 = vmatprep.subr.bf16.mxu0 0
  %290 = vmatpush1.bf16.msra.mxu0 0
  %291 = vmatprep.subr.bf16.mxu0 0
  %292 = vmatpush1.bf16.msra.mxu0 0
  %293 = vmatprep.subr.bf16.mxu0 0
  %294 = vmatpush1.bf16.msra.mxu0 0
  %295 = vmatprep.subr.bf16.mxu0 0
  %296 = vmatpush1.bf16.msra.mxu0 0
  %297 = vmatprep.subr.bf16.mxu0 0
  %298 = vmatpush1.bf16.msra.mxu0 0
  %299 = vmatprep.subr.bf16.mxu0 0
  %300 = vmatpush1.bf16.msra.mxu0 0
  %301 = vmatprep.subr.bf16.mxu0 0
  %302 = vmatpush1.bf16.msra.mxu0 0
  %303 = vmatprep.subr.bf16.mxu0 0
  %304 = vmatpush1.bf16.msra.mxu0 0
  %305 = vmatprep.subr.bf16.mxu0 0
  %306 = vmatpush1.bf16.msra.mxu0 0
  %307 = vmatprep.mubr.bf16.mxu0 0
  %308 = vmatmul.mubr.bf16.gmra.mrb[0].mxu0 %v270
  %v309 = vpop.f32.mrb[0].mxu0
  %v310 = vadd.f32 %v242, %v309
  %v311 = vpop.f32.mrb[0].mxu0
  %v312 = vpop.f32.mrb[0].mxu0
  %v313 = vadd.f32 %v242, %v312
  %v314 = vpop.f32.mrb[0].mxu0
  %315 = vmatprep.mubr.bf16.mxu0 0
  %316 = vmatmul.mubr.bf16.gmra.mrb[0].mxu0 %v273
  %v317 = vpop.f32.mrb[0].mxu0
  %v318 = vadd.f32 %v242, %v317
  %v319 = vpop.f32.mrb[0].mxu0
  %v320 = vpop.f32.mrb[0].mxu0
  %v321 = vadd.f32 %v242, %v320
  %v322 = vpop.f32.mrb[0].mxu0
  %323 = vdwg.mxu0
  %v324 = vadd.f32 %v31, %v310
  %v325 = vadd.f32 %v32, %v313
  %v326 = vadd.f32 %v33, %v318
  %v327 = vadd.f32 %v34, %v321
  %v328 = vpack.c.bf16 %v325, %v324
  %v329 = vpack.c.bf16 %v327, %v326
  %v332 = vunpack.c.l.b16 %v328
  %v333 = vunpack.c.h.b16 %v328
  %v334 = vunpack.c.l.b16 %v329
  %v335 = vunpack.c.h.b16 %v329
  %v336 = vpack.c.b16 %v332, %v332
  %v337 = vpack.c.b16 %v333, %v333
  %v338 = vpack.c.b16 %v334, %v334
  %v339 = vpack.c.b16 %v335, %v335
  %vm344 = vcmask 257024
  %345 = vst.msk [vmem:[%s7] sm:$0xf] %vm344, %v336
  %346 = vst.msk [vmem:[%s7 + $0x4] sm:$0xf] %vm344, %v337
  %347 = vst.msk [vmem:[%s7 + $0x8] sm:$0xf] %vm344, %v338
  %348 = vst.msk [vmem:[%s7 + $0xc] sm:$0xf] %vm344, %v339
  // Predicated region
  $region30: #{bi_unet_forward.20} parent=0 // pred_check
    _
  $region31: #{bi_unet_forward.20} parent=0 // pred_check_branch
    %350 = sbr.rel (0) target = $region33
  $region32: #{bi_unet_forward.20} parent=0 // pred_region
    _
  $region33: #{bi_unet_forward.20} parent=0 // pred_fallthru
    _
  // Predicated region
  $region34: #{bi_unet_forward.20} parent=0 // pred_check
    _
  $region35: #{bi_unet_forward.20} parent=0 // pred_check_branch
    %352 = sbr.rel (0) target = $region37
  $region36: #{bi_unet_forward.20} parent=0 // pred_region
    _
  $region37: #{bi_unet_forward.20} parent=0 // pred_fallthru
    _

// kernel: bi_unet_forward.22
$region0: #{bi_unet_forward.22}
  #allocation0 [shape = 'u32[]', space=smem, size = 0x4, offset = 0x4, fixed_abs, tag = 'smem constant byte address 0x4 - core index']
  #allocation1 [shape = 'u32[144,128]{1,0:T(1,128)}', space=vmem, size = 0x12000, scoped, tag = 'internal scratch']
  %s0 = inlined_call_operand.vmem [shape: bf16[8,64], index: 0, kind: input, shape index: {}]
  %s1 = inlined_call_operand.vmem [shape: f32[1,64], index: 1, kind: input, shape index: {}]
  %s2 = inlined_call_operand.vmem [shape: f32[1,64], index: 2, kind: input, shape index: {}]
  %s3 = inlined_call_operand.vmem [shape: bf16[64,64], index: 3, kind: input, shape index: {}]
  %s4 = inlined_call_operand.vmem [shape: f32[1,64], index: 4, kind: input, shape index: {}]
  %s5 = inlined_call_operand.vmem [shape: bf16[64,64], index: 5, kind: input, shape index: {}]
  %s6 = inlined_call_operand.vmem [shape: f32[1,64], index: 6, kind: input, shape index: {}]
  %s7 = inlined_call_operand.vmem [shape: bf16[64,64], index: 7, kind: input, shape index: {}]
  %s8 = inlined_call_operand.vmem [shape: f32[1,64], index: 8, kind: input, shape index: {}]
  %s9 = inlined_call_operand.vmem [shape: bf16[8,64], index: 9, kind: output, shape index: {0}]
  %s10 = inlined_call_operand.vmem [shape: bf16[8,64], index: 10, kind: output, shape index: {1}]
  %s11 = inlined_call_operand.vmem [shape: bf16[8,64], index: 11, kind: output, shape index: {2}]
  %12 = xla_tuple %s9, %s10, %s11
  %s13 = sld [smem:[#allocation0]]
  $region62: #{bi_unet_forward.22} parent=0
    _
  %s15 = ssub.s32 1, %s13
  %s16 = scalar_select 0, %s15, %s13
  // Predicated region
  $region2: #{bi_unet_forward.22} parent=0 // pred_check
    _
  $region3: #{bi_unet_forward.22} parent=0 // pred_check_branch
    %18 = sbr.rel (0) target = $region5
  $region4: #{bi_unet_forward.22} parent=0 // pred_region
    _
  $region5: #{bi_unet_forward.22} parent=0 // pred_fallthru
    _
  // Predicated region
  $region6: #{bi_unet_forward.22} parent=0 // pred_check
    _
  $region7: #{bi_unet_forward.22} parent=0 // pred_check_branch
    %20 = sbr.rel (0) target = $region9
  $region8: #{bi_unet_forward.22} parent=0 // pred_region
    _
  $region9: #{bi_unet_forward.22} parent=0 // pred_fallthru
    _
  // Predicated region
  $region10: #{bi_unet_forward.22} parent=0 // pred_check
    _
  $region11: #{bi_unet_forward.22} parent=0 // pred_check_branch
    %22 = sbr.rel (0) target = $region13
  $region12: #{bi_unet_forward.22} parent=0 // pred_region
    _
  $region13: #{bi_unet_forward.22} parent=0 // pred_fallthru
    _
  // Predicated region
  $region14: #{bi_unet_forward.22} parent=0 // pred_check
    _
  $region15: #{bi_unet_forward.22} parent=0 // pred_check_branch
    %24 = sbr.rel (0) target = $region17
  $region16: #{bi_unet_forward.22} parent=0 // pred_region
    _
  $region17: #{bi_unet_forward.22} parent=0 // pred_fallthru
    _
  // Predicated region
  $region18: #{bi_unet_forward.22} parent=0 // pred_check
    _
  $region19: #{bi_unet_forward.22} parent=0 // pred_check_branch
    %26 = sbr.rel (0) target = $region21
  $region20: #{bi_unet_forward.22} parent=0 // pred_region
    _
  $region21: #{bi_unet_forward.22} parent=0 // pred_fallthru
    _
  // Predicated region
  $region22: #{bi_unet_forward.22} parent=0 // pred_check
    _
  $region23: #{bi_unet_forward.22} parent=0 // pred_check_branch
    %28 = sbr.rel (0) target = $region25
  $region24: #{bi_unet_forward.22} parent=0 // pred_region
    _
  $region25: #{bi_unet_forward.22} parent=0 // pred_fallthru
    _
  // Predicated region
  $region26: #{bi_unet_forward.22} parent=0 // pred_check
    _
  $region27: #{bi_unet_forward.22} parent=0 // pred_check_branch
    %30 = sbr.rel (0) target = $region29
  $region28: #{bi_unet_forward.22} parent=0 // pred_region
    _
  $region29: #{bi_unet_forward.22} parent=0 // pred_fallthru
    _
  // Predicated region
  $region30: #{bi_unet_forward.22} parent=0 // pred_check
    _
  $region31: #{bi_unet_forward.22} parent=0 // pred_check_branch
    %32 = sbr.rel (0) target = $region33
  $region32: #{bi_unet_forward.22} parent=0 // pred_region
    _
  $region33: #{bi_unet_forward.22} parent=0 // pred_fallthru
    _
  // Predicated region
  $region34: #{bi_unet_forward.22} parent=0 // pred_check
    _
  $region35: #{bi_unet_forward.22} parent=0 // pred_check_branch
    %34 = sbr.rel (0) target = $region37
  $region36: #{bi_unet_forward.22} parent=0 // pred_region
    _
  $region37: #{bi_unet_forward.22} parent=0 // pred_fallthru
    _
  %v36 = vld [vmem:[%s0] sm:$0xf]
  %v37 = vunpack.c.l.bf16 %v36
  %vm38 = vcmask 523264
  %v39 = vsel %vm38, %v37, 0.0
  %40 = vadd.xlane.f32.xlu0 %v39
  %v41 = vpop.xlane.xlu0 %40
  %v42 = vrcp.pop 64.0
  %v43 = vmul.f32 %v41, %v42
  %v44 = vsub.f32 %v37, %v43
  %v45 = vmul.f32 %v44, %v44
  %v46 = vsel %vm38, %v45, 0.0
  %47 = vadd.xlane.f32.xlu0 %v46
  %v48 = vpop.xlane.xlu0 %47
  %v49 = vmul.f32 %v48, %v42
  %v50 = vadd.f32 %v49, 1e-05
  %v51 = vrsqrt.pop %v50
  %v52 = vmul.f32 %v44, %v51
  %v53 = vld [vmem:[%s1] sm:$0x1]
  %v55 = vlaneseq
  %v56 = vshrl.u32 %v55, 7
  %v57 = vsub.s32 0, %v56
  %v58 = vrot.slane %v53, %v57
  %v60 = vmul.f32 %v52, %v58
  %v61 = vld [vmem:[%s2] sm:$0x1]
  %v63 = vlaneseq
  %v64 = vshrl.u32 %v63, 7
  %v65 = vsub.s32 0, %v64
  %v66 = vrot.slane %v61, %v65
  %v68 = vadd.f32 %v60, %v66
  %v69 = vpack.c.bf16 %v68, %v68
  %v70 = vld [vmem:[%s3] sm:$0xf]
  %v71 = vld [vmem:[%s3 + $0x4] sm:$0xf]
  %v72 = vld [vmem:[%s3 + $0x8] sm:$0xf]
  %v73 = vld [vmem:[%s3 + $0xc] sm:$0xf]
  %v74 = vld [vmem:[%s3 + $0x10] sm:$0xf]
  %v75 = vld [vmem:[%s3 + $0x14] sm:$0xf]
  %v76 = vld [vmem:[%s3 + $0x18] sm:$0xf]
  %v77 = vld [vmem:[%s3 + $0x1c] sm:$0xf]
  %v78 = vld [vmem:[%s4] sm:$0x1]
  %v80 = vlaneseq
  %v81 = vshrl.u32 %v80, 7
  %v82 = vsub.s32 0, %v81
  %v83 = vrot.slane %v78, %v82
  %v93 = vunpack.c.l.b16 %v70
  %v94 = vunpack.c.l.b16 %v71
  %v95 = vunpack.c.l.b16 %v72
  %v96 = vunpack.c.l.b16 %v73
  %v97 = vunpack.c.l.b16 %v74
  %v98 = vunpack.c.l.b16 %v75
  %v99 = vunpack.c.l.b16 %v76
  %v100 = vunpack.c.l.b16 %v77
  %v101 = vpack.c.b16 %v94, %v93
  %v102 = vpack.c.b16 %v96, %v95
  %v103 = vpack.c.b16 %v98, %v97
  %v104 = vpack.c.b16 %v100, %v99
  %v110 = vsel %vm38, %v69, 0
  %112 = vmatprep.subr.bf16.mxu0 0
  %113 = vmatpush1.bf16.msra.mxu0 %v101
  %114 = vmatprep.subr.bf16.mxu0 0
  %115 = vmatpush1.bf16.msra.mxu0 %v102
  %116 = vmatprep.subr.bf16.mxu0 0
  %117 = vmatpush1.bf16.msra.mxu0 %v103
  %118 = vmatprep.subr.bf16.mxu0 0
  %119 = vmatpush1.bf16.msra.mxu0 %v104
  %120 = vmatprep.subr.bf16.mxu0 0
  %121 = vmatpush1.bf16.msra.mxu0 0
  %122 = vmatprep.subr.bf16.mxu0 0
  %123 = vmatpush1.bf16.msra.mxu0 0
  %124 = vmatprep.subr.bf16.mxu0 0
  %125 = vmatpush1.bf16.msra.mxu0 0
  %126 = vmatprep.subr.bf16.mxu0 0
  %127 = vmatpush1.bf16.msra.mxu0 0
  %128 = vmatprep.subr.bf16.mxu0 0
  %129 = vmatpush1.bf16.msra.mxu0 0
  %130 = vmatprep.subr.bf16.mxu0 0
  %131 = vmatpush1.bf16.msra.mxu0 0
  %132 = vmatprep.subr.bf16.mxu0 0
  %133 = vmatpush1.bf16.msra.mxu0 0
  %134 = vmatprep.subr.bf16.mxu0 0
  %135 = vmatpush1.bf16.msra.mxu0 0
  %136 = vmatprep.subr.bf16.mxu0 0
  %137 = vmatpush1.bf16.msra.mxu0 0
  %138 = vmatprep.subr.bf16.mxu0 0
  %139 = vmatpush1.bf16.msra.mxu0 0
  %140 = vmatprep.subr.bf16.mxu0 0
  %141 = vmatpush1.bf16.msra.mxu0 0
  %142 = vmatprep.subr.bf16.mxu0 0
  %143 = vmatpush1.bf16.msra.mxu0 0
  %144 = vmatprep.mubr.bf16.mxu0 0
  %145 = vmatmul.mubr.bf16.gmra.mrb[0].mxu0 %v110
  %v146 = vpop.f32.mrb[0].mxu0
  %v147 = vadd.f32 %v83, %v146
  %v148 = vpop.f32.mrb[0].mxu0
  %v149 = vpop.f32.mrb[0].mxu0
  %v150 = vpop.f32.mrb[0].mxu0
  %151 = vdwg.mxu0
  %v152 = vld [vmem:[%s5] sm:$0xf]
  %v153 = vld [vmem:[%s5 + $0x4] sm:$0xf]
  %v154 = vld [vmem:[%s5 + $0x8] sm:$0xf]
  %v155 = vld [vmem:[%s5 + $0xc] sm:$0xf]
  %v156 = vld [vmem:[%s5 + $0x10] sm:$0xf]
  %v157 = vld [vmem:[%s5 + $0x14] sm:$0xf]
  %v158 = vld [vmem:[%s5 + $0x18] sm:$0xf]
  %v159 = vld [vmem:[%s5 + $0x1c] sm:$0xf]
  %v160 = vld [vmem:[%s6] sm:$0x1]
  %v162 = vlaneseq
  %v163 = vshrl.u32 %v162, 7
  %v164 = vsub.s32 0, %v163
  %v165 = vrot.slane %v160, %v164
  %v175 = vunpack.c.l.b16 %v152
  %v176 = vunpack.c.l.b16 %v153
  %v177 = vunpack.c.l.b16 %v154
  %v178 = vunpack.c.l.b16 %v155
  %v179 = vunpack.c.l.b16 %v156
  %v180 = vunpack.c.l.b16 %v157
  %v181 = vunpack.c.l.b16 %v158
  %v182 = vunpack.c.l.b16 %v159
  %v183 = vpack.c.b16 %v176, %v175
  %v184 = vpack.c.b16 %v178, %v177
  %v185 = vpack.c.b16 %v180, %v179
  %v186 = vpack.c.b16 %v182, %v181
  %191 = vmatprep.subr.bf16.mxu0 0
  %192 = vmatpush1.bf16.msra.mxu0 %v183
  %193 = vmatprep.subr.bf16.mxu0 0
  %194 = vmatpush1.bf16.msra.mxu0 %v184
  %195 = vmatprep.subr.bf16.mxu0 0
  %196 = vmatpush1.bf16.msra.mxu0 %v185
  %197 = vmatprep.subr.bf16.mxu0 0
  %198 = vmatpush1.bf16.msra.mxu0 %v186
  %199 = vmatprep.subr.bf16.mxu0 0
  %200 = vmatpush1.bf16.msra.mxu0 0
  %201 = vmatprep.subr.bf16.mxu0 0
  %202 = vmatpush1.bf16.msra.mxu0 0
  %203 = vmatprep.subr.bf16.mxu0 0
  %204 = vmatpush1.bf16.msra.mxu0 0
  %205 = vmatprep.subr.bf16.mxu0 0
  %206 = vmatpush1.bf16.msra.mxu0 0
  %207 = vmatprep.subr.bf16.mxu0 0
  %208 = vmatpush1.bf16.msra.mxu0 0
  %209 = vmatprep.subr.bf16.mxu0 0
  %210 = vmatpush1.bf16.msra.mxu0 0
  %211 = vmatprep.subr.bf16.mxu0 0
  %212 = vmatpush1.bf16.msra.mxu0 0
  %213 = vmatprep.subr.bf16.mxu0 0
  %214 = vmatpush1.bf16.msra.mxu0 0
  %215 = vmatprep.subr.bf16.mxu0 0
  %216 = vmatpush1.bf16.msra.mxu0 0
  %217 = vmatprep.subr.bf16.mxu0 0
  %218 = vmatpush1.bf16.msra.mxu0 0
  %219 = vmatprep.subr.bf16.mxu0 0
  %220 = vmatpush1.bf16.msra.mxu0 0
  %221 = vmatprep.subr.bf16.mxu0 0
  %222 = vmatpush1.bf16.msra.mxu0 0
  %223 = vmatprep.mubr.bf16.mxu0 0
  %224 = vmatmul.mubr.bf16.gmra.mrb[0].mxu0 %v110
  %v225 = vpop.f32.mrb[0].mxu0
  %v226 = vadd.f32 %v165, %v225
  %v227 = vpop.f32.mrb[0].mxu0
  %v228 = vpop.f32.mrb[0].mxu0
  %v229 = vpop.f32.mrb[0].mxu0
  %230 = vdwg.mxu0
  %v231 = vld [vmem:[%s7] sm:$0xf]
  %v232 = vld [vmem:[%s7 + $0x4] sm:$0xf]
  %v233 = vld [vmem:[%s7 + $0x8] sm:$0xf]
  %v234 = vld [vmem:[%s7 + $0xc] sm:$0xf]
  %v235 = vld [vmem:[%s7 + $0x10] sm:$0xf]
  %v236 = vld [vmem:[%s7 + $0x14] sm:$0xf]
  %v237 = vld [vmem:[%s7 + $0x18] sm:$0xf]
  %v238 = vld [vmem:[%s7 + $0x1c] sm:$0xf]
  %v239 = vld [vmem:[%s8] sm:$0x1]
  %v241 = vlaneseq
  %v242 = vshrl.u32 %v241, 7
  %v243 = vsub.s32 0, %v242
  %v244 = vrot.slane %v239, %v243
  %v254 = vunpack.c.l.b16 %v231
  %v255 = vunpack.c.l.b16 %v232
  %v256 = vunpack.c.l.b16 %v233
  %v257 = vunpack.c.l.b16 %v234
  %v258 = vunpack.c.l.b16 %v235
  %v259 = vunpack.c.l.b16 %v236
  %v260 = vunpack.c.l.b16 %v237
  %v261 = vunpack.c.l.b16 %v238
  %v262 = vpack.c.b16 %v255, %v254
  %v263 = vpack.c.b16 %v257, %v256
  %v264 = vpack.c.b16 %v259, %v258
  %v265 = vpack.c.b16 %v261, %v260
  %270 = vmatprep.subr.bf16.mxu0 0
  %271 = vmatpush1.bf16.msra.mxu0 %v262
  %272 = vmatprep.subr.bf16.mxu0 0
  %273 = vmatpush1.bf16.msra.mxu0 %v263
  %274 = vmatprep.subr.bf16.mxu0 0
  %275 = vmatpush1.bf16.msra.mxu0 %v264
  %276 = vmatprep.subr.bf16.mxu0 0
  %277 = vmatpush1.bf16.msra.mxu0 %v265
  %278 = vmatprep.subr.bf16.mxu0 0
  %279 = vmatpush1.bf16.msra.mxu0 0
  %280 = vmatprep.subr.bf16.mxu0 0
  %281 = vmatpush1.bf16.msra.mxu0 0
  %282 = vmatprep.subr.bf16.mxu0 0
  %283 = vmatpush1.bf16.msra.mxu0 0
  %284 = vmatprep.subr.bf16.mxu0 0
  %285 = vmatpush1.bf16.msra.mxu0 0
  %286 = vmatprep.subr.bf16.mxu0 0
  %287 = vmatpush1.bf16.msra.mxu0 0
  %288 = vmatprep.subr.bf16.mxu0 0
  %289 = vmatpush1.bf16.msra.mxu0 0
  %290 = vmatprep.subr.bf16.mxu0 0
  %291 = vmatpush1.bf16.msra.mxu0 0
  %292 = vmatprep.subr.bf16.mxu0 0
  %293 = vmatpush1.bf16.msra.mxu0 0
  %294 = vmatprep.subr.bf16.mxu0 0
  %295 = vmatpush1.bf16.msra.mxu0 0
  %296 = vmatprep.subr.bf16.mxu0 0
  %297 = vmatpush1.bf16.msra.mxu0 0
  %298 = vmatprep.subr.bf16.mxu0 0
  %299 = vmatpush1.bf16.msra.mxu0 0
  %300 = vmatprep.subr.bf16.mxu0 0
  %301 = vmatpush1.bf16.msra.mxu0 0
  %302 = vmatprep.mubr.bf16.mxu0 0
  %303 = vmatmul.mubr.bf16.gmra.mrb[0].mxu0 %v110
  %v304 = vpop.f32.mrb[0].mxu0
  %v305 = vadd.f32 %v244, %v304
  %v306 = vpop.f32.mrb[0].mxu0
  %v307 = vpop.f32.mrb[0].mxu0
  %v308 = vpop.f32.mrb[0].mxu0
  %309 = vdwg.mxu0
  %v310 = vpack.c.bf16 %v147, %v147
  %vm311 = vcmask 519168
  %312 = vst.msk [vmem:[%s9] sm:$0xf] %vm311, %v310
  %v313 = vpack.c.bf16 %v226, %v226
  %314 = vst.msk [vmem:[%s10] sm:$0xf] %vm311, %v313
  %v315 = vpack.c.bf16 %v305, %v305
  %316 = vst.msk [vmem:[%s11] sm:$0xf] %vm311, %v315
  // Predicated region
  $region38: #{bi_unet_forward.22} parent=0 // pred_check
    _
  $region39: #{bi_unet_forward.22} parent=0 // pred_check_branch
    %318 = sbr.rel (0) target = $region41
  $region40: #{bi_unet_forward.22} parent=0 // pred_region
    _
  $region41: #{bi_unet_forward.22} parent=0 // pred_fallthru
    _
  // Predicated region
  $region42: #{bi_unet_forward.22} parent=0 // pred_check
    _
  $region43: #{bi_unet_forward.22} parent=0 // pred_check_branch
    %320 = sbr.rel (0) target = $region45
  $region44: #{bi_unet_forward.22} parent=0 // pred_region
    _
  $region45: #{bi_unet_forward.22} parent=0 // pred_fallthru
    _
  // Predicated region
  $region46: #{bi_unet_forward.22} parent=0 // pred_check
    _
  $region47: #{bi_unet_forward.22} parent=0 // pred_check_branch
    %322 = sbr.rel (0) target = $region49
  $region48: #{bi_unet_forward.22} parent=0 // pred_region
    _
  $region49: #{bi_unet_forward.22} parent=0 // pred_fallthru
    _
  // Predicated region
  $region50: #{bi_unet_forward.22} parent=0 // pred_check
    _
  $region51: #{bi_unet_forward.22} parent=0 // pred_check_branch
    %324 = sbr.rel (0) target = $region53
  $region52: #{bi_unet_forward.22} parent=0 // pred_region
    _
  $region53: #{bi_unet_forward.22} parent=0 // pred_fallthru
    _
  // Predicated region
  $region54: #{bi_unet_forward.22} parent=0 // pred_check
    _
  $region55: #{bi_unet_forward.22} parent=0 // pred_check_branch
    %326 = sbr.rel (0) target = $region57
  $region56: #{bi_unet_forward.22} parent=0 // pred_region
    _
  $region57: #{bi_unet_forward.22} parent=0 // pred_fallthru
    _
  // Predicated region
  $region58: #{bi_unet_forward.22} parent=0 // pred_check
    _
  $region59: #{bi_unet_forward.22} parent=0 // pred_check_branch
    %328 = sbr.rel (0) target = $region61
  $region60: #{bi_unet_forward.22} parent=0 // pred_region
    _
  $region61: #{bi_unet_forward.22} parent=0 // pred_fallthru
    _

// kernel: bi_unet_forward.23
$region0: #{bi_unet_forward.23}
  #allocation0 [shape = 'u32[]', space=smem, size = 0x4, offset = 0x4, fixed_abs, tag = 'smem constant byte address 0x4 - core index']
  #allocation1 [shape = 'u32[144,128]{1,0:T(1,128)}', space=vmem, size = 0x12000, scoped, tag = 'internal scratch']
  #allocation2 [shape = 'f32[4,4]{1,0:T(4,128)}', space=vmem, size = 0x800, scoped, tag = 'scratch operand']
  #allocation3 [shape = 'f32[4,4]{1,0:T(4,128)}', space=vmem, size = 0x800, scoped, tag = 'scratch operand']
  #allocation4 [shape = 'f32[4,64]{1,0:T(4,128)}', space=vmem, size = 0x800, scoped, tag = 'scratch operand']
  %s0 = inlined_call_operand.vmem [shape: bf16[2,4,64], index: 0, kind: input, shape index: {}]
  %s1 = inlined_call_operand.vmem [shape: bf16[2,4,64], index: 1, kind: input, shape index: {}]
  %s2 = inlined_call_operand.vmem [shape: bf16[2,4,64], index: 2, kind: input, shape index: {}]
  %s3 = inlined_call_operand.vmem [shape: bf16[2,4,64], index: 3, kind: output, shape index: {}]
  %s4 = sld [smem:[#allocation0]]
  $region53: #{bi_unet_forward.23} parent=0
    _
  %s6 = ssub.s32 1, %s4
  %s7 = scalar_select 0, %s6, %s4
  loop: start=0, step=1, limit=4
  $region2: #{bi_unet_forward.23} parent=0 // loop_pre_header
    _
  $region3: #{bi_unet_forward.23} parent=0 // loop_header
    %s9 = sphi 0, %s13
    %p10 = scmp.ge.s32.totalorder %s9, 4
    %s16 = sphi 0, %s35
    %s17 = sphi 0, %s31
    %s18 = sphi 0, %s27
    %s19 = sphi 0, %s16
    %s20 = sphi 0, %s17
    %s21 = sphi 0, %s18
    %s22 = sphi 0, %s19
    %s23 = sphi 0, %s20
    %s24 = sphi 0, %s21
    %s40 = sphi 0, %s42
    %s43 = sphi 0, %s40
    %s44 = sphi 0, %s43
    %s60 = sphi 0, %s44
    %s68 = sphi 0, %s70
    %s71 = sphi 0, %s68
    %s72 = sphi 0, %s71
    %s88 = sphi 0, %s72
    %s96 = sphi 0, %s98
    %s99 = sphi 0, %s96
    %s100 = sphi 0, %s99
    %s116 = sphi 0, %s100
    %s124 = sphi 0, %s126
    %s127 = sphi 0, %s124
    %s128 = sphi 0, %s127
    %s144 = sphi 0, %s128
  $region4: #{bi_unet_forward.23} parent=0 // loop_header_branch
    %12 = sbr.rel (%p10) target = $region8
  $region5: #{bi_unet_forward.23} parent=0 // loop_body
    %s14 = ssub.s32 %s9, 1
    %s15 = ssub.s32 %s9, 2
    %s25 = sadd.s32 1, %s18
    %p26 = scmp.ge.s32.totalorder %s25, 1
    %s27 = scalar_select %p26, 0, %s25
    %s28 = sadd.s32 1, %s17
    %s29 = scalar_select %p26, %s28, %s17
    %p30 = scmp.ge.s32.totalorder %s29, 1
    %s31 = scalar_select %p30, 0, %s29
    %s32 = sadd.s32 1, %s16
    %s33 = scalar_select %p30, %s32, %s16
    %p34 = scmp.ge.s32.totalorder %s33, 2
    %s35 = scalar_select %p34, 0, %s33
    %s36 = ssub.s32 %s16, %s35
    %s37 = ssub.s32 %s17, %s31
    %s38 = sor.u32 %s36, %s37
    %p39 = scmp.eq.s32.totalorder %s38, 0
    %s41 = sadd.s32 %s40, 1
    %s42 = scalar_select %p39, %s40, %s41
    %p45 = pneg %p39
    %p46 = scmp.eq.s32.totalorder %s9, 1
    %p47 = por %p45, %p46
    %p48 = scmp.ne.s32.totalorder %s40, %s43
    %p49 = scmp.eq.s32.totalorder %s9, 0
    %p50 = por %p48, %p49
    %p51 = scmp.ne.s32.totalorder %s40, %s43
    %p52 = scmp.eq.s32.totalorder %s14, 1
    %p53 = por %p51, %p52
    %p54 = scmp.ne.s32.totalorder %s43, %s44
    %p55 = scmp.eq.s32.totalorder %s14, 0
    %p56 = por %p54, %p55
    %p57 = scmp.ne.s32.totalorder %s43, %s44
    %p58 = scmp.eq.s32.totalorder %s15, 1
    %p59 = por %p57, %p58
    %p61 = scmp.ne.s32.totalorder %s44, %s60
    %p62 = scmp.eq.s32.totalorder %s15, 0
    %p63 = por %p61, %p62
    %s64 = ssub.s32 %s16, %s35
    %s65 = ssub.s32 %s18, %s27
    %s66 = sor.u32 %s64, %s65
    %p67 = scmp.eq.s32.totalorder %s66, 0
    %s69 = sadd.s32 %s68, 1
    %s70 = scalar_select %p67, %s68, %s69
    %p73 = pneg %p67
    %p74 = scmp.eq.s32.totalorder %s9, 1
    %p75 = por %p73, %p74
    %p76 = scmp.ne.s32.totalorder %s68, %s71
    %p77 = scmp.eq.s32.totalorder %s9, 0
    %p78 = por %p76, %p77
    %p79 = scmp.ne.s32.totalorder %s68, %s71
    %p80 = scmp.eq.s32.totalorder %s14, 1
    %p81 = por %p79, %p80
    %p82 = scmp.ne.s32.totalorder %s71, %s72
    %p83 = scmp.eq.s32.totalorder %s14, 0
    %p84 = por %p82, %p83
    %p85 = scmp.ne.s32.totalorder %s71, %s72
    %p86 = scmp.eq.s32.totalorder %s15, 1
    %p87 = por %p85, %p86
    %p89 = scmp.ne.s32.totalorder %s72, %s88
    %p90 = scmp.eq.s32.totalorder %s15, 0
    %p91 = por %p89, %p90
    %s92 = ssub.s32 %s16, %s35
    %s93 = ssub.s32 %s18, %s27
    %s94 = sor.u32 %s92, %s93
    %p95 = scmp.eq.s32.totalorder %s94, 0
    %s97 = sadd.s32 %s96, 1
    %s98 = scalar_select %p95, %s96, %s97
    %p101 = pneg %p95
    %p102 = scmp.eq.s32.totalorder %s9, 1
    %p103 = por %p101, %p102
    %p104 = scmp.ne.s32.totalorder %s96, %s99
    %p105 = scmp.eq.s32.totalorder %s9, 0
    %p106 = por %p104, %p105
    %p107 = scmp.ne.s32.totalorder %s96, %s99
    %p108 = scmp.eq.s32.totalorder %s14, 1
    %p109 = por %p107, %p108
    %p110 = scmp.ne.s32.totalorder %s99, %s100
    %p111 = scmp.eq.s32.totalorder %s14, 0
    %p112 = por %p110, %p111
    %p113 = scmp.ne.s32.totalorder %s99, %s100
    %p114 = scmp.eq.s32.totalorder %s15, 1
    %p115 = por %p113, %p114
    %p117 = scmp.ne.s32.totalorder %s100, %s116
    %p118 = scmp.eq.s32.totalorder %s15, 0
    %p119 = por %p117, %p118
    %s120 = ssub.s32 %s16, %s35
    %s121 = ssub.s32 %s17, %s31
    %s122 = sor.u32 %s120, %s121
    %p123 = scmp.eq.s32.totalorder %s122, 0
    %s125 = sadd.s32 %s124, 1
    %s126 = scalar_select %p123, %s124, %s125
    %p129 = pneg %p123
    %p130 = scmp.eq.s32.totalorder %s9, 1
    %p131 = por %p129, %p130
    %p132 = scmp.ne.s32.totalorder %s124, %s127
    %p133 = scmp.eq.s32.totalorder %s9, 0
    %p134 = por %p132, %p133
    %p135 = scmp.ne.s32.totalorder %s124, %s127
    %p136 = scmp.eq.s32.totalorder %s14, 1
    %p137 = por %p135, %p136
    %p138 = scmp.ne.s32.totalorder %s127, %s128
    %p139 = scmp.eq.s32.totalorder %s14, 0
    %p140 = por %p138, %p139
    %p141 = scmp.ne.s32.totalorder %s127, %s128
    %p142 = scmp.eq.s32.totalorder %s15, 1
    %p143 = por %p141, %p142
    %p145 = scmp.ne.s32.totalorder %s128, %s144
    %p146 = scmp.eq.s32.totalorder %s15, 0
    %p147 = por %p145, %p146
    %p148 = scmp.le.s32.totalorder 1, %s9
    %p149 = scmp.lt.s32.totalorder %s9, 3
    %p150 = pnand %p148, %p149
    %p151 = pneg %p150
    // Predicated region
    $region9: #{bi_unet_forward.23} parent=5 // pred_check
      _
    $region10: #{bi_unet_forward.23} parent=5 // pred_check_branch
      %153 = sbr.rel (%p150) target = $region12
    $region11: #{bi_unet_forward.23} parent=5 // pred_region
      %s154 = ssub.s32 %s9, 1
    $region12: #{bi_unet_forward.23} parent=5 // pred_fallthru
      _
    %p155 = scmp.lt.s32.totalorder %s9, 2
    // Predicated region
    $region13: #{bi_unet_forward.23} parent=5 // pred_check
      %p156 = pneg %p155
    $region14: #{bi_unet_forward.23} parent=5 // pred_check_branch
      %158 = sbr.rel (%p156) target = $region16
    $region15: #{bi_unet_forward.23} parent=5 // pred_region
      // Predicated region
      $region17: #{bi_unet_forward.23} parent=15 // pred_check
        %p159 = pneg %p50
      $region18: #{bi_unet_forward.23} parent=15 // pred_check_branch
        %161 = sbr.rel (%p159) target = $region20
      $region19: #{bi_unet_forward.23} parent=15 // pred_region
        %p162 = scmp.lt.s32.totalorder %s16, 1
        %s163 = scalar_select %p162, %s16, 1
        %p164 = scmp.lt.s32.totalorder %s17, 0
        %s165 = scalar_select %p164, %s17, 0
        %s166 = sadd.s32 %s165, %s163
        %s167 = smul.addr %s166, 2
        %s168 = scalar_lea.vmem %s0, %s167
      $region20: #{bi_unet_forward.23} parent=15 // pred_fallthru
        _
      // Predicated region
      $region21: #{bi_unet_forward.23} parent=15 // pred_check
        %p169 = pneg %p78
      $region22: #{bi_unet_forward.23} parent=15 // pred_check_branch
        %171 = sbr.rel (%p169) target = $region24
      $region23: #{bi_unet_forward.23} parent=15 // pred_region
        %p172 = scmp.lt.s32.totalorder %s16, 1
        %s173 = scalar_select %p172, %s16, 1
        %p174 = scmp.lt.s32.totalorder %s18, 0
        %s175 = scalar_select %p174, %s18, 0
        %s176 = sadd.s32 %s175, %s173
        %s177 = smul.addr %s176, 2
        %s178 = scalar_lea.vmem %s1, %s177
      $region24: #{bi_unet_forward.23} parent=15 // pred_fallthru
        _
      // Predicated region
      $region25: #{bi_unet_forward.23} parent=15 // pred_check
        %p179 = pneg %p106
      $region26: #{bi_unet_forward.23} parent=15 // pred_check_branch
        %181 = sbr.rel (%p179) target = $region28
      $region27: #{bi_unet_forward.23} parent=15 // pred_region
        %p182 = scmp.lt.s32.totalorder %s16, 1
        %s183 = scalar_select %p182, %s16, 1
        %p184 = scmp.lt.s32.totalorder %s18, 0
        %s185 = scalar_select %p184, %s18, 0
        %s186 = sadd.s32 %s185, %s183
        %s187 = smul.addr %s186, 2
        %s188 = scalar_lea.vmem %s2, %s187
      $region28: #{bi_unet_forward.23} parent=15 // pred_fallthru
        _
    $region16: #{bi_unet_forward.23} parent=5 // pred_fallthru
      _
    %p189 = scmp.le.s32.totalorder 1, %s9
    %p190 = scmp.lt.s32.totalorder %s9, 3
    %p191 = pnand %p189, %p190
    %p192 = pneg %p191
    // Predicated region
    $region29: #{bi_unet_forward.23} parent=5 // pred_check
      _
    $region30: #{bi_unet_forward.23} parent=5 // pred_check_branch
      %194 = sbr.rel (%p191) target = $region32
    $region31: #{bi_unet_forward.23} parent=5 // pred_region
      %s195 = ssub.s32 %s9, 1
      %p196 = scmp.lt.s32.totalorder %s19, 1
      %s197 = scalar_select %p196, %s19, 1
      %p198 = scmp.lt.s32.totalorder %s20, 0
      %s199 = scalar_select %p198, %s20, 0
      %s200 = sadd.s32 %s199, %s197
      %s201 = smul.addr %s200, 2
      %s202 = scalar_lea.vmem %s0, %s201
      %p203 = pneg %p56
      %p204 = pneg %p53
      %p205 = scmp.lt.s32.totalorder %s19, 1
      %s206 = scalar_select %p205, %s19, 1
      %p207 = scmp.lt.s32.totalorder %s21, 0
      %s208 = scalar_select %p207, %s21, 0
      %s209 = sadd.s32 %s208, %s206
      %s210 = smul.addr %s209, 2
      %s211 = scalar_lea.vmem %s1, %s210
      %p212 = pneg %p84
      %p213 = pneg %p81
      %p214 = scmp.lt.s32.totalorder %s19, 1
      %s215 = scalar_select %p214, %s19, 1
      %p216 = scmp.lt.s32.totalorder %s21, 0
      %s217 = scalar_select %p216, %s21, 0
      %s218 = sadd.s32 %s217, %s215
      %s219 = smul.addr %s218, 2
      %s220 = scalar_lea.vmem %s2, %s219
      %p221 = pneg %p112
      %p222 = pneg %p109
      %p223 = pneg %p140
      %p224 = pneg %p137
      %p225 = scmp.lt.s32.totalorder %s19, 1
      %s226 = scalar_select %p225, %s19, 1
      %p227 = scmp.lt.s32.totalorder %s20, 0
      %s228 = scalar_select %p227, %s20, 0
      %s229 = sadd.s32 %s228, %s226
      %s230 = smul.addr %s229, 2
      %s231 = scalar_lea.vmem %s3, %s230
      %p232 = scmp.lt.s32.totalorder %s19, 1
      %s233 = scalar_select %p232, %s19, 1
      %p234 = scmp.lt.s32.totalorder %s20, 0
      %s235 = scalar_select %p234, %s20, 0
      %s236 = sadd.s32 %s235, %s233
      %s237 = smul.addr %s236, 2
      %s238 = scalar_lea.vmem %s0, %s237
      %p239 = scmp.lt.s32.totalorder %s19, 1
      %s240 = scalar_select %p239, %s19, 1
      %p241 = scmp.lt.s32.totalorder %s21, 0
      %s242 = scalar_select %p241, %s21, 0
      %s243 = sadd.s32 %s242, %s240
      %s244 = smul.addr %s243, 2
      %s245 = scalar_lea.vmem %s1, %s244
      %p246 = scmp.lt.s32.totalorder %s19, 1
      %s247 = scalar_select %p246, %s19, 1
      %p248 = scmp.lt.s32.totalorder %s21, 0
      %s249 = scalar_select %p248, %s21, 0
      %s250 = sadd.s32 %s249, %s247
      %s251 = smul.addr %s250, 2
      %s252 = scalar_lea.vmem %s2, %s251
      %p253 = scmp.lt.s32.totalorder %s19, 1
      %s254 = scalar_select %p253, %s19, 1
      %p255 = scmp.lt.s32.totalorder %s20, 0
      %s256 = scalar_select %p255, %s20, 0
      %s257 = sadd.s32 %s256, %s254
      %s258 = smul.addr %s257, 2
      %s259 = scalar_lea.vmem %s3, %s258
      %p261 = scmp.eq.s32.totalorder %s21, 0
      // Predicated region
      $region33: #{bi_unet_forward.23} parent=31 // pred_check
        %p262 = pneg %p261
      $region34: #{bi_unet_forward.23} parent=31 // pred_check_branch
        %264 = sbr.rel (%p262) target = $region36
      $region35: #{bi_unet_forward.23} parent=31 // pred_region
        %vm265 = vcmask 27648
        %266 = vst.msk [vmem:[#allocation2] sm:$0xf] %vm265, -inf
        %267 = vst.msk [vmem:[#allocation3] sm:$0xf] %vm265, 0.0
        %vm268 = vcmask 519168
        %269 = vst.msk [vmem:[#allocation4] sm:$0xf] %vm268, 0.0
      $region36: #{bi_unet_forward.23} parent=31 // pred_fallthru
        _
      %v270 = vld [vmem:[%s238] sm:$0x3]
      %v271 = vld [vmem:[%s245] sm:$0x3]
      %v272 = vld [vmem:[%s252] sm:$0x3]
      %vm273 = vcmask 130048
      %v275 = vsel %vm273, %v270, 0
      %v278 = vsel %vm273, %v271, 0
      %280 = vmatprep.subr.bf16.mxu0 0
      %281 = vmatpush1.bf16.xpose.msra.mxu0 %v278
      %282 = vmatprep.subr.bf16.mxu0 0
      %283 = vmatpush1.bf16.xpose.msra.mxu0 0
      %284 = vmatprep.subr.bf16.mxu0 0
      %285 = vmatpush1.bf16.xpose.msra.mxu0 0
      %286 = vmatprep.subr.bf16.mxu0 0
      %287 = vmatpush1.bf16.xpose.msra.mxu0 0
      %288 = vmatprep.subr.bf16.mxu0 0
      %289 = vmatpush1.bf16.xpose.msra.mxu0 0
      %290 = vmatprep.subr.bf16.mxu0 0
      %291 = vmatpush1.bf16.xpose.msra.mxu0 0
      %292 = vmatprep.subr.bf16.mxu0 0
      %293 = vmatpush1.bf16.xpose.msra.mxu0 0
      %294 = vmatprep.subr.bf16.mxu0 0
      %295 = vmatpush1.bf16.xpose.msra.mxu0 0
      %296 = vmatprep.subr.bf16.mxu0 0
      %297 = vmatpush1.bf16.xpose.msra.mxu0 0
      %298 = vmatprep.subr.bf16.mxu0 0
      %299 = vmatpush1.bf16.xpose.msra.mxu0 0
      %300 = vmatprep.subr.bf16.mxu0 0
      %301 = vmatpush1.bf16.xpose.msra.mxu0 0
      %302 = vmatprep.subr.bf16.mxu0 0
      %303 = vmatpush1.bf16.xpose.msra.mxu0 0
      %304 = vmatprep.subr.bf16.mxu0 0
      %305 = vmatpush1.bf16.xpose.msra.mxu0 0
      %306 = vmatprep.subr.bf16.mxu0 0
      %307 = vmatpush1.bf16.xpose.msra.mxu0 0
      %308 = vmatprep.subr.bf16.mxu0 0
      %309 = vmatpush1.bf16.xpose.msra.mxu0 0
      %310 = vmatprep.subr.bf16.mxu0 0
      %311 = vmatpush1.bf16.xpose.msra.mxu0 0
      %312 = vmatprep.mubr.bf16.mxu0 0
      %313 = vmatmul.mubr.bf16.gmra.mrb[0].mxu0 %v275
      %v314 = vpop.f32.mrb[0].mxu0
      %v315 = vadd.f32 0.0, %v314
      %v316 = vpop.f32.mrb[0].mxu0
      %v317 = vpop.f32.mrb[0].mxu0
      %v318 = vpop.f32.mrb[0].mxu0
      %319 = vdwg.mxu0
      %v320 = vld [vmem:[#allocation2] sm:$0xf]
      %vm321 = vcmask 27648
      %v322 = vsel %vm321, %v315, -inf
      %323 = vmax.xlane.f32.xlu0 %v322
      %v324 = vpop.xlane.xlu0 %323
      %v325 = vmax.f32 %v320, %v324
      %v326 = vsub.f32 %v320, %v325
      %v327 = vmul.f32 %v326, 1.442695
      %v328 = vpow.pop %v327
      %330 = vset.pattern.permute.xlu0 0
      %331 = vperm.xlu0 %330, %v325
      %v332 = vpop.permute.xlu0 %331
      %v334 = vsub.f32 %v315, %v332
      %v335 = vmul.f32 %v334, 1.442695
      %v336 = vpow.pop %v335
      %v337 = vld [vmem:[#allocation3] sm:$0xf]
      %v338 = vmul.f32 %v328, %v337
      %v339 = vsel %vm321, %v336, 0.0
      %340 = vadd.xlane.f32.xlu0 %v339
      %v341 = vpop.xlane.xlu0 %340
      %v342 = vadd.f32 %v338, %v341
      %vm343 = vcmask 3072
      %344 = vst.msk [vmem:[#allocation3] sm:$0xf] %vm343, %v342
      %v345 = vpack.c.bf16 %v336, %v336
      %vm346 = vcmask 31744
      %v348 = vsel %vm346, %v345, 0
      %vm350 = vcmask 1041408
      %v352 = vsel %vm350, %v272, 0
      %354 = vmatprep.subr.bf16.mxu0 0
      %355 = vmatpush1.bf16.msra.mxu0 %v352
      %356 = vmatprep.subr.bf16.mxu0 0
      %357 = vmatpush1.bf16.msra.mxu0 0
      %358 = vmatprep.subr.bf16.mxu0 0
      %359 = vmatpush1.bf16.msra.mxu0 0
      %360 = vmatprep.subr.bf16.mxu0 0
      %361 = vmatpush1.bf16.msra.mxu0 0
      %362 = vmatprep.subr.bf16.mxu0 0
      %363 = vmatpush1.bf16.msra.mxu0 0
      %364 = vmatprep.subr.bf16.mxu0 0
      %365 = vmatpush1.bf16.msra.mxu0 0
      %366 = vmatprep.subr.bf16.mxu0 0
      %367 = vmatpush1.bf16.msra.mxu0 0
      %368 = vmatprep.subr.bf16.mxu0 0
      %369 = vmatpush1.bf16.msra.mxu0 0
      %370 = vmatprep.subr.bf16.mxu0 0
      %371 = vmatpush1.bf16.msra.mxu0 0
      %372 = vmatprep.subr.bf16.mxu0 0
      %373 = vmatpush1.bf16.msra.mxu0 0
      %374 = vmatprep.subr.bf16.mxu0 0
      %375 = vmatpush1.bf16.msra.mxu0 0
      %376 = vmatprep.subr.bf16.mxu0 0
      %377 = vmatpush1.bf16.msra.mxu0 0
      %378 = vmatprep.subr.bf16.mxu0 0
      %379 = vmatpush1.bf16.msra.mxu0 0
      %380 = vmatprep.subr.bf16.mxu0 0
      %381 = vmatpush1.bf16.msra.mxu0 0
      %382 = vmatprep.subr.bf16.mxu0 0
      %383 = vmatpush1.bf16.msra.mxu0 0
      %384 = vmatprep.subr.bf16.mxu0 0
      %385 = vmatpush1.bf16.msra.mxu0 0
      %386 = vmatprep.mubr.bf16.mxu0 0
      %387 = vmatmul.mubr.bf16.gmra.mrb[0].mxu0 %v348
      %v388 = vpop.f32.mrb[0].mxu0
      %v389 = vadd.f32 0.0, %v388
      %v390 = vpop.f32.mrb[0].mxu0
      %v391 = vpop.f32.mrb[0].mxu0
      %v392 = vpop.f32.mrb[0].mxu0
      %393 = vdwg.mxu0
      %v394 = vld [vmem:[#allocation4] sm:$0xf]
      %396 = vset.pattern.permute.xlu0 0
      %397 = vperm.xlu0 %396, %v328
      %v398 = vpop.permute.xlu0 %397
      %v400 = vmul.f32 %v398, %v394
      %v401 = vadd.f32 %v400, %v389
      %vm402 = vcmask 125952
      %403 = vst.msk [vmem:[#allocation4] sm:$0xf] %vm402, %v401
      %404 = vst.msk [vmem:[#allocation2] sm:$0xf] %vm343, %v325
      %v407 = vunpack.c.l.s4 1983009808
      %v408 = vunpack.c.0.s8 %v407
      %v409 = vlaneseq
      %v410 = vshrl.u32 %v409, 7
      %v411 = vsub.s32 %v408, %v410
      %v412 = vrot.slane %v270, %v411
      %413 = vrot.lane.b32.xlu0 %v412, 112
      %v414 = vpop.permute.xlu0 %413
      %v417 = vunpack.c.l.s4 1983009808
      %v418 = vunpack.c.0.s8 %v417
      %v419 = vlaneseq
      %v420 = vshrl.u32 %v419, 7
      %v421 = vsub.s32 %v418, %v420
      %v422 = vrot.slane %v271, %v421
      %423 = vrot.lane.b32.xlu0 %v422, 112
      %v424 = vpop.permute.xlu0 %423
      %v426 = vsel %vm273, %v414, 0
      %v429 = vsel %vm273, %v424, 0
      %431 = vmatprep.subr.bf16.mxu0 0
      %432 = vmatpush1.bf16.xpose.msra.mxu0 %v429
      %433 = vmatprep.subr.bf16.mxu0 0
      %434 = vmatpush1.bf16.xpose.msra.mxu0 0
      %435 = vmatprep.subr.bf16.mxu0 0
      %436 = vmatpush1.bf16.xpose.msra.mxu0 0
      %437 = vmatprep.subr.bf16.mxu0 0
      %438 = vmatpush1.bf16.xpose.msra.mxu0 0
      %439 = vmatprep.subr.bf16.mxu0 0
      %440 = vmatpush1.bf16.xpose.msra.mxu0 0
      %441 = vmatprep.subr.bf16.mxu0 0
      %442 = vmatpush1.bf16.xpose.msra.mxu0 0
      %443 = vmatprep.subr.bf16.mxu0 0
      %444 = vmatpush1.bf16.xpose.msra.mxu0 0
      %445 = vmatprep.subr.bf16.mxu0 0
      %446 = vmatpush1.bf16.xpose.msra.mxu0 0
      %447 = vmatprep.subr.bf16.mxu0 0
      %448 = vmatpush1.bf16.xpose.msra.mxu0 0
      %449 = vmatprep.subr.bf16.mxu0 0
      %450 = vmatpush1.bf16.xpose.msra.mxu0 0
      %451 = vmatprep.subr.bf16.mxu0 0
      %452 = vmatpush1.bf16.xpose.msra.mxu0 0
      %453 = vmatprep.subr.bf16.mxu0 0
      %454 = vmatpush1.bf16.xpose.msra.mxu0 0
      %455 = vmatprep.subr.bf16.mxu0 0
      %456 = vmatpush1.bf16.xpose.msra.mxu0 0
      %457 = vmatprep.subr.bf16.mxu0 0
      %458 = vmatpush1.bf16.xpose.msra.mxu0 0
      %459 = vmatprep.subr.bf16.mxu0 0
      %460 = vmatpush1.bf16.xpose.msra.mxu0 0
      %461 = vmatprep.subr.bf16.mxu0 0
      %462 = vmatpush1.bf16.xpose.msra.mxu0 0
      %463 = vmatprep.mubr.bf16.mxu0 0
      %464 = vmatmul.mubr.bf16.gmra.mrb[0].mxu0 %v426
      %v465 = vpop.f32.mrb[0].mxu0
      %v466 = vadd.f32 0.0, %v465
      %v467 = vpop.f32.mrb[0].mxu0
      %v468 = vpop.f32.mrb[0].mxu0
      %v469 = vpop.f32.mrb[0].mxu0
      %470 = vdwg.mxu0
      %v471 = vld [vmem:[#allocation2] sm:$0xf]
      %v472 = vsel %vm321, %v466, -inf
      %473 = vmax.xlane.f32.xlu0 %v472
      %v474 = vpop.xlane.xlu0 %473
      %v475 = vmax.f32 %v471, %v474
      %v476 = vsub.f32 %v471, %v475
      %v477 = vmul.f32 %v476, 1.442695
      %v478 = vpow.pop %v477
      %480 = vset.pattern.permute.xlu0 1
      %481 = vperm.xlu0 %480, %v475
      %v482 = vpop.permute.xlu0 %481
      %v484 = vsub.f32 %v466, %v482
      %v485 = vmul.f32 %v484, 1.442695
      %v486 = vpow.pop %v485
      %v487 = vld [vmem:[#allocation3] sm:$0xf]
      %v488 = vmul.f32 %v478, %v487
      %v489 = vsel %vm321, %v486, 0.0
      %490 = vadd.xlane.f32.xlu0 %v489
      %v491 = vpop.xlane.xlu0 %490
      %v492 = vadd.f32 %v488, %v491
      %vm493 = vcmask 11272
      %494 = vst.msk [vmem:[#allocation3] sm:$0xf] %vm493, %v492
      %v495 = vpack.c.bf16 %v486, %v486
      %v498 = vunpack.c.l.s4 1983009808
      %v499 = vunpack.c.0.s8 %v498
      %v500 = vlaneseq
      %v501 = vshrl.u32 %v500, 7
      %v502 = vsub.s32 %v499, %v501
      %v503 = vrot.slane %v272, %v502
      %504 = vrot.lane.b32.xlu0 %v503, 112
      %v505 = vpop.permute.xlu0 %504
      %v507 = vsel %vm346, %v495, 0
      %v510 = vsel %vm350, %v505, 0
      %512 = vmatprep.subr.bf16.mxu0 0
      %513 = vmatpush1.bf16.msra.mxu0 %v510
      %514 = vmatprep.subr.bf16.mxu0 0
      %515 = vmatpush1.bf16.msra.mxu0 0
      %516 = vmatprep.subr.bf16.mxu0 0
      %517 = vmatpush1.bf16.msra.mxu0 0
      %518 = vmatprep.subr.bf16.mxu0 0
      %519 = vmatpush1.bf16.msra.mxu0 0
      %520 = vmatprep.subr.bf16.mxu0 0
      %521 = vmatpush1.bf16.msra.mxu0 0
      %522 = vmatprep.subr.bf16.mxu0 0
      %523 = vmatpush1.bf16.msra.mxu0 0
      %524 = vmatprep.subr.bf16.mxu0 0
      %525 = vmatpush1.bf16.msra.mxu0 0
      %526 = vmatprep.subr.bf16.mxu0 0
      %527 = vmatpush1.bf16.msra.mxu0 0
      %528 = vmatprep.subr.bf16.mxu0 0
      %529 = vmatpush1.bf16.msra.mxu0 0
      %530 = vmatprep.subr.bf16.mxu0 0
      %531 = vmatpush1.bf16.msra.mxu0 0
      %532 = vmatprep.subr.bf16.mxu0 0
      %533 = vmatpush1.bf16.msra.mxu0 0
      %534 = vmatprep.subr.bf16.mxu0 0
      %535 = vmatpush1.bf16.msra.mxu0 0
      %536 = vmatprep.subr.bf16.mxu0 0
      %537 = vmatpush1.bf16.msra.mxu0 0
      %538 = vmatprep.subr.bf16.mxu0 0
      %539 = vmatpush1.bf16.msra.mxu0 0
      %540 = vmatprep.subr.bf16.mxu0 0
      %541 = vmatpush1.bf16.msra.mxu0 0
      %542 = vmatprep.subr.bf16.mxu0 0
      %543 = vmatpush1.bf16.msra.mxu0 0
      %544 = vmatprep.mubr.bf16.mxu0 0
      %545 = vmatmul.mubr.bf16.gmra.mrb[0].mxu0 %v507
      %v546 = vpop.f32.mrb[0].mxu0
      %v547 = vadd.f32 0.0, %v546
      %v548 = vpop.f32.mrb[0].mxu0
      %v549 = vpop.f32.mrb[0].mxu0
      %v550 = vpop.f32.mrb[0].mxu0
      %551 = vdwg.mxu0
      %v552 = vld [vmem:[#allocation4] sm:$0xf]
      %554 = vset.pattern.permute.xlu0 1
      %555 = vperm.xlu0 %554, %v478
      %v556 = vpop.permute.xlu0 %555
      %v558 = vmul.f32 %v556, %v552
      %560 = vrot.lane.b32.xlu0 %v547, 16
      %v561 = vpop.permute.xlu0 %560
      %v563 = vadd.f32 %v558, %v561
      %vm564 = vcmask 257152
      %565 = vst.msk [vmem:[#allocation4] sm:$0xf] %vm564, %v563
      %566 = vst.msk [vmem:[#allocation2] sm:$0xf] %vm493, %v475
      %567 = vrot.lane.b32.xlu0 %v412, 96
      %v568 = vpop.permute.xlu0 %567
      %569 = vrot.lane.b32.xlu0 %v422, 96
      %v570 = vpop.permute.xlu0 %569
      %v572 = vsel %vm273, %v568, 0
      %v575 = vsel %vm273, %v570, 0
      %577 = vmatprep.subr.bf16.mxu0 0
      %578 = vmatpush1.bf16.xpose.msra.mxu0 %v575
      %579 = vmatprep.subr.bf16.mxu0 0
      %580 = vmatpush1.bf16.xpose.msra.mxu0 0
      %581 = vmatprep.subr.bf16.mxu0 0
      %582 = vmatpush1.bf16.xpose.msra.mxu0 0
      %583 = vmatprep.subr.bf16.mxu0 0
      %584 = vmatpush1.bf16.xpose.msra.mxu0 0
      %585 = vmatprep.subr.bf16.mxu0 0
      %586 = vmatpush1.bf16.xpose.msra.mxu0 0
      %587 = vmatprep.subr.bf16.mxu0 0
      %588 = vmatpush1.bf16.xpose.msra.mxu0 0
      %589 = vmatprep.subr.bf16.mxu0 0
      %590 = vmatpush1.bf16.xpose.msra.mxu0 0
      %591 = vmatprep.subr.bf16.mxu0 0
      %592 = vmatpush1.bf16.xpose.msra.mxu0 0
      %593 = vmatprep.subr.bf16.mxu0 0
      %594 = vmatpush1.bf16.xpose.msra.mxu0 0
      %595 = vmatprep.subr.bf16.mxu0 0
      %596 = vmatpush1.bf16.xpose.msra.mxu0 0
      %597 = vmatprep.subr.bf16.mxu0 0
      %598 = vmatpush1.bf16.xpose.msra.mxu0 0
      %599 = vmatprep.subr.bf16.mxu0 0
      %600 = vmatpush1.bf16.xpose.msra.mxu0 0
      %601 = vmatprep.subr.bf16.mxu0 0
      %602 = vmatpush1.bf16.xpose.msra.mxu0 0
      %603 = vmatprep.subr.bf16.mxu0 0
      %604 = vmatpush1.bf16.xpose.msra.mxu0 0
      %605 = vmatprep.subr.bf16.mxu0 0
      %606 = vmatpush1.bf16.xpose.msra.mxu0 0
      %607 = vmatprep.subr.bf16.mxu0 0
      %608 = vmatpush1.bf16.xpose.msra.mxu0 0
      %609 = vmatprep.mubr.bf16.mxu0 0
      %610 = vmatmul.mubr.bf16.gmra.mrb[0].mxu0 %v572
      %v611 = vpop.f32.mrb[0].mxu0
      %v612 = vadd.f32 0.0, %v611
      %v613 = vpop.f32.mrb[0].mxu0
      %v614 = vpop.f32.mrb[0].mxu0
      %v615 = vpop.f32.mrb[0].mxu0
      %616 = vdwg.mxu0
      %v617 = vld [vmem:[#allocation2] sm:$0xf]
      %v618 = vsel %vm321, %v612, -inf
      %619 = vmax.xlane.f32.xlu0 %v618
      %v620 = vpop.xlane.xlu0 %619
      %v621 = vmax.f32 %v617, %v620
      %v622 = vsub.f32 %v617, %v621
      %v623 = vmul.f32 %v622, 1.442695
      %v624 = vpow.pop %v623
      %626 = vset.pattern.permute.xlu0 2
      %627 = vperm.xlu0 %626, %v621
      %v628 = vpop.permute.xlu0 %627
      %v630 = vsub.f32 %v612, %v628
      %v631 = vmul.f32 %v630, 1.442695
      %v632 = vpow.pop %v631
      %v633 = vld [vmem:[#allocation3] sm:$0xf]
      %v634 = vmul.f32 %v624, %v633
      %v635 = vsel %vm321, %v632, 0.0
      %636 = vadd.xlane.f32.xlu0 %v635
      %v637 = vpop.xlane.xlu0 %636
      %v638 = vadd.f32 %v634, %v637
      %vm639 = vcmask 19472
      %640 = vst.msk [vmem:[#allocation3] sm:$0xf] %vm639, %v638
      %v641 = vpack.c.bf16 %v632, %v632
      %642 = vrot.lane.b32.xlu0 %v503, 96
      %v643 = vpop.permute.xlu0 %642
      %v645 = vsel %vm346, %v641, 0
      %v648 = vsel %vm350, %v643, 0
      %650 = vmatprep.subr.bf16.mxu0 0
      %651 = vmatpush1.bf16.msra.mxu0 %v648
      %652 = vmatprep.subr.bf16.mxu0 0
      %653 = vmatpush1.bf16.msra.mxu0 0
      %654 = vmatprep.subr.bf16.mxu0 0
      %655 = vmatpush1.bf16.msra.mxu0 0
      %656 = vmatprep.subr.bf16.mxu0 0
      %657 = vmatpush1.bf16.msra.mxu0 0
      %658 = vmatprep.subr.bf16.mxu0 0
      %659 = vmatpush1.bf16.msra.mxu0 0
      %660 = vmatprep.subr.bf16.mxu0 0
      %661 = vmatpush1.bf16.msra.mxu0 0
      %662 = vmatprep.subr.bf16.mxu0 0
      %663 = vmatpush1.bf16.msra.mxu0 0
      %664 = vmatprep.subr.bf16.mxu0 0
      %665 = vmatpush1.bf16.msra.mxu0 0
      %666 = vmatprep.subr.bf16.mxu0 0
      %667 = vmatpush1.bf16.msra.mxu0 0
      %668 = vmatprep.subr.bf16.mxu0 0
      %669 = vmatpush1.bf16.msra.mxu0 0
      %670 = vmatprep.subr.bf16.mxu0 0
      %671 = vmatpush1.bf16.msra.mxu0 0
      %672 = vmatprep.subr.bf16.mxu0 0
      %673 = vmatpush1.bf16.msra.mxu0 0
      %674 = vmatprep.subr.bf16.mxu0 0
      %675 = vmatpush1.bf16.msra.mxu0 0
      %676 = vmatprep.subr.bf16.mxu0 0
      %677 = vmatpush1.bf16.msra.mxu0 0
      %678 = vmatprep.subr.bf16.mxu0 0
      %679 = vmatpush1.bf16.msra.mxu0 0
      %680 = vmatprep.subr.bf16.mxu0 0
      %681 = vmatpush1.bf16.msra.mxu0 0
      %682 = vmatprep.mubr.bf16.mxu0 0
      %683 = vmatmul.mubr.bf16.gmra.mrb[0].mxu0 %v645
      %v684 = vpop.f32.mrb[0].mxu0
      %v685 = vadd.f32 0.0, %v684
      %v686 = vpop.f32.mrb[0].mxu0
      %v687 = vpop.f32.mrb[0].mxu0
      %v688 = vpop.f32.mrb[0].mxu0
      %689 = vdwg.mxu0
      %v690 = vld [vmem:[#allocation4] sm:$0xf]
      %692 = vset.pattern.permute.xlu0 2
      %693 = vperm.xlu0 %692, %v624
      %v694 = vpop.permute.xlu0 %693
      %v696 = vmul.f32 %v694, %v690
      %698 = vrot.lane.b32.xlu0 %v685, 32
      %v699 = vpop.permute.xlu0 %698
      %v701 = vadd.f32 %v696, %v699
      %vm702 = vcmask 388352
      %703 = vst.msk [vmem:[#allocation4] sm:$0xf] %vm702, %v701
      %704 = vst.msk [vmem:[#allocation2] sm:$0xf] %vm639, %v621
      %705 = vrot.lane.b32.xlu0 %v412, 80
      %v706 = vpop.permute.xlu0 %705
      %707 = vrot.lane.b32.xlu0 %v422, 80
      %v708 = vpop.permute.xlu0 %707
      %v710 = vsel %vm273, %v706, 0
      %v713 = vsel %vm273, %v708, 0
      %715 = vmatprep.subr.bf16.mxu0 0
      %716 = vmatpush1.bf16.xpose.msra.mxu0 %v713
      %717 = vmatprep.subr.bf16.mxu0 0
      %718 = vmatpush1.bf16.xpose.msra.mxu0 0
      %719 = vmatprep.subr.bf16.mxu0 0
      %720 = vmatpush1.bf16.xpose.msra.mxu0 0
      %721 = vmatprep.subr.bf16.mxu0 0
      %722 = vmatpush1.bf16.xpose.msra.mxu0 0
      %723 = vmatprep.subr.bf16.mxu0 0
      %724 = vmatpush1.bf16.xpose.msra.mxu0 0
      %725 = vmatprep.subr.bf16.mxu0 0
      %726 = vmatpush1.bf16.xpose.msra.mxu0 0
      %727 = vmatprep.subr.bf16.mxu0 0
      %728 = vmatpush1.bf16.xpose.msra.mxu0 0
      %729 = vmatprep.subr.bf16.mxu0 0
      %730 = vmatpush1.bf16.xpose.msra.mxu0 0
      %731 = vmatprep.subr.bf16.mxu0 0
      %732 = vmatpush1.bf16.xpose.msra.mxu0 0
      %733 = vmatprep.subr.bf16.mxu0 0
      %734 = vmatpush1.bf16.xpose.msra.mxu0 0
      %735 = vmatprep.subr.bf16.mxu0 0
      %736 = vmatpush1.bf16.xpose.msra.mxu0 0
      %737 = vmatprep.subr.bf16.mxu0 0
      %738 = vmatpush1.bf16.xpose.msra.mxu0 0
      %739 = vmatprep.subr.bf16.mxu0 0
      %740 = vmatpush1.bf16.xpose.msra.mxu0 0
      %741 = vmatprep.subr.bf16.mxu0 0
      %742 = vmatpush1.bf16.xpose.msra.mxu0 0
      %743 = vmatprep.subr.bf16.mxu0 0
      %744 = vmatpush1.bf16.xpose.msra.mxu0 0
      %745 = vmatprep.subr.bf16.mxu0 0
      %746 = vmatpush1.bf16.xpose.msra.mxu0 0
      %747 = vmatprep.mubr.bf16.mxu0 0
      %748 = vmatmul.mubr.bf16.gmra.mrb[0].mxu0 %v710
      %v749 = vpop.f32.mrb[0].mxu0
      %v750 = vadd.f32 0.0, %v749
      %v751 = vpop.f32.mrb[0].mxu0
      %v752 = vpop.f32.mrb[0].mxu0
      %v753 = vpop.f32.mrb[0].mxu0
      %754 = vdwg.mxu0
      %v755 = vld [vmem:[#allocation2] sm:$0xf]
      %v756 = vsel %vm321, %v750, -inf
      %757 = vmax.xlane.f32.xlu0 %v756
      %v758 = vpop.xlane.xlu0 %757
      %v759 = vmax.f32 %v755, %v758
      %v760 = vsub.f32 %v755, %v759
      %v761 = vmul.f32 %v760, 1.442695
      %v762 = vpow.pop %v761
      %764 = vset.pattern.permute.xlu0 3
      %765 = vperm.xlu0 %764, %v759
      %v766 = vpop.permute.xlu0 %765
      %v768 = vsub.f32 %v750, %v766
      %v769 = vmul.f32 %v768, 1.442695
      %v770 = vpow.pop %v769
      %v771 = vld [vmem:[#allocation3] sm:$0xf]
      %v772 = vmul.f32 %v762, %v771
      %v773 = vsel %vm321, %v770, 0.0
      %774 = vadd.xlane.f32.xlu0 %v773
      %v775 = vpop.xlane.xlu0 %774
      %v776 = vadd.f32 %v772, %v775
      %vm777 = vcmask 27672
      %778 = vst.msk [vmem:[#allocation3] sm:$0xf] %vm777, %v776
      %v779 = vpack.c.bf16 %v770, %v770
      %780 = vrot.lane.b32.xlu0 %v503, 80
      %v781 = vpop.permute.xlu0 %780
      %v783 = vsel %vm346, %v779, 0
      %v786 = vsel %vm350, %v781, 0
      %788 = vmatprep.subr.bf16.mxu0 0
      %789 = vmatpush1.bf16.msra.mxu0 %v786
      %790 = vmatprep.subr.bf16.mxu0 0
      %791 = vmatpush1.bf16.msra.mxu0 0
      %792 = vmatprep.subr.bf16.mxu0 0
      %793 = vmatpush1.bf16.msra.mxu0 0
      %794 = vmatprep.subr.bf16.mxu0 0
      %795 = vmatpush1.bf16.msra.mxu0 0
      %796 = vmatprep.subr.bf16.mxu0 0
      %797 = vmatpush1.bf16.msra.mxu0 0
      %798 = vmatprep.subr.bf16.mxu0 0
      %799 = vmatpush1.bf16.msra.mxu0 0
      %800 = vmatprep.subr.bf16.mxu0 0
      %801 = vmatpush1.bf16.msra.mxu0 0
      %802 = vmatprep.subr.bf16.mxu0 0
      %803 = vmatpush1.bf16.msra.mxu0 0
      %804 = vmatprep.subr.bf16.mxu0 0
      %805 = vmatpush1.bf16.msra.mxu0 0
      %806 = vmatprep.subr.bf16.mxu0 0
      %807 = vmatpush1.bf16.msra.mxu0 0
      %808 = vmatprep.subr.bf16.mxu0 0
      %809 = vmatpush1.bf16.msra.mxu0 0
      %810 = vmatprep.subr.bf16.mxu0 0
      %811 = vmatpush1.bf16.msra.mxu0 0
      %812 = vmatprep.subr.bf16.mxu0 0
      %813 = vmatpush1.bf16.msra.mxu0 0
      %814 = vmatprep.subr.bf16.mxu0 0
      %815 = vmatpush1.bf16.msra.mxu0 0
      %816 = vmatprep.subr.bf16.mxu0 0
      %817 = vmatpush1.bf16.msra.mxu0 0
      %818 = vmatprep.subr.bf16.mxu0 0
      %819 = vmatpush1.bf16.msra.mxu0 0
      %820 = vmatprep.mubr.bf16.mxu0 0
      %821 = vmatmul.mubr.bf16.gmra.mrb[0].mxu0 %v783
      %v822 = vpop.f32.mrb[0].mxu0
      %v823 = vadd.f32 0.0, %v822
      %v824 = vpop.f32.mrb[0].mxu0
      %v825 = vpop.f32.mrb[0].mxu0
      %v826 = vpop.f32.mrb[0].mxu0
      %827 = vdwg.mxu0
      %v828 = vld [vmem:[#allocation4] sm:$0xf]
      %830 = vset.pattern.permute.xlu0 3
      %831 = vperm.xlu0 %830, %v762
      %v832 = vpop.permute.xlu0 %831
      %v834 = vmul.f32 %v832, %v828
      %836 = vrot.lane.b32.xlu0 %v823, 48
      %v837 = vpop.permute.xlu0 %836
      %v839 = vadd.f32 %v834, %v837
      %vm840 = vcmask 519552
      %841 = vst.msk [vmem:[#allocation4] sm:$0xf] %vm840, %v839
      %842 = vst.msk [vmem:[#allocation2] sm:$0xf] %vm777, %v759
      // Predicated region
      $region37: #{bi_unet_forward.23} parent=31 // pred_check
        %p843 = pneg %p261
      $region38: #{bi_unet_forward.23} parent=31 // pred_check_branch
        %845 = sbr.rel (%p843) target = $region40
      $region39: #{bi_unet_forward.23} parent=31 // pred_region
        %v846 = vld [vmem:[#allocation3] sm:$0xf]
        %v847 = vrcp.pop %v846
        %v848 = vld [vmem:[#allocation4] sm:$0xf]
        %850 = vset.pattern.permute.xlu0 0
        %851 = vperm.xlu0 %850, %v847
        %v852 = vpop.permute.xlu0 %851
        %v854 = vmul.f32 %v848, %v852
        %855 = vst.msk [vmem:[#allocation4] sm:$0xf] %vm402, %v854
        %v856 = vld [vmem:[#allocation4] sm:$0xf]
        %857 = vset.pattern.permute.xlu0 1
        %858 = vperm.xlu0 %857, %v847
        %v859 = vpop.permute.xlu0 %858
        %v861 = vmul.f32 %v856, %v859
        %862 = vst.msk [vmem:[#allocation4] sm:$0xf] %vm564, %v861
        %v863 = vld [vmem:[#allocation4] sm:$0xf]
        %864 = vset.pattern.permute.xlu0 2
        %865 = vperm.xlu0 %864, %v847
        %v866 = vpop.permute.xlu0 %865
        %v868 = vmul.f32 %v863, %v866
        %869 = vst.msk [vmem:[#allocation4] sm:$0xf] %vm702, %v868
        %v870 = vld [vmem:[#allocation4] sm:$0xf]
        %871 = vset.pattern.permute.xlu0 3
        %872 = vperm.xlu0 %871, %v847
        %v873 = vpop.permute.xlu0 %872
        %v875 = vmul.f32 %v870, %v873
        %876 = vst.msk [vmem:[#allocation4] sm:$0xf] %vm840, %v875
        %v877 = vld [vmem:[#allocation4] sm:$0xf]
        %v878 = vpack.c.bf16 %v877, %v877
        %vm879 = vcmask 517120
        %880 = vst.msk [vmem:[%s259] sm:$0x3] %vm879, %v878
      $region40: #{bi_unet_forward.23} parent=31 // pred_fallthru
        _
      %p881 = scmp.lt.s32.totalorder %s19, 1
      %s882 = scalar_select %p881, %s19, 1
      %p883 = scmp.lt.s32.totalorder %s20, 0
      %s884 = scalar_select %p883, %s20, 0
      %s885 = sadd.s32 %s884, %s882
      %s886 = smul.addr %s885, 2
      %s887 = scalar_lea.vmem %s3, %s886
      // Predicated region
      $region41: #{bi_unet_forward.23} parent=31 // pred_check
        %p888 = pneg %p137
      $region42: #{bi_unet_forward.23} parent=31 // pred_check_branch
        %890 = sbr.rel (%p888) target = $region44
      $region43: #{bi_unet_forward.23} parent=31 // pred_region
        _
      $region44: #{bi_unet_forward.23} parent=31 // pred_fallthru
        _
    $region32: #{bi_unet_forward.23} parent=5 // pred_fallthru
      _
    %p891 = scmp.le.s32.totalorder 2, %s9
    // Predicated region
    $region45: #{bi_unet_forward.23} parent=5 // pred_check
      %p892 = pneg %p891
    $region46: #{bi_unet_forward.23} parent=5 // pred_check_branch
      %894 = sbr.rel (%p892) target = $region48
    $region47: #{bi_unet_forward.23} parent=5 // pred_region
      %s895 = ssub.s32 %s9, 2
      // Predicated region
      $region49: #{bi_unet_forward.23} parent=47 // pred_check
        %p896 = pneg %p143
      $region50: #{bi_unet_forward.23} parent=47 // pred_check_branch
        %898 = sbr.rel (%p896) target = $region52
      $region51: #{bi_unet_forward.23} parent=47 // pred_region
        %p899 = scmp.lt.s32.totalorder %s22, 1
        %s900 = scalar_select %p899, %s22, 1
        %p901 = scmp.lt.s32.totalorder %s23, 0
        %s902 = scalar_select %p901, %s23, 0
        %s903 = sadd.s32 %s902, %s900
        %s904 = smul.addr %s903, 2
        %s905 = scalar_lea.vmem %s3, %s904
      $region52: #{bi_unet_forward.23} parent=47 // pred_fallthru
        _
    $region48: #{bi_unet_forward.23} parent=5 // pred_fallthru
      _
  $region6: #{bi_unet_forward.23} parent=0 // loop_footer
    %s13 = sadd.s32 1, %s9
  $region7: #{bi_unet_forward.23} parent=0 // loop_footer_branch
    %8 = sbr.rel target = $region3
  $region8: #{bi_unet_forward.23} parent=0 // loop_exit
    _

// kernel: bi_unet_forward.24
$region0: #{bi_unet_forward.24}
  #allocation0 [shape = 'u32[]', space=smem, size = 0x4, offset = 0x4, fixed_abs, tag = 'smem constant byte address 0x4 - core index']
  #allocation1 [shape = 'u32[144,128]{1,0:T(1,128)}', space=vmem, size = 0x12000, scoped, tag = 'internal scratch']
  %s0 = inlined_call_operand.vmem [shape: bf16[8,64], index: 0, kind: input, shape index: {}]
  %s1 = inlined_call_operand.vmem [shape: bf16[64,64], index: 1, kind: input, shape index: {}]
  %s2 = inlined_call_operand.vmem [shape: f32[1,64], index: 2, kind: input, shape index: {}]
  %s3 = inlined_call_operand.vmem [shape: bf16[8,64], index: 3, kind: input, shape index: {}]
  %s4 = inlined_call_operand.vmem [shape: bf16[8,64], index: 4, kind: output, shape index: {}]
  %s5 = sld [smem:[#allocation0]]
  $region26: #{bi_unet_forward.24} parent=0
    _
  %s7 = ssub.s32 1, %s5
  %s8 = scalar_select 0, %s7, %s5
  // Predicated region
  $region2: #{bi_unet_forward.24} parent=0 // pred_check
    _
  $region3: #{bi_unet_forward.24} parent=0 // pred_check_branch
    %10 = sbr.rel (0) target = $region5
  $region4: #{bi_unet_forward.24} parent=0 // pred_region
    _
  $region5: #{bi_unet_forward.24} parent=0 // pred_fallthru
    _
  // Predicated region
  $region6: #{bi_unet_forward.24} parent=0 // pred_check
    _
  $region7: #{bi_unet_forward.24} parent=0 // pred_check_branch
    %12 = sbr.rel (0) target = $region9
  $region8: #{bi_unet_forward.24} parent=0 // pred_region
    _
  $region9: #{bi_unet_forward.24} parent=0 // pred_fallthru
    _
  // Predicated region
  $region10: #{bi_unet_forward.24} parent=0 // pred_check
    _
  $region11: #{bi_unet_forward.24} parent=0 // pred_check_branch
    %14 = sbr.rel (0) target = $region13
  $region12: #{bi_unet_forward.24} parent=0 // pred_region
    _
  $region13: #{bi_unet_forward.24} parent=0 // pred_fallthru
    _
  // Predicated region
  $region14: #{bi_unet_forward.24} parent=0 // pred_check
    _
  $region15: #{bi_unet_forward.24} parent=0 // pred_check_branch
    %16 = sbr.rel (0) target = $region17
  $region16: #{bi_unet_forward.24} parent=0 // pred_region
    _
  $region17: #{bi_unet_forward.24} parent=0 // pred_fallthru
    _
  %v18 = vld [vmem:[%s0] sm:$0xf]
  %v19 = vld [vmem:[%s1] sm:$0xf]
  %v20 = vld [vmem:[%s1 + $0x4] sm:$0xf]
  %v21 = vld [vmem:[%s1 + $0x8] sm:$0xf]
  %v22 = vld [vmem:[%s1 + $0xc] sm:$0xf]
  %v23 = vld [vmem:[%s1 + $0x10] sm:$0xf]
  %v24 = vld [vmem:[%s1 + $0x14] sm:$0xf]
  %v25 = vld [vmem:[%s1 + $0x18] sm:$0xf]
  %v26 = vld [vmem:[%s1 + $0x1c] sm:$0xf]
  %v27 = vld [vmem:[%s2] sm:$0x1]
  %v29 = vlaneseq
  %v30 = vshrl.u32 %v29, 7
  %v31 = vsub.s32 0, %v30
  %v32 = vrot.slane %v27, %v31
  %v42 = vunpack.c.l.b16 %v19
  %v43 = vunpack.c.l.b16 %v20
  %v44 = vunpack.c.l.b16 %v21
  %v45 = vunpack.c.l.b16 %v22
  %v46 = vunpack.c.l.b16 %v23
  %v47 = vunpack.c.l.b16 %v24
  %v48 = vunpack.c.l.b16 %v25
  %v49 = vunpack.c.l.b16 %v26
  %v50 = vpack.c.b16 %v43, %v42
  %v51 = vpack.c.b16 %v45, %v44
  %v52 = vpack.c.b16 %v47, %v46
  %v53 = vpack.c.b16 %v49, %v48
  %vm58 = vcmask 523264
  %v60 = vsel %vm58, %v18, 0
  %62 = vmatprep.subr.bf16.mxu0 0
  %63 = vmatpush1.bf16.msra.mxu0 %v50
  %64 = vmatprep.subr.bf16.mxu0 0
  %65 = vmatpush1.bf16.msra.mxu0 %v51
  %66 = vmatprep.subr.bf16.mxu0 0
  %67 = vmatpush1.bf16.msra.mxu0 %v52
  %68 = vmatprep.subr.bf16.mxu0 0
  %69 = vmatpush1.bf16.msra.mxu0 %v53
  %70 = vmatprep.subr.bf16.mxu0 0
  %71 = vmatpush1.bf16.msra.mxu0 0
  %72 = vmatprep.subr.bf16.mxu0 0
  %73 = vmatpush1.bf16.msra.mxu0 0
  %74 = vmatprep.subr.bf16.mxu0 0
  %75 = vmatpush1.bf16.msra.mxu0 0
  %76 = vmatprep.subr.bf16.mxu0 0
  %77 = vmatpush1.bf16.msra.mxu0 0
  %78 = vmatprep.subr.bf16.mxu0 0
  %79 = vmatpush1.bf16.msra.mxu0 0
  %80 = vmatprep.subr.bf16.mxu0 0
  %81 = vmatpush1.bf16.msra.mxu0 0
  %82 = vmatprep.subr.bf16.mxu0 0
  %83 = vmatpush1.bf16.msra.mxu0 0
  %84 = vmatprep.subr.bf16.mxu0 0
  %85 = vmatpush1.bf16.msra.mxu0 0
  %86 = vmatprep.subr.bf16.mxu0 0
  %87 = vmatpush1.bf16.msra.mxu0 0
  %88 = vmatprep.subr.bf16.mxu0 0
  %89 = vmatpush1.bf16.msra.mxu0 0
  %90 = vmatprep.subr.bf16.mxu0 0
  %91 = vmatpush1.bf16.msra.mxu0 0
  %92 = vmatprep.subr.bf16.mxu0 0
  %93 = vmatpush1.bf16.msra.mxu0 0
  %94 = vmatprep.mubr.bf16.mxu0 0
  %95 = vmatmul.mubr.bf16.gmra.mrb[0].mxu0 %v60
  %v96 = vpop.f32.mrb[0].mxu0
  %v97 = vadd.f32 %v32, %v96
  %v98 = vpop.f32.mrb[0].mxu0
  %v99 = vpop.f32.mrb[0].mxu0
  %v100 = vpop.f32.mrb[0].mxu0
  %101 = vdwg.mxu0
  %v102 = vld [vmem:[%s3] sm:$0xf]
  %v103 = vunpack.c.l.bf16 %v102
  %v104 = vadd.f32 %v97, %v103
  %v105 = vpack.c.bf16 %v104, %v104
  %vm106 = vcmask 519168
  %107 = vst.msk [vmem:[%s4] sm:$0xf] %vm106, %v105
  // Predicated region
  $region18: #{bi_unet_forward.24} parent=0 // pred_check
    _
  $region19: #{bi_unet_forward.24} parent=0 // pred_check_branch
    %109 = sbr.rel (0) target = $region21
  $region20: #{bi_unet_forward.24} parent=0 // pred_region
    _
  $region21: #{bi_unet_forward.24} parent=0 // pred_fallthru
    _
  // Predicated region
  $region22: #{bi_unet_forward.24} parent=0 // pred_check
    _
  $region23: #{bi_unet_forward.24} parent=0 // pred_check_branch
    %111 = sbr.rel (0) target = $region25
  $region24: #{bi_unet_forward.24} parent=0 // pred_region
    _
  $region25: #{bi_unet_forward.24} parent=0 // pred_fallthru
    _

// kernel: bi_unet_forward.25
$region0: #{bi_unet_forward.25}
  #allocation0 [shape = 'u32[]', space=smem, size = 0x4, offset = 0x4, fixed_abs, tag = 'smem constant byte address 0x4 - core index']
  #allocation1 [shape = 'u32[144,128]{1,0:T(1,128)}', space=vmem, size = 0x12000, scoped, tag = 'internal scratch']
  %s0 = inlined_call_operand.vmem [shape: bf16[8,64], index: 0, kind: input, shape index: {}]
  %s1 = inlined_call_operand.vmem [shape: f32[1,64], index: 1, kind: input, shape index: {}]
  %s2 = inlined_call_operand.vmem [shape: f32[1,64], index: 2, kind: input, shape index: {}]
  %s3 = inlined_call_operand.vmem [shape: bf16[64,128], index: 3, kind: input, shape index: {}]
  %s4 = inlined_call_operand.vmem [shape: f32[1,128], index: 4, kind: input, shape index: {}]
  %s5 = inlined_call_operand.vmem [shape: bf16[128,64], index: 5, kind: input, shape index: {}]
  %s6 = inlined_call_operand.vmem [shape: f32[1,64], index: 6, kind: input, shape index: {}]
  %s7 = inlined_call_operand.vmem [shape: bf16[8,64], index: 7, kind: output, shape index: {}]
  %s8 = sld [smem:[#allocation0]]
  $region38: #{bi_unet_forward.25} parent=0
    _
  %s10 = ssub.s32 1, %s8
  %s11 = scalar_select 0, %s10, %s8
  // Predicated region
  $region2: #{bi_unet_forward.25} parent=0 // pred_check
    _
  $region3: #{bi_unet_forward.25} parent=0 // pred_check_branch
    %13 = sbr.rel (0) target = $region5
  $region4: #{bi_unet_forward.25} parent=0 // pred_region
    _
  $region5: #{bi_unet_forward.25} parent=0 // pred_fallthru
    _
  // Predicated region
  $region6: #{bi_unet_forward.25} parent=0 // pred_check
    _
  $region7: #{bi_unet_forward.25} parent=0 // pred_check_branch
    %15 = sbr.rel (0) target = $region9
  $region8: #{bi_unet_forward.25} parent=0 // pred_region
    _
  $region9: #{bi_unet_forward.25} parent=0 // pred_fallthru
    _
  // Predicated region
  $region10: #{bi_unet_forward.25} parent=0 // pred_check
    _
  $region11: #{bi_unet_forward.25} parent=0 // pred_check_branch
    %17 = sbr.rel (0) target = $region13
  $region12: #{bi_unet_forward.25} parent=0 // pred_region
    _
  $region13: #{bi_unet_forward.25} parent=0 // pred_fallthru
    _
  // Predicated region
  $region14: #{bi_unet_forward.25} parent=0 // pred_check
    _
  $region15: #{bi_unet_forward.25} parent=0 // pred_check_branch
    %19 = sbr.rel (0) target = $region17
  $region16: #{bi_unet_forward.25} parent=0 // pred_region
    _
  $region17: #{bi_unet_forward.25} parent=0 // pred_fallthru
    _
  // Predicated region
  $region18: #{bi_unet_forward.25} parent=0 // pred_check
    _
  $region19: #{bi_unet_forward.25} parent=0 // pred_check_branch
    %21 = sbr.rel (0) target = $region21
  $region20: #{bi_unet_forward.25} parent=0 // pred_region
    _
  $region21: #{bi_unet_forward.25} parent=0 // pred_fallthru
    _
  // Predicated region
  $region22: #{bi_unet_forward.25} parent=0 // pred_check
    _
  $region23: #{bi_unet_forward.25} parent=0 // pred_check_branch
    %23 = sbr.rel (0) target = $region25
  $region24: #{bi_unet_forward.25} parent=0 // pred_region
    _
  $region25: #{bi_unet_forward.25} parent=0 // pred_fallthru
    _
  // Predicated region
  $region26: #{bi_unet_forward.25} parent=0 // pred_check
    _
  $region27: #{bi_unet_forward.25} parent=0 // pred_check_branch
    %25 = sbr.rel (0) target = $region29
  $region28: #{bi_unet_forward.25} parent=0 // pred_region
    _
  $region29: #{bi_unet_forward.25} parent=0 // pred_fallthru
    _
  %v27 = vld [vmem:[%s0] sm:$0xf]
  %v28 = vunpack.c.l.bf16 %v27
  %vm29 = vcmask 523264
  %v30 = vsel %vm29, %v28, 0.0
  %31 = vadd.xlane.f32.xlu0 %v30
  %v32 = vpop.xlane.xlu0 %31
  %v33 = vrcp.pop 64.0
  %v34 = vmul.f32 %v32, %v33
  %v35 = vsub.f32 %v28, %v34
  %v36 = vmul.f32 %v35, %v35
  %v37 = vsel %vm29, %v36, 0.0
  %38 = vadd.xlane.f32.xlu0 %v37
  %v39 = vpop.xlane.xlu0 %38
  %v40 = vmul.f32 %v39, %v33
  %v41 = vadd.f32 %v40, 1e-05
  %v42 = vrsqrt.pop %v41
  %v43 = vmul.f32 %v35, %v42
  %v44 = vld [vmem:[%s1] sm:$0x1]
  %v46 = vlaneseq
  %v47 = vshrl.u32 %v46, 7
  %v48 = vsub.s32 0, %v47
  %v49 = vrot.slane %v44, %v48
  %v51 = vmul.f32 %v43, %v49
  %v52 = vld [vmem:[%s2] sm:$0x1]
  %v54 = vlaneseq
  %v55 = vshrl.u32 %v54, 7
  %v56 = vsub.s32 0, %v55
  %v57 = vrot.slane %v52, %v56
  %v59 = vadd.f32 %v51, %v57
  %v60 = vpack.c.bf16 %v59, %v59
  %v61 = vld [vmem:[%s3] sm:$0xf]
  %v62 = vld [vmem:[%s3 + $0x4] sm:$0xf]
  %v63 = vld [vmem:[%s3 + $0x8] sm:$0xf]
  %v64 = vld [vmem:[%s3 + $0xc] sm:$0xf]
  %v65 = vld [vmem:[%s3 + $0x10] sm:$0xf]
  %v66 = vld [vmem:[%s3 + $0x14] sm:$0xf]
  %v67 = vld [vmem:[%s3 + $0x18] sm:$0xf]
  %v68 = vld [vmem:[%s3 + $0x1c] sm:$0xf]
  %v69 = vld [vmem:[%s4] sm:$0x1]
  %v71 = vlaneseq
  %v72 = vshrl.u32 %v71, 7
  %v73 = vsub.s32 0, %v72
  %v74 = vrot.slane %v69, %v73
  %v84 = vunpack.c.l.b16 %v61
  %v85 = vunpack.c.l.b16 %v62
  %v86 = vunpack.c.l.b16 %v63
  %v87 = vunpack.c.l.b16 %v64
  %v88 = vunpack.c.l.b16 %v65
  %v89 = vunpack.c.l.b16 %v66
  %v90 = vunpack.c.l.b16 %v67
  %v91 = vunpack.c.l.b16 %v68
  %v92 = vpack.c.b16 %v85, %v84
  %v93 = vpack.c.b16 %v87, %v86
  %v94 = vpack.c.b16 %v89, %v88
  %v95 = vpack.c.b16 %v91, %v90
  %v101 = vsel %vm29, %v60, 0
  %103 = vmatprep.subr.bf16.mxu0 0
  %104 = vmatpush1.bf16.msra.mxu0 %v92
  %105 = vmatprep.subr.bf16.mxu0 0
  %106 = vmatpush1.bf16.msra.mxu0 %v93
  %107 = vmatprep.subr.bf16.mxu0 0
  %108 = vmatpush1.bf16.msra.mxu0 %v94
  %109 = vmatprep.subr.bf16.mxu0 0
  %110 = vmatpush1.bf16.msra.mxu0 %v95
  %111 = vmatprep.subr.bf16.mxu0 0
  %112 = vmatpush1.bf16.msra.mxu0 0
  %113 = vmatprep.subr.bf16.mxu0 0
  %114 = vmatpush1.bf16.msra.mxu0 0
  %115 = vmatprep.subr.bf16.mxu0 0
  %116 = vmatpush1.bf16.msra.mxu0 0
  %117 = vmatprep.subr.bf16.mxu0 0
  %118 = vmatpush1.bf16.msra.mxu0 0
  %119 = vmatprep.subr.bf16.mxu0 0
  %120 = vmatpush1.bf16.msra.mxu0 0
  %121 = vmatprep.subr.bf16.mxu0 0
  %122 = vmatpush1.bf16.msra.mxu0 0
  %123 = vmatprep.subr.bf16.mxu0 0
  %124 = vmatpush1.bf16.msra.mxu0 0
  %125 = vmatprep.subr.bf16.mxu0 0
  %126 = vmatpush1.bf16.msra.mxu0 0
  %127 = vmatprep.subr.bf16.mxu0 0
  %128 = vmatpush1.bf16.msra.mxu0 0
  %129 = vmatprep.subr.bf16.mxu0 0
  %130 = vmatpush1.bf16.msra.mxu0 0
  %131 = vmatprep.subr.bf16.mxu0 0
  %132 = vmatpush1.bf16.msra.mxu0 0
  %133 = vmatprep.subr.bf16.mxu0 0
  %134 = vmatpush1.bf16.msra.mxu0 0
  %135 = vmatprep.mubr.bf16.mxu0 0
  %136 = vmatmul.mubr.bf16.gmra.mrb[0].mxu0 %v101
  %v137 = vpop.f32.mrb[0].mxu0
  %v138 = vadd.f32 %v74, %v137
  %v139 = vpop.f32.mrb[0].mxu0
  %v140 = vpop.f32.mrb[0].mxu0
  %v141 = vpop.f32.mrb[0].mxu0
  %142 = vdwg.mxu0
  %v143 = vmul.f32 %v138, 0.5
  %v144 = vmul.f32 %v138, 0.044715
  %v145 = vmul.f32 %v144, %v138
  %v146 = vmul.f32 %v145, %v138
  %v147 = vadd.f32 %v138, %v146
  %v148 = vmul.f32 %v147, 0.7978846
  %v149 = vtanh.pop %v148
  %v150 = vadd.f32 %v149, 1.0
  %v151 = vmul.f32 %v143, %v150
  %v152 = vpack.c.bf16 %v151, %v151
  %v153 = vld [vmem:[%s5] sm:$0xf]
  %v154 = vld [vmem:[%s5 + $0x4] sm:$0xf]
  %v155 = vld [vmem:[%s5 + $0x8] sm:$0xf]
  %v156 = vld [vmem:[%s5 + $0xc] sm:$0xf]
  %v157 = vld [vmem:[%s5 + $0x10] sm:$0xf]
  %v158 = vld [vmem:[%s5 + $0x14] sm:$0xf]
  %v159 = vld [vmem:[%s5 + $0x18] sm:$0xf]
  %v160 = vld [vmem:[%s5 + $0x1c] sm:$0xf]
  %v161 = vld [vmem:[%s5 + $0x20] sm:$0xf]
  %v162 = vld [vmem:[%s5 + $0x24] sm:$0xf]
  %v163 = vld [vmem:[%s5 + $0x28] sm:$0xf]
  %v164 = vld [vmem:[%s5 + $0x2c] sm:$0xf]
  %v165 = vld [vmem:[%s5 + $0x30] sm:$0xf]
  %v166 = vld [vmem:[%s5 + $0x34] sm:$0xf]
  %v167 = vld [vmem:[%s5 + $0x38] sm:$0xf]
  %v168 = vld [vmem:[%s5 + $0x3c] sm:$0xf]
  %v169 = vld [vmem:[%s6] sm:$0x1]
  %v171 = vlaneseq
  %v172 = vshrl.u32 %v171, 7
  %v173 = vsub.s32 0, %v172
  %v174 = vrot.slane %v169, %v173
  %v192 = vunpack.c.l.b16 %v153
  %v193 = vunpack.c.l.b16 %v154
  %v194 = vunpack.c.l.b16 %v155
  %v195 = vunpack.c.l.b16 %v156
  %v196 = vunpack.c.l.b16 %v157
  %v197 = vunpack.c.l.b16 %v158
  %v198 = vunpack.c.l.b16 %v159
  %v199 = vunpack.c.l.b16 %v160
  %v200 = vunpack.c.l.b16 %v161
  %v201 = vunpack.c.l.b16 %v162
  %v202 = vunpack.c.l.b16 %v163
  %v203 = vunpack.c.l.b16 %v164
  %v204 = vunpack.c.l.b16 %v165
  %v205 = vunpack.c.l.b16 %v166
  %v206 = vunpack.c.l.b16 %v167
  %v207 = vunpack.c.l.b16 %v168
  %v208 = vpack.c.b16 %v193, %v192
  %v209 = vpack.c.b16 %v195, %v194
  %v210 = vpack.c.b16 %v197, %v196
  %v211 = vpack.c.b16 %v199, %v198
  %v212 = vpack.c.b16 %v201, %v200
  %v213 = vpack.c.b16 %v203, %v202
  %v214 = vpack.c.b16 %v205, %v204
  %v215 = vpack.c.b16 %v207, %v206
  %224 = vmatprep.subr.bf16.mxu0 0
  %225 = vmatpush1.bf16.msra.mxu0 %v208
  %226 = vmatprep.subr.bf16.mxu0 0
  %227 = vmatpush1.bf16.msra.mxu0 %v209
  %228 = vmatprep.subr.bf16.mxu0 0
  %229 = vmatpush1.bf16.msra.mxu0 %v210
  %230 = vmatprep.subr.bf16.mxu0 0
  %231 = vmatpush1.bf16.msra.mxu0 %v211
  %232 = vmatprep.subr.bf16.mxu0 0
  %233 = vmatpush1.bf16.msra.mxu0 %v212
  %234 = vmatprep.subr.bf16.mxu0 0
  %235 = vmatpush1.bf16.msra.mxu0 %v213
  %236 = vmatprep.subr.bf16.mxu0 0
  %237 = vmatpush1.bf16.msra.mxu0 %v214
  %238 = vmatprep.subr.bf16.mxu0 0
  %239 = vmatpush1.bf16.msra.mxu0 %v215
  %240 = vmatprep.subr.bf16.mxu0 0
  %241 = vmatpush1.bf16.msra.mxu0 0
  %242 = vmatprep.subr.bf16.mxu0 0
  %243 = vmatpush1.bf16.msra.mxu0 0
  %244 = vmatprep.subr.bf16.mxu0 0
  %245 = vmatpush1.bf16.msra.mxu0 0
  %246 = vmatprep.subr.bf16.mxu0 0
  %247 = vmatpush1.bf16.msra.mxu0 0
  %248 = vmatprep.subr.bf16.mxu0 0
  %249 = vmatpush1.bf16.msra.mxu0 0
  %250 = vmatprep.subr.bf16.mxu0 0
  %251 = vmatpush1.bf16.msra.mxu0 0
  %252 = vmatprep.subr.bf16.mxu0 0
  %253 = vmatpush1.bf16.msra.mxu0 0
  %254 = vmatprep.subr.bf16.mxu0 0
  %255 = vmatpush1.bf16.msra.mxu0 0
  %256 = vmatprep.mubr.bf16.mxu0 0
  %257 = vmatmul.mubr.bf16.gmra.mrb[0].mxu0 %v152
  %v258 = vpop.f32.mrb[0].mxu0
  %v259 = vadd.f32 %v174, %v258
  %v260 = vpop.f32.mrb[0].mxu0
  %v261 = vpop.f32.mrb[0].mxu0
  %v262 = vpop.f32.mrb[0].mxu0
  %263 = vdwg.mxu0
  %v264 = vadd.f32 %v28, %v259
  %v265 = vpack.c.bf16 %v264, %v264
  %vm266 = vcmask 519168
  %267 = vst.msk [vmem:[%s7] sm:$0xf] %vm266, %v265
  // Predicated region
  $region30: #{bi_unet_forward.25} parent=0 // pred_check
    _
  $region31: #{bi_unet_forward.25} parent=0 // pred_check_branch
    %269 = sbr.rel (0) target = $region33
  $region32: #{bi_unet_forward.25} parent=0 // pred_region
    _
  $region33: #{bi_unet_forward.25} parent=0 // pred_fallthru
    _
  // Predicated region
  $region34: #{bi_unet_forward.25} parent=0 // pred_check
    _
  $region35: #{bi_unet_forward.25} parent=0 // pred_check_branch
    %271 = sbr.rel (0) target = $region37
  $region36: #{bi_unet_forward.25} parent=0 // pred_region
    _
  $region37: #{bi_unet_forward.25} parent=0 // pred_fallthru
    _

// kernel: bi_unet_forward.26
$region0: #{bi_unet_forward.26}
  #allocation0 [shape = 'u32[]', space=smem, size = 0x4, offset = 0x4, fixed_abs, tag = 'smem constant byte address 0x4 - core index']
  #allocation1 [shape = 'u32[144,128]{1,0:T(1,128)}', space=vmem, size = 0x12000, scoped, tag = 'internal scratch']
  %s0 = inlined_call_operand.vmem [shape: bf16[8,64], index: 0, kind: input, shape index: {}]
  %s1 = inlined_call_operand.vmem [shape: bf16[64,32], index: 1, kind: input, shape index: {}]
  %s2 = inlined_call_operand.vmem [shape: f32[1,32], index: 2, kind: input, shape index: {}]
  %s3 = inlined_call_operand.vmem [shape: bf16[8,32], index: 3, kind: output, shape index: {}]
  %s4 = sld [smem:[#allocation0]]
  $region22: #{bi_unet_forward.26} parent=0
    _
  %s6 = ssub.s32 1, %s4
  %s7 = scalar_select 0, %s6, %s4
  // Predicated region
  $region2: #{bi_unet_forward.26} parent=0 // pred_check
    _
  $region3: #{bi_unet_forward.26} parent=0 // pred_check_branch
    %9 = sbr.rel (0) target = $region5
  $region4: #{bi_unet_forward.26} parent=0 // pred_region
    _
  $region5: #{bi_unet_forward.26} parent=0 // pred_fallthru
    _
  // Predicated region
  $region6: #{bi_unet_forward.26} parent=0 // pred_check
    _
  $region7: #{bi_unet_forward.26} parent=0 // pred_check_branch
    %11 = sbr.rel (0) target = $region9
  $region8: #{bi_unet_forward.26} parent=0 // pred_region
    _
  $region9: #{bi_unet_forward.26} parent=0 // pred_fallthru
    _
  // Predicated region
  $region10: #{bi_unet_forward.26} parent=0 // pred_check
    _
  $region11: #{bi_unet_forward.26} parent=0 // pred_check_branch
    %13 = sbr.rel (0) target = $region13
  $region12: #{bi_unet_forward.26} parent=0 // pred_region
    _
  $region13: #{bi_unet_forward.26} parent=0 // pred_fallthru
    _
  %v15 = vld [vmem:[%s0] sm:$0xf]
  %v16 = vld [vmem:[%s1] sm:$0xf]
  %v17 = vld [vmem:[%s1 + $0x4] sm:$0xf]
  %v18 = vld [vmem:[%s1 + $0x8] sm:$0xf]
  %v19 = vld [vmem:[%s1 + $0xc] sm:$0xf]
  %v20 = vld [vmem:[%s1 + $0x10] sm:$0xf]
  %v21 = vld [vmem:[%s1 + $0x14] sm:$0xf]
  %v22 = vld [vmem:[%s1 + $0x18] sm:$0xf]
  %v23 = vld [vmem:[%s1 + $0x1c] sm:$0xf]
  %v24 = vld [vmem:[%s2] sm:$0x1]
  %v26 = vlaneseq
  %v27 = vshrl.u32 %v26, 7
  %v28 = vsub.s32 0, %v27
  %v29 = vrot.slane %v24, %v28
  %v39 = vunpack.c.l.b16 %v16
  %v40 = vunpack.c.l.b16 %v17
  %v41 = vunpack.c.l.b16 %v18
  %v42 = vunpack.c.l.b16 %v19
  %v43 = vunpack.c.l.b16 %v20
  %v44 = vunpack.c.l.b16 %v21
  %v45 = vunpack.c.l.b16 %v22
  %v46 = vunpack.c.l.b16 %v23
  %v47 = vpack.c.b16 %v40, %v39
  %v48 = vpack.c.b16 %v42, %v41
  %v49 = vpack.c.b16 %v44, %v43
  %v50 = vpack.c.b16 %v46, %v45
  %vm55 = vcmask 523264
  %v57 = vsel %vm55, %v15, 0
  %59 = vmatprep.subr.bf16.mxu0 0
  %60 = vmatpush1.bf16.msra.mxu0 %v47
  %61 = vmatprep.subr.bf16.mxu0 0
  %62 = vmatpush1.bf16.msra.mxu0 %v48
  %63 = vmatprep.subr.bf16.mxu0 0
  %64 = vmatpush1.bf16.msra.mxu0 %v49
  %65 = vmatprep.subr.bf16.mxu0 0
  %66 = vmatpush1.bf16.msra.mxu0 %v50
  %67 = vmatprep.subr.bf16.mxu0 0
  %68 = vmatpush1.bf16.msra.mxu0 0
  %69 = vmatprep.subr.bf16.mxu0 0
  %70 = vmatpush1.bf16.msra.mxu0 0
  %71 = vmatprep.subr.bf16.mxu0 0
  %72 = vmatpush1.bf16.msra.mxu0 0
  %73 = vmatprep.subr.bf16.mxu0 0
  %74 = vmatpush1.bf16.msra.mxu0 0
  %75 = vmatprep.subr.bf16.mxu0 0
  %76 = vmatpush1.bf16.msra.mxu0 0
  %77 = vmatprep.subr.bf16.mxu0 0
  %78 = vmatpush1.bf16.msra.mxu0 0
  %79 = vmatprep.subr.bf16.mxu0 0
  %80 = vmatpush1.bf16.msra.mxu0 0
  %81 = vmatprep.subr.bf16.mxu0 0
  %82 = vmatpush1.bf16.msra.mxu0 0
  %83 = vmatprep.subr.bf16.mxu0 0
  %84 = vmatpush1.bf16.msra.mxu0 0
  %85 = vmatprep.subr.bf16.mxu0 0
  %86 = vmatpush1.bf16.msra.mxu0 0
  %87 = vmatprep.subr.bf16.mxu0 0
  %88 = vmatpush1.bf16.msra.mxu0 0
  %89 = vmatprep.subr.bf16.mxu0 0
  %90 = vmatpush1.bf16.msra.mxu0 0
  %91 = vmatprep.mubr.bf16.mxu0 0
  %92 = vmatmul.mubr.bf16.gmra.mrb[0].mxu0 %v57
  %v93 = vpop.f32.mrb[0].mxu0
  %v94 = vadd.f32 %v29, %v93
  %v95 = vpop.f32.mrb[0].mxu0
  %v96 = vpop.f32.mrb[0].mxu0
  %v97 = vpop.f32.mrb[0].mxu0
  %98 = vdwg.mxu0
  %v99 = vpack.c.bf16 %v94, %v94
  %vm100 = vcmask 257024
  %101 = vst.msk [vmem:[%s3] sm:$0xf] %vm100, %v99
  // Predicated region
  $region14: #{bi_unet_forward.26} parent=0 // pred_check
    _
  $region15: #{bi_unet_forward.26} parent=0 // pred_check_branch
    %103 = sbr.rel (0) target = $region17
  $region16: #{bi_unet_forward.26} parent=0 // pred_region
    _
  $region17: #{bi_unet_forward.26} parent=0 // pred_fallthru
    _
  // Predicated region
  $region18: #{bi_unet_forward.26} parent=0 // pred_check
    _
  $region19: #{bi_unet_forward.26} parent=0 // pred_check_branch
    %105 = sbr.rel (0) target = $region21
  $region20: #{bi_unet_forward.26} parent=0 // pred_region
    _
  $region21: #{bi_unet_forward.26} parent=0 // pred_fallthru
    _

// kernel: bi_unet_forward.31
$region0: #{bi_unet_forward.31}
  #allocation0 [shape = 'u32[]', space=smem, size = 0x4, offset = 0x4, fixed_abs, tag = 'smem constant byte address 0x4 - core index']
  #allocation1 [shape = 'u32[144,128]{1,0:T(1,128)}', space=vmem, size = 0x12000, scoped, tag = 'internal scratch']
  %s0 = inlined_call_operand.vmem [shape: bf16[32,32], index: 0, kind: input, shape index: {}]
  %s1 = inlined_call_operand.vmem [shape: bf16[32,128], index: 1, kind: input, shape index: {}]
  %s2 = inlined_call_operand.vmem [shape: f32[1,128], index: 2, kind: input, shape index: {}]
  %s3 = inlined_call_operand.vmem [shape: bf16[32,128], index: 3, kind: output, shape index: {}]
  %s4 = sld [smem:[#allocation0]]
  $region22: #{bi_unet_forward.31} parent=0
    _
  %s6 = ssub.s32 1, %s4
  %s7 = scalar_select 0, %s6, %s4
  // Predicated region
  $region2: #{bi_unet_forward.31} parent=0 // pred_check
    _
  $region3: #{bi_unet_forward.31} parent=0 // pred_check_branch
    %9 = sbr.rel (0) target = $region5
  $region4: #{bi_unet_forward.31} parent=0 // pred_region
    _
  $region5: #{bi_unet_forward.31} parent=0 // pred_fallthru
    _
  // Predicated region
  $region6: #{bi_unet_forward.31} parent=0 // pred_check
    _
  $region7: #{bi_unet_forward.31} parent=0 // pred_check_branch
    %11 = sbr.rel (0) target = $region9
  $region8: #{bi_unet_forward.31} parent=0 // pred_region
    _
  $region9: #{bi_unet_forward.31} parent=0 // pred_fallthru
    _
  // Predicated region
  $region10: #{bi_unet_forward.31} parent=0 // pred_check
    _
  $region11: #{bi_unet_forward.31} parent=0 // pred_check_branch
    %13 = sbr.rel (0) target = $region13
  $region12: #{bi_unet_forward.31} parent=0 // pred_region
    _
  $region13: #{bi_unet_forward.31} parent=0 // pred_fallthru
    _
  %v15 = vld [vmem:[%s0] sm:$0xf]
  %v16 = vld [vmem:[%s0 + $0x4] sm:$0xf]
  %v17 = vld [vmem:[%s0 + $0x8] sm:$0xf]
  %v18 = vld [vmem:[%s0 + $0xc] sm:$0xf]
  %v19 = vld [vmem:[%s1] sm:$0xf]
  %v20 = vld [vmem:[%s1 + $0x4] sm:$0xf]
  %v21 = vld [vmem:[%s1 + $0x8] sm:$0xf]
  %v22 = vld [vmem:[%s1 + $0xc] sm:$0xf]
  %v23 = vld [vmem:[%s2] sm:$0x1]
  %v25 = vlaneseq
  %v26 = vshrl.u32 %v25, 7
  %v27 = vsub.s32 0, %v26
  %v28 = vrot.slane %v23, %v27
  %v34 = vunpack.c.l.b16 %v15
  %v35 = vunpack.c.l.b16 %v16
  %v36 = vunpack.c.l.b16 %v17
  %v37 = vunpack.c.l.b16 %v18
  %v38 = vpack.c.b16 %v35, %v34
  %v39 = vpack.c.b16 %v37, %v36
  %v44 = vunpack.c.l.b16 %v19
  %v45 = vunpack.c.l.b16 %v20
  %v46 = vunpack.c.l.b16 %v21
  %v47 = vunpack.c.l.b16 %v22
  %v48 = vpack.c.b16 %v45, %v44
  %v49 = vpack.c.b16 %v47, %v46
  %vm52 = vcmask 261120
  %v54 = vsel %vm52, %v38, 0
  %v57 = vsel %vm52, %v39, 0
  %59 = vmatprep.subr.bf16.mxu0 0
  %60 = vmatpush1.bf16.msra.mxu0 %v48
  %61 = vmatprep.subr.bf16.mxu0 0
  %62 = vmatpush1.bf16.msra.mxu0 %v49
  %63 = vmatprep.subr.bf16.mxu0 0
  %64 = vmatpush1.bf16.msra.mxu0 0
  %65 = vmatprep.subr.bf16.mxu0 0
  %66 = vmatpush1.bf16.msra.mxu0 0
  %67 = vmatprep.subr.bf16.mxu0 0
  %68 = vmatpush1.bf16.msra.mxu0 0
  %69 = vmatprep.subr.bf16.mxu0 0
  %70 = vmatpush1.bf16.msra.mxu0 0
  %71 = vmatprep.subr.bf16.mxu0 0
  %72 = vmatpush1.bf16.msra.mxu0 0
  %73 = vmatprep.subr.bf16.mxu0 0
  %74 = vmatpush1.bf16.msra.mxu0 0
  %75 = vmatprep.subr.bf16.mxu0 0
  %76 = vmatpush1.bf16.msra.mxu0 0
  %77 = vmatprep.subr.bf16.mxu0 0
  %78 = vmatpush1.bf16.msra.mxu0 0
  %79 = vmatprep.subr.bf16.mxu0 0
  %80 = vmatpush1.bf16.msra.mxu0 0
  %81 = vmatprep.subr.bf16.mxu0 0
  %82 = vmatpush1.bf16.msra.mxu0 0
  %83 = vmatprep.subr.bf16.mxu0 0
  %84 = vmatpush1.bf16.msra.mxu0 0
  %85 = vmatprep.subr.bf16.mxu0 0
  %86 = vmatpush1.bf16.msra.mxu0 0
  %87 = vmatprep.subr.bf16.mxu0 0
  %88 = vmatpush1.bf16.msra.mxu0 0
  %89 = vmatprep.subr.bf16.mxu0 0
  %90 = vmatpush1.bf16.msra.mxu0 0
  %91 = vmatprep.mubr.bf16.mxu0 0
  %92 = vmatmul.mubr.bf16.gmra.mrb[0].mxu0 %v54
  %v93 = vpop.f32.mrb[0].mxu0
  %v94 = vadd.f32 %v28, %v93
  %v95 = vpop.f32.mrb[0].mxu0
  %v96 = vpop.f32.mrb[0].mxu0
  %v97 = vadd.f32 %v28, %v96
  %v98 = vpop.f32.mrb[0].mxu0
  %99 = vmatprep.mubr.bf16.mxu0 0
  %100 = vmatmul.mubr.bf16.gmra.mrb[0].mxu0 %v57
  %v101 = vpop.f32.mrb[0].mxu0
  %v102 = vadd.f32 %v28, %v101
  %v103 = vpop.f32.mrb[0].mxu0
  %v104 = vpop.f32.mrb[0].mxu0
  %v105 = vadd.f32 %v28, %v104
  %v106 = vpop.f32.mrb[0].mxu0
  %107 = vdwg.mxu0
  %v108 = vpack.c.bf16 %v97, %v94
  %v109 = vpack.c.bf16 %v105, %v102
  %v112 = vunpack.c.l.b16 %v108
  %v113 = vunpack.c.h.b16 %v108
  %v114 = vunpack.c.l.b16 %v109
  %v115 = vunpack.c.h.b16 %v109
  %v116 = vpack.c.b16 %v112, %v112
  %v117 = vpack.c.b16 %v113, %v113
  %v118 = vpack.c.b16 %v114, %v114
  %v119 = vpack.c.b16 %v115, %v115
  %124 = vst [vmem:[%s3] sm:$0xf] %v116
  %125 = vst [vmem:[%s3 + $0x4] sm:$0xf] %v117
  %126 = vst [vmem:[%s3 + $0x8] sm:$0xf] %v118
  %127 = vst [vmem:[%s3 + $0xc] sm:$0xf] %v119
  // Predicated region
  $region14: #{bi_unet_forward.31} parent=0 // pred_check
    _
  $region15: #{bi_unet_forward.31} parent=0 // pred_check_branch
    %129 = sbr.rel (0) target = $region17
  $region16: #{bi_unet_forward.31} parent=0 // pred_region
    _
  $region17: #{bi_unet_forward.31} parent=0 // pred_fallthru
    _
  // Predicated region
  $region18: #{bi_unet_forward.31} parent=0 // pred_check
    _
  $region19: #{bi_unet_forward.31} parent=0 // pred_check_branch
    %131 = sbr.rel (0) target = $region21
  $region20: #{bi_unet_forward.31} parent=0 // pred_region
    _
  $region21: #{bi_unet_forward.31} parent=0 // pred_fallthru
    _

</llo_original>
